<compile_context>
chip_gen: v7x
topology: tpu7x:2x2x1
jax: 0.10.0
libtpu: 0.0.40
codegen_flags: <defaults>
</compile_context>

<pallas_src>
import functools
import math

import numpy as np
import jax
import jax.numpy as jnp
from jax import lax
from jax.experimental import pallas as pl
from jax.experimental.pallas import tpu as pltpu

LN_EPS = 1e-5                     # PyTorch nn.LayerNorm default
_GELU_K = 0.7978845608028654      # sqrt(2/pi)


def _gelu(x):
    # tanh-approximated GELU: 1 EUP tanh + ~6 VPU ops (the previous erf
    # polynomial was ~15 VALU ops/element and saturated the VPU slot).
    # |err| vs exact-erf GELU < 1e-3, below the bf16 noise of the matmuls.
    # TODO(synk): switch to lax.erf once an EUP-backed erf lowering is
    # guaranteed on all target TPU generations.
    return 0.5 * x * (1.0 + jnp.tanh(_GELU_K * (x + 0.044715 * (x * x * x))))


# ---------------------------------------------------------------------------
# In-kernel building blocks (operate on jnp values held in VMEM/vregs)
# ---------------------------------------------------------------------------
def _conv_ln_gelu(x, w, gamma, beta, *, k, t, t_samp, groups):
    """x: (cin, t) f32 with `groups` samples side by side on the lane axis
    (t = groups * t_samp).  w: (cout, k*cin) bf16.
    Conv1d('same', bias=False) -> LayerNorm(channels) -> GELU."""
    cin = x.shape[0]
    pad_l = (k - 1) // 2
    pad_r = k - 1 - pad_l
    parts = []
    if pad_l:
        parts.append(jnp.zeros((cin, pad_l), jnp.float32))
    parts.append(x)
    if pad_r:
        parts.append(jnp.zeros((cin, pad_r), jnp.float32))
    xp = jnp.concatenate(parts, axis=1) if len(parts) > 1 else x

    pos = None
    if groups > 1 and k > 1:
        pos = lax.broadcasted_iota(jnp.int32, (1, t), 1)

    taps = []
    for j in range(k):
        d = j - pad_l                 # tap offset: stack[j][:, p] = x[:, p + d]
        tap = xp[:, j:j + t]
        if groups > 1 and d != 0:
            # Zero the columns whose source would leak across a sample
            # boundary (lane-batched samples share one row).
            if d > 0:
                bad = [(pos >= (b + 1) * t_samp - d) & (pos < (b + 1) * t_samp)
                       for b in range(groups)]
            else:
                bad = [(pos >= b * t_samp) & (pos < b * t_samp - d)
                       for b in range(groups)]
            invalid = functools.reduce(jnp.logical_or, bad)
            tap = tap * (1.0 - invalid.astype(jnp.float32))
        taps.append(tap)
    # (k*cin, t) tap stack -> single MXU push with contraction k*cin.
    # TODO(synk): pltpu.roll-based shifts would avoid the padded-concat
    # copies, but roll on sub-128 lane extents isn't guaranteed everywhere.
    stack = jnp.concatenate(taps, axis=0) if k > 1 else taps[0]

    acc = jnp.dot(w, stack.astype(jnp.bfloat16),
                  preferred_element_type=jnp.float32)          # (cout, t) f32
    # LayerNorm over the channel axis per time step (matches transpose ->
    # nn.LayerNorm(out_channels) -> transpose in the PyTorch ConvBlock).
    mean = jnp.mean(acc, axis=0, keepdims=True)
    cent = acc - mean
    var = jnp.mean(cent * cent, axis=0, keepdims=True)
    y = cent * lax.rsqrt(var + LN_EPS) * gamma + beta
    return _gelu(y)


def _maxpool_time(y, s, sel):
    """MaxPool1d(kernel=s, stride=s) along lanes.  Windowed max on the VPU,
    stride-s downsample as chunked bf16 matmuls with a tiny host-precomputed
    0/1 selection matrix (native MXU dtype).  Selected windows never cross a
    sample boundary because every per-sample length is divisible by s, so the
    zero padding at the global end is never picked up."""
    cout, t = y.shape
    yp = jnp.concatenate([y, jnp.zeros((cout, s - 1), y.dtype)], axis=1)
    m = yp[:, 0:t]
    for r in range(1, s):
        m = jnp.maximum(m, yp[:, r:r + t])
    m = m.astype(jnp.bfloat16)
    cpi = sel.shape[0]
    outs = [jnp.dot(m[:, q * cpi:(q + 1) * cpi], sel,
                    preferred_element_type=jnp.float32)
            for q in range(t // cpi)]
    return outs[0] if len(outs) == 1 else jnp.concatenate(outs, axis=1)


def _upsample_linear(y, up_mat, *, t_samp):
    """nn.Upsample(scale_factor=s, mode='linear', align_corners=False), exact.
    Chunked: each ci-column input chunk plus its (clamped) left/right
    neighbour columns is multiplied by one shared (ci+2, ci*s) interpolation
    matrix -> O(T*ci) MXU work / O(ci^2) VMEM instead of the dense O(T^2)."""
    cout, t = y.shape
    ci = up_mat.shape[0] - 2
    yb = y.astype(jnp.bfloat16)
    outs = []
    for q in range(t // ci):
        lo, hi = q * ci, (q + 1) * ci
        left = yb[:, lo:lo + 1] if lo % t_samp == 0 else yb[:, lo - 1:lo]
        right = yb[:, hi - 1:hi] if hi % t_samp == 0 else yb[:, hi:hi + 1]
        xc = jnp.concatenate([left, yb[:, lo:hi], right], axis=1)
        outs.append(jnp.dot(xc, up_mat, preferred_element_type=jnp.float32))
    return outs[0] if len(outs) == 1 else jnp.concatenate(outs, axis=1)


def _make_fused_kernel(blocks, groups):
    """blocks: static per-conv-block config, in execution order."""
    def kernel(*refs):
        o_ref = refs[-1]
        it = iter(refs[:-1])
        x = next(it)[0]                        # (n_electrodes, G*T) f32
        skips = []
        for blk in blocks:
            if blk["push_skip"]:
                skips.append(x)
            w = next(it)[...]                  # (cout, k*cin) bf16
            ln = next(it)[...]                 # (cout, 2) f32: [gamma|beta]
            gamma, beta = ln[:, 0:1], ln[:, 1:2]
            sel = next(it)[...] if blk["pool"] > 1 else None
            up = next(it)[...] if blk["upsample"] else None
            y = _conv_ln_gelu(x, w, gamma, beta, k=blk["k"], t=blk["t_in"],
                              t_samp=blk["t_samp"], groups=groups)
            if sel is not None:                # fused MaxPool1d
                y = _maxpool_time(y, blk["pool"], sel)
            if up is not None:                 # fused linear upsample
                y = _upsample_linear(y, up, t_samp=blk["t_samp"])
            if blk["cat_skip"] is not None:    # fused skip concat (channels)
                y = jnp.concatenate([y, skips[blk["cat_skip"]]], axis=0)
            x = y
        hw = next(it)[...]                     # (n_out, cin_head) bf16
        hb = next(it)[...]                     # (n_out, 1) f32
        out = jnp.dot(hw, x.astype(jnp.bfloat16),
                      preferred_element_type=jnp.float32) + hb
        o_ref[0] = out.astype(o_ref.dtype)
        # TODO(synk): sin/cos quaternion epilogue stays in plain JAX (Mosaic
        # sin/cos lowering is not guaranteed on all TPU generations).
    return kernel


# ---------------------------------------------------------------------------
# Host-side constant matrices and helpers
# ---------------------------------------------------------------------------
def _pick_chunk(total, multiple_of, target):
    """Largest c <= target with c | total and multiple_of | c (fallback total)."""
    for c in range(min(total, target), 0, -1):
        if total % c == 0 and c % multiple_of == 0:
            return c
    return total


def _pool_select_matrix(cpi, s):
    m = np.zeros((cpi, cpi // s), np.float32)
    for v in range(cpi // s):
        m[v * s, v] = 1.0
    return m


def _upsample_chunk_matrix(ci, s):
    """Rows = [left neighbour, x_0..x_{ci-1}, right neighbour]; columns are the
    ci*s linearly interpolated outputs (align_corners=False).  Feeding the
    chunk's own edge column as the neighbour at a sample boundary reproduces
    PyTorch's clamping exactly.  Weights for s=4 are exact in bf16."""
    m = np.zeros((ci + 2, ci * s), np.float32)
    for jo in range(ci * s):
        src = (jo + 0.5) / s - 0.5
        i0 = int(np.floor(src))
        w1 = src - i0
        m[i0 + 1, jo] += 1.0 - w1
        m[i0 + 2, jo] += w1
    return m


def _group_samples(x, g):
    b, c, t = x.shape
    return x.reshape(b // g, g, c, t).transpose(0, 2, 1, 3).reshape(b // g, c, g * t)


def _ungroup_samples(y, g, t):
    nb, c, _ = y.shape
    return y.reshape(nb, c, g, t).transpose(0, 2, 1, 3).reshape(nb * g, c, t)


# ---------------------------------------------------------------------------
# Wrapper
# ---------------------------------------------------------------------------
def hvatnet_forward(params, x, *, group_size=None):
    """x: (B, n_electrodes, T) -> (B, n_channels_out//4, 4, T), clipped to [-1, 1]."""
    B, n_elec, T = x.shape
    p = params
    strides = p["strides"]
    depth = len(p["down"])
    assert T % int(np.prod(strides)) == 0, "time must be divisible by prod(strides)"

    # Lane-batching: put G samples side by side on the lane axis so every
    # matmul / LN / GELU sees >=256 lanes, while keeping >=2 grid steps where
    # possible so both v7x TensorCores get work.
    if group_size is None:
        group_size = 1
        for g in (4, 3, 2):
            if B % g == 0 and B // g >= 2:
                group_size = g
                break
    G = group_size
    assert B % G == 0
    nb = B // G
    xg = _group_samples(x, G) if G > 1 else x
    t_total = G * T

    arrs = [xg]
    specs = [pl.BlockSpec((1, n_elec, t_total), lambda b: (b, 0, 0))]
    blocks = []
    flops = 0
    trans = 0

    def add_const(a):
        # TODO(synk): pack all constants into one bf16 + one f32 blob (or
        # pipeline_mode=pl.Buffered(1)) to single-buffer them; negligible at
        # these shapes.
        arrs.append(a)
        specs.append(pl.BlockSpec(a.shape, lambda b: (0, 0)))

    def add_block(bp, t_samp, *, pool=1, up_scale=None, push_skip=False,
                  cat_skip=None):
        nonlocal flops, trans
        w = bp["w"]                                    # (cout, cin, k) torch layout
        cout, cin, k = w.shape
        t_in = t_samp * G
        # (cout, k*cin): column index j*cin + ci matches the in-kernel tap stack.
        w_r = jnp.transpose(w, (0, 2, 1)).reshape(cout, k * cin)
        add_const(w_r.astype(jnp.bfloat16))
        add_const(jnp.stack([bp["gamma"], bp["beta"]], axis=1).astype(jnp.float32))
        flops += 2 * cout * k * cin * t_in
        trans += cout * t_in
        if pool > 1:
            cpi = _pick_chunk(t_in, pool, 128)
            add_const(jnp.asarray(_pool_select_matrix(cpi, pool), jnp.bfloat16))
            flops += 2 * cout * t_in * (cpi // pool)
        if up_scale is not None:
            ci = _pick_chunk(t_samp, 1, 32)
            add_const(jnp.asarray(_upsample_chunk_matrix(ci, up_scale), jnp.bfloat16))
            flops += 2 * cout * (ci + 2) * t_in * up_scale
        blocks.append(dict(k=k, t_in=t_in, t_samp=t_samp, pool=pool,
                           upsample=up_scale is not None,
                           push_skip=push_skip, cat_skip=cat_skip))

    # Same graph as PyTorch HVATNet: skips are the *inputs* of each down
    # block; each decoder block is conv -> upsample, then concat with the skip.
    t_cur = T
    add_block(p["spatial_reduce"], t_cur)
    for i, dp in enumerate(p["down"]):
        add_block(dp, t_cur, pool=strides[i], push_skip=True)
        t_cur //= strides[i]
    for j, up in enumerate(p["up"]):
        add_block(up, t_cur, up_scale=up["scale"], cat_skip=depth - 1 - j)
        t_cur *= up["scale"]
    assert t_cur == T

    hw = p["head_w"]                                   # (n_out, cin_head, 1)
    n_out, cin_head = hw.shape[0], hw.shape[1]
    add_const(hw.reshape(n_out, cin_head).astype(jnp.bfloat16))
    add_const(p["head_b"].reshape(n_out, 1).astype(jnp.float32))
    flops += 2 * n_out * cin_head * t_total

    bytes_accessed = int(
        xg.size * 4 + nb * n_out * t_total * 4
        + sum(int(np.prod(a.shape)) * a.dtype.itemsize for a in arrs[1:]))

    y = pl.pallas_call(
        _make_fused_kernel(tuple(blocks), G),
        out_shape=jax.ShapeDtypeStruct((nb, n_out, t_total), jnp.float32),
        grid=(nb,),
        in_specs=specs,
        out_specs=pl.BlockSpec((1, n_out, t_total), lambda b: (b, 0, 0)),
        compiler_params=pltpu.CompilerParams(
            dimension_semantics=("parallel",),
            # Explicit scoped-VMEM budget: activations + skips + the small
            # per-level constant matrices are far below this at these shapes;
            # safe on v5e/v6e (128 MiB) and v7x (64 MiB) alike.
            # TODO(synk): at production T add a time-tile grid axis with
            # receptive-field halos instead of keeping the full row resident.
            vmem_limit_bytes=32 * 1024 * 1024),
        cost_estimate=pl.CostEstimate(flops=int(flops) * nb,
                                      transcendentals=int(trans) * nb,
                                      bytes_accessed=bytes_accessed),
    )(*arrs)

    if G > 1:
        y = _ungroup_samples(y, G, T)

    # Quaternion head (tiny elementwise glue, no matmuls/reductions).
    y = y.reshape(B, -1, 4, T)
    phi_2, a1, a2, a3 = y[:, :, 0], y[:, :, 1], y[:, :, 2], y[:, :, 3]
    sin, cos = jnp.sin(phi_2), jnp.cos(phi_2)
    q = jnp.stack([a1 * sin, a2 * sin, a3 * sin, cos], axis=2)
    return jnp.clip(q, -1.0, 1.0)


# ---------------------------------------------------------------------------
# HVATNet parameters
# ---------------------------------------------------------------------------
def init_hvatnet_params(key, n_electrodes, n_channels_out, channels,
                        kernel_sizes, strides, decoder_reduce=1):
    # NOTE: like the original PyTorch module, channel bookkeeping is only
    # consistent for decoder_reduce=1 (encoder skips are full-width).
    depth = len(channels) - 1

    def conv_block_params(k, cin, cout, ksz):
        w = jax.random.normal(k, (cout, cin, ksz), jnp.float32) / math.sqrt(cin * ksz)
        return {"w": w,
                "gamma": jnp.ones((cout,), jnp.float32),   # LayerNorm defaults
                "beta": jnp.zeros((cout,), jnp.float32)}

    keys = jax.random.split(key, 2 * depth + 2)
    params = {"strides": list(strides)}
    params["spatial_reduce"] = conv_block_params(keys[0], n_electrodes, channels[0], 3)
    params["down"] = [conv_block_params(keys[1 + i], channels[i], channels[i + 1],
                                        kernel_sizes[i]) for i in range(depth)]

    dec_ch = [c // decoder_reduce for c in channels[:-1]] + channels[-1:]
    ups = []
    for idx, i in enumerate(range(depth - 1, -1, -1)):
        cin = dec_ch[i + 1] if i == depth - 1 else dec_ch[i + 1] * 2
        blk = conv_block_params(keys[1 + depth + idx], cin, dec_ch[i], kernel_sizes[i])
        blk["scale"] = strides[i]
        ups.append(blk)
    params["up"] = ups

    k1, k2 = jax.random.split(keys[-1])
    params["head_w"] = (jax.random.normal(k1, (n_channels_out, dec_ch[0] * 2, 1),
                                          jnp.float32)
                        / math.sqrt(dec_ch[0] * 2))
    params["head_b"] = jax.random.normal(k2, (n_channels_out,), jnp.float32) * 0.01
    return params


if __name__ == "__main__":
    # Small config: n_channels_out divisible by 4 (quaternion reshape), T
    # divisible by prod(strides)=64, B=4 so the default grouping gives
    # 2 grid steps x 2 lane-batched samples.
    n_electrodes, n_channels_out = 8, 8
    channels = [8, 8, 16, 16]
    kernel_sizes = [3, 3, 3]
    strides = [4, 4, 4]
    B, T = 4, 128

    key = jax.random.PRNGKey(0)
    kp, kx = jax.random.split(key)
    params = init_hvatnet_params(kp, n_electrodes, n_channels_out, channels,
                                 kernel_sizes, strides)
    x = jax.random.normal(kx, (B, n_electrodes, T), jnp.float32)

    fwd = jax.jit(functools.partial(hvatnet_forward, params))
    y = fwd(x)
    jax.block_until_ready(y)
    assert y.shape == (B, n_channels_out // 4, 4, T), y.shape
    assert float(jnp.max(jnp.abs(y))) <= 1.0 + 1e-6

    # Lane-batched (2 samples / grid step) and unbatched paths must agree.
    y_ref = jax.jit(functools.partial(hvatnet_forward, params, group_size=1))(x)
    jax.block_until_ready(y_ref)
    assert bool(jnp.allclose(y, y_ref, atol=1e-2, rtol=1e-2)), "lane-batch mismatch"

    print("KERNEL_OK")
</pallas_src>

<mosaic_0001>
module attributes {stable_mosaic.version = 11 : i64} {
  func.func @kernel(%arg0: i32, %arg1: memref<1x8x256xf32, #tpu.memory_space<vmem>>, %arg2: memref<8x24xbf16, #tpu.memory_space<vmem>>, %arg3: memref<8x2xf32, #tpu.memory_space<vmem>>, %arg4: memref<8x24xbf16, #tpu.memory_space<vmem>>, %arg5: memref<8x2xf32, #tpu.memory_space<vmem>>, %arg6: memref<128x32xbf16, #tpu.memory_space<vmem>>, %arg7: memref<16x24xbf16, #tpu.memory_space<vmem>>, %arg8: memref<16x2xf32, #tpu.memory_space<vmem>>, %arg9: memref<64x16xbf16, #tpu.memory_space<vmem>>, %arg10: memref<16x48xbf16, #tpu.memory_space<vmem>>, %arg11: memref<16x2xf32, #tpu.memory_space<vmem>>, %arg12: memref<16x4xbf16, #tpu.memory_space<vmem>>, %arg13: memref<16x48xbf16, #tpu.memory_space<vmem>>, %arg14: memref<16x2xf32, #tpu.memory_space<vmem>>, %arg15: memref<4x8xbf16, #tpu.memory_space<vmem>>, %arg16: memref<8x96xbf16, #tpu.memory_space<vmem>>, %arg17: memref<8x2xf32, #tpu.memory_space<vmem>>, %arg18: memref<10x32xbf16, #tpu.memory_space<vmem>>, %arg19: memref<8x48xbf16, #tpu.memory_space<vmem>>, %arg20: memref<8x2xf32, #tpu.memory_space<vmem>>, %arg21: memref<34x128xbf16, #tpu.memory_space<vmem>>, %arg22: memref<8x16xbf16, #tpu.memory_space<vmem>>, %arg23: memref<8x1xf32, #tpu.memory_space<vmem>>, %arg24: memref<1x8x256xf32, #tpu.memory_space<vmem>>) attributes {dimension_semantics = [#tpu.dimension_semantics<parallel>], iteration_bounds = array<i64: 2>, scalar_prefetch = 0 : i64, scratch_operands = 0 : i64, tpu.core_type = #tpu.core_type<tc>, window_params = [{transform_indices = @transform_0, window_bounds = array<i64: 1, 8, 256>}, {pipeline_mode = #tpu.pipeline_mode<synchronous>, transform_indices = @transform_1, window_bounds = array<i64: 8, 24>}, {pipeline_mode = #tpu.pipeline_mode<synchronous>, transform_indices = @transform_2, window_bounds = array<i64: 8, 2>}, {pipeline_mode = #tpu.pipeline_mode<synchronous>, transform_indices = @transform_3, window_bounds = array<i64: 8, 24>}, {pipeline_mode = #tpu.pipeline_mode<synchronous>, transform_indices = @transform_4, window_bounds = array<i64: 8, 2>}, {pipeline_mode = #tpu.pipeline_mode<synchronous>, transform_indices = @transform_5, window_bounds = array<i64: 128, 32>}, {pipeline_mode = #tpu.pipeline_mode<synchronous>, transform_indices = @transform_6, window_bounds = array<i64: 16, 24>}, {pipeline_mode = #tpu.pipeline_mode<synchronous>, transform_indices = @transform_7, window_bounds = array<i64: 16, 2>}, {pipeline_mode = #tpu.pipeline_mode<synchronous>, transform_indices = @transform_8, window_bounds = array<i64: 64, 16>}, {pipeline_mode = #tpu.pipeline_mode<synchronous>, transform_indices = @transform_9, window_bounds = array<i64: 16, 48>}, {pipeline_mode = #tpu.pipeline_mode<synchronous>, transform_indices = @transform_10, window_bounds = array<i64: 16, 2>}, {pipeline_mode = #tpu.pipeline_mode<synchronous>, transform_indices = @transform_11, window_bounds = array<i64: 16, 4>}, {pipeline_mode = #tpu.pipeline_mode<synchronous>, transform_indices = @transform_12, window_bounds = array<i64: 16, 48>}, {pipeline_mode = #tpu.pipeline_mode<synchronous>, transform_indices = @transform_13, window_bounds = array<i64: 16, 2>}, {pipeline_mode = #tpu.pipeline_mode<synchronous>, transform_indices = @transform_14, window_bounds = array<i64: 4, 8>}, {pipeline_mode = #tpu.pipeline_mode<synchronous>, transform_indices = @transform_15, window_bounds = array<i64: 8, 96>}, {pipeline_mode = #tpu.pipeline_mode<synchronous>, transform_indices = @transform_16, window_bounds = array<i64: 8, 2>}, {pipeline_mode = #tpu.pipeline_mode<synchronous>, transform_indices = @transform_17, window_bounds = array<i64: 10, 32>}, {pipeline_mode = #tpu.pipeline_mode<synchronous>, transform_indices = @transform_18, window_bounds = array<i64: 8, 48>}, {pipeline_mode = #tpu.pipeline_mode<synchronous>, transform_indices = @transform_19, window_bounds = array<i64: 8, 2>}, {pipeline_mode = #tpu.pipeline_mode<synchronous>, transform_indices = @transform_20, window_bounds = array<i64: 34, 128>}, {pipeline_mode = #tpu.pipeline_mode<synchronous>, transform_indices = @transform_21, window_bounds = array<i64: 8, 16>}, {pipeline_mode = #tpu.pipeline_mode<synchronous>, transform_indices = @transform_22, window_bounds = array<i64: 8, 1>}, {transform_indices = @transform_23, window_bounds = array<i64: 1, 8, 256>}]} {
    %c0 = arith.constant 0 : index
    %c0_0 = arith.constant 0 : index
    %c0_1 = arith.constant 0 : index
    %0 = vector.load %arg1[%c0, %c0_0, %c0_1] : memref<1x8x256xf32, #tpu.memory_space<vmem>>, vector<1x8x256xf32>
    %1 = vector.shape_cast %0 : vector<1x8x256xf32> to vector<8x256xf32>
    %c0_2 = arith.constant 0 : index
    %c0_3 = arith.constant 0 : index
    %2 = vector.load %arg2[%c0_2, %c0_3] : memref<8x24xbf16, #tpu.memory_space<vmem>>, vector<8x24xbf16>
    %c0_4 = arith.constant 0 : index
    %c0_5 = arith.constant 0 : index
    %3 = vector.load %arg3[%c0_4, %c0_5] : memref<8x2xf32, #tpu.memory_space<vmem>>, vector<8x2xf32>
    %4 = vector.extract_strided_slice %3 {offsets = [0, 0], sizes = [8, 1], strides = [1, 1]} : vector<8x2xf32> to vector<8x1xf32>
    %5 = vector.extract_strided_slice %3 {offsets = [0, 1], sizes = [8, 1], strides = [1, 1]} : vector<8x2xf32> to vector<8x1xf32>
    %cst = arith.constant 0.000000e+00 : f32
    %6 = vector.broadcast %cst : f32 to vector<8x1xf32>
    %cst_6 = arith.constant 0.000000e+00 : f32
    %7 = vector.broadcast %cst_6 : f32 to vector<8x1xf32>
    %8 = tpu.concatenate %6, %1, %7 in 1 : vector<8x1xf32>, vector<8x256xf32>, vector<8x1xf32> -> vector<8x258xf32>
    %9 = tpu.iota {dimensions = array<i32: 1>} : vector<1x256xi32>
    %10 = vector.extract_strided_slice %8 {offsets = [0, 0], sizes = [8, 256], strides = [1, 1]} : vector<8x258xf32> to vector<8x256xf32>
    %c0_i32 = arith.constant 0 : i32
    %11 = vector.broadcast %c0_i32 : i32 to vector<1x256xi32>
    %12 = arith.cmpi sge, %9, %11 : vector<1x256xi32>
    %c1_i32 = arith.constant 1 : i32
    %13 = vector.broadcast %c1_i32 : i32 to vector<1x256xi32>
    %14 = arith.cmpi slt, %9, %13 : vector<1x256xi32>
    %15 = arith.andi %12, %14 : vector<1x256xi1>
    %c128_i32 = arith.constant 128 : i32
    %16 = vector.broadcast %c128_i32 : i32 to vector<1x256xi32>
    %17 = arith.cmpi sge, %9, %16 : vector<1x256xi32>
    %c129_i32 = arith.constant 129 : i32
    %18 = vector.broadcast %c129_i32 : i32 to vector<1x256xi32>
    %19 = arith.cmpi slt, %9, %18 : vector<1x256xi32>
    %20 = arith.andi %17, %19 : vector<1x256xi1>
    %21 = arith.ori %15, %20 : vector<1x256xi1>
    %22 = arith.extui %21 : vector<1x256xi1> to vector<1x256xi32>
    %23 = arith.sitofp %22 : vector<1x256xi32> to vector<1x256xf32>
    %cst_7 = arith.constant 1.000000e+00 : f32
    %24 = vector.broadcast %cst_7 : f32 to vector<1x256xf32>
    %25 = arith.subf %24, %23 : vector<1x256xf32>
    %26 = vector.broadcast %25 : vector<1x256xf32> to vector<8x256xf32>
    %27 = arith.mulf %10, %26 : vector<8x256xf32>
    %28 = vector.extract_strided_slice %8 {offsets = [0, 1], sizes = [8, 256], strides = [1, 1]} : vector<8x258xf32> to vector<8x256xf32>
    %29 = vector.extract_strided_slice %8 {offsets = [0, 2], sizes = [8, 256], strides = [1, 1]} : vector<8x258xf32> to vector<8x256xf32>
    %c127_i32 = arith.constant 127 : i32
    %30 = vector.broadcast %c127_i32 : i32 to vector<1x256xi32>
    %31 = arith.cmpi sge, %9, %30 : vector<1x256xi32>
    %c128_i32_8 = arith.constant 128 : i32
    %32 = vector.broadcast %c128_i32_8 : i32 to vector<1x256xi32>
    %33 = arith.cmpi slt, %9, %32 : vector<1x256xi32>
    %34 = arith.andi %31, %33 : vector<1x256xi1>
    %c255_i32 = arith.constant 255 : i32
    %35 = vector.broadcast %c255_i32 : i32 to vector<1x256xi32>
    %36 = arith.cmpi sge, %9, %35 : vector<1x256xi32>
    %c256_i32 = arith.constant 256 : i32
    %37 = vector.broadcast %c256_i32 : i32 to vector<1x256xi32>
    %38 = arith.cmpi slt, %9, %37 : vector<1x256xi32>
    %39 = arith.andi %36, %38 : vector<1x256xi1>
    %40 = arith.ori %34, %39 : vector<1x256xi1>
    %41 = arith.extui %40 : vector<1x256xi1> to vector<1x256xi32>
    %42 = arith.sitofp %41 : vector<1x256xi32> to vector<1x256xf32>
    %cst_9 = arith.constant 1.000000e+00 : f32
    %43 = vector.broadcast %cst_9 : f32 to vector<1x256xf32>
    %44 = arith.subf %43, %42 : vector<1x256xf32>
    %45 = vector.broadcast %44 : vector<1x256xf32> to vector<8x256xf32>
    %46 = arith.mulf %29, %45 : vector<8x256xf32>
    %47 = tpu.concatenate %27, %28, %46 in 0 : vector<8x256xf32>, vector<8x256xf32>, vector<8x256xf32> -> vector<24x256xf32>
    %48 = arith.truncf %47 : vector<24x256xf32> to vector<24x256xbf16>
    %cst_10 = arith.constant dense<0.000000e+00> : vector<8x256xf32>
    %49 = tpu.matmul %2, %48, %cst_10 {dimension_numbers = #tpu.dot_dimension_numbers<[1], [0], [0], [1], [0, 0, 1, 1], [], []>} : vector<8x24xbf16>, vector<24x256xbf16>, vector<8x256xf32> -> vector<8x256xf32>
    %cst_11 = arith.constant dense<0.000000e+00> : vector<256xf32>
    %50 = vector.multi_reduction <add>, %49, %cst_11 [0] : vector<8x256xf32> to vector<256xf32>
    %51 = vector.shape_cast %50 : vector<256xf32> to vector<1x256xf32>
    %cst_12 = arith.constant 8.000000e+00 : f32
    %52 = vector.broadcast %cst_12 : f32 to vector<1x256xf32>
    %53 = arith.divf %51, %52 : vector<1x256xf32>
    %54 = vector.broadcast %53 : vector<1x256xf32> to vector<8x256xf32>
    %55 = arith.subf %49, %54 : vector<8x256xf32>
    %56 = arith.mulf %55, %55 : vector<8x256xf32>
    %cst_13 = arith.constant dense<0.000000e+00> : vector<256xf32>
    %57 = vector.multi_reduction <add>, %56, %cst_13 [0] : vector<8x256xf32> to vector<256xf32>
    %58 = vector.shape_cast %57 : vector<256xf32> to vector<1x256xf32>
    %cst_14 = arith.constant 8.000000e+00 : f32
    %59 = vector.broadcast %cst_14 : f32 to vector<1x256xf32>
    %60 = arith.divf %58, %59 : vector<1x256xf32>
    %cst_15 = arith.constant 9.99999974E-6 : f32
    %61 = vector.broadcast %cst_15 : f32 to vector<1x256xf32>
    %62 = arith.addf %60, %61 : vector<1x256xf32>
    %63 = math.rsqrt %62 : vector<1x256xf32>
    %64 = vector.broadcast %63 : vector<1x256xf32> to vector<8x256xf32>
    %65 = arith.mulf %55, %64 : vector<8x256xf32>
    %66 = vector.broadcast %4 : vector<8x1xf32> to vector<8x256xf32>
    %67 = arith.mulf %65, %66 : vector<8x256xf32>
    %68 = vector.broadcast %5 : vector<8x1xf32> to vector<8x256xf32>
    %69 = arith.addf %67, %68 : vector<8x256xf32>
    %cst_16 = arith.constant 5.000000e-01 : f32
    %70 = vector.broadcast %cst_16 : f32 to vector<8x256xf32>
    %71 = arith.mulf %70, %69 : vector<8x256xf32>
    %72 = arith.mulf %69, %69 : vector<8x256xf32>
    %73 = arith.mulf %72, %69 : vector<8x256xf32>
    %cst_17 = arith.constant 4.471500e-02 : f32
    %74 = vector.broadcast %cst_17 : f32 to vector<8x256xf32>
    %75 = arith.mulf %74, %73 : vector<8x256xf32>
    %76 = arith.addf %69, %75 : vector<8x256xf32>
    %cst_18 = arith.constant 0.797884583 : f32
    %77 = vector.broadcast %cst_18 : f32 to vector<8x256xf32>
    %78 = arith.mulf %77, %76 : vector<8x256xf32>
    %79 = math.tanh %78 : vector<8x256xf32>
    %cst_19 = arith.constant 1.000000e+00 : f32
    %80 = vector.broadcast %cst_19 : f32 to vector<8x256xf32>
    %81 = arith.addf %80, %79 : vector<8x256xf32>
    %82 = arith.mulf %71, %81 : vector<8x256xf32>
    %c0_20 = arith.constant 0 : index
    %c0_21 = arith.constant 0 : index
    %83 = vector.load %arg4[%c0_20, %c0_21] : memref<8x24xbf16, #tpu.memory_space<vmem>>, vector<8x24xbf16>
    %c0_22 = arith.constant 0 : index
    %c0_23 = arith.constant 0 : index
    %84 = vector.load %arg5[%c0_22, %c0_23] : memref<8x2xf32, #tpu.memory_space<vmem>>, vector<8x2xf32>
    %85 = vector.extract_strided_slice %84 {offsets = [0, 0], sizes = [8, 1], strides = [1, 1]} : vector<8x2xf32> to vector<8x1xf32>
    %86 = vector.extract_strided_slice %84 {offsets = [0, 1], sizes = [8, 1], strides = [1, 1]} : vector<8x2xf32> to vector<8x1xf32>
    %c0_24 = arith.constant 0 : index
    %c0_25 = arith.constant 0 : index
    %87 = vector.load %arg6[%c0_24, %c0_25] : memref<128x32xbf16, #tpu.memory_space<vmem>>, vector<128x32xbf16>
    %cst_26 = arith.constant 0.000000e+00 : f32
    %88 = vector.broadcast %cst_26 : f32 to vector<8x1xf32>
    %cst_27 = arith.constant 0.000000e+00 : f32
    %89 = vector.broadcast %cst_27 : f32 to vector<8x1xf32>
    %90 = tpu.concatenate %88, %82, %89 in 1 : vector<8x1xf32>, vector<8x256xf32>, vector<8x1xf32> -> vector<8x258xf32>
    %91 = tpu.iota {dimensions = array<i32: 1>} : vector<1x256xi32>
    %92 = vector.extract_strided_slice %90 {offsets = [0, 0], sizes = [8, 256], strides = [1, 1]} : vector<8x258xf32> to vector<8x256xf32>
    %c0_i32_28 = arith.constant 0 : i32
    %93 = vector.broadcast %c0_i32_28 : i32 to vector<1x256xi32>
    %94 = arith.cmpi sge, %91, %93 : vector<1x256xi32>
    %c1_i32_29 = arith.constant 1 : i32
    %95 = vector.broadcast %c1_i32_29 : i32 to vector<1x256xi32>
    %96 = arith.cmpi slt, %91, %95 : vector<1x256xi32>
    %97 = arith.andi %94, %96 : vector<1x256xi1>
    %c128_i32_30 = arith.constant 128 : i32
    %98 = vector.broadcast %c128_i32_30 : i32 to vector<1x256xi32>
    %99 = arith.cmpi sge, %91, %98 : vector<1x256xi32>
    %c129_i32_31 = arith.constant 129 : i32
    %100 = vector.broadcast %c129_i32_31 : i32 to vector<1x256xi32>
    %101 = arith.cmpi slt, %91, %100 : vector<1x256xi32>
    %102 = arith.andi %99, %101 : vector<1x256xi1>
    %103 = arith.ori %97, %102 : vector<1x256xi1>
    %104 = arith.extui %103 : vector<1x256xi1> to vector<1x256xi32>
    %105 = arith.sitofp %104 : vector<1x256xi32> to vector<1x256xf32>
    %cst_32 = arith.constant 1.000000e+00 : f32
    %106 = vector.broadcast %cst_32 : f32 to vector<1x256xf32>
    %107 = arith.subf %106, %105 : vector<1x256xf32>
    %108 = vector.broadcast %107 : vector<1x256xf32> to vector<8x256xf32>
    %109 = arith.mulf %92, %108 : vector<8x256xf32>
    %110 = vector.extract_strided_slice %90 {offsets = [0, 1], sizes = [8, 256], strides = [1, 1]} : vector<8x258xf32> to vector<8x256xf32>
    %111 = vector.extract_strided_slice %90 {offsets = [0, 2], sizes = [8, 256], strides = [1, 1]} : vector<8x258xf32> to vector<8x256xf32>
    %c127_i32_33 = arith.constant 127 : i32
    %112 = vector.broadcast %c127_i32_33 : i32 to vector<1x256xi32>
    %113 = arith.cmpi sge, %91, %112 : vector<1x256xi32>
    %c128_i32_34 = arith.constant 128 : i32
    %114 = vector.broadcast %c128_i32_34 : i32 to vector<1x256xi32>
    %115 = arith.cmpi slt, %91, %114 : vector<1x256xi32>
    %116 = arith.andi %113, %115 : vector<1x256xi1>
    %c255_i32_35 = arith.constant 255 : i32
    %117 = vector.broadcast %c255_i32_35 : i32 to vector<1x256xi32>
    %118 = arith.cmpi sge, %91, %117 : vector<1x256xi32>
    %c256_i32_36 = arith.constant 256 : i32
    %119 = vector.broadcast %c256_i32_36 : i32 to vector<1x256xi32>
    %120 = arith.cmpi slt, %91, %119 : vector<1x256xi32>
    %121 = arith.andi %118, %120 : vector<1x256xi1>
    %122 = arith.ori %116, %121 : vector<1x256xi1>
    %123 = arith.extui %122 : vector<1x256xi1> to vector<1x256xi32>
    %124 = arith.sitofp %123 : vector<1x256xi32> to vector<1x256xf32>
    %cst_37 = arith.constant 1.000000e+00 : f32
    %125 = vector.broadcast %cst_37 : f32 to vector<1x256xf32>
    %126 = arith.subf %125, %124 : vector<1x256xf32>
    %127 = vector.broadcast %126 : vector<1x256xf32> to vector<8x256xf32>
    %128 = arith.mulf %111, %127 : vector<8x256xf32>
    %129 = tpu.concatenate %109, %110, %128 in 0 : vector<8x256xf32>, vector<8x256xf32>, vector<8x256xf32> -> vector<24x256xf32>
    %130 = arith.truncf %129 : vector<24x256xf32> to vector<24x256xbf16>
    %cst_38 = arith.constant dense<0.000000e+00> : vector<8x256xf32>
    %131 = tpu.matmul %83, %130, %cst_38 {dimension_numbers = #tpu.dot_dimension_numbers<[1], [0], [0], [1], [0, 0, 1, 1], [], []>} : vector<8x24xbf16>, vector<24x256xbf16>, vector<8x256xf32> -> vector<8x256xf32>
    %cst_39 = arith.constant dense<0.000000e+00> : vector<256xf32>
    %132 = vector.multi_reduction <add>, %131, %cst_39 [0] : vector<8x256xf32> to vector<256xf32>
    %133 = vector.shape_cast %132 : vector<256xf32> to vector<1x256xf32>
    %cst_40 = arith.constant 8.000000e+00 : f32
    %134 = vector.broadcast %cst_40 : f32 to vector<1x256xf32>
    %135 = arith.divf %133, %134 : vector<1x256xf32>
    %136 = vector.broadcast %135 : vector<1x256xf32> to vector<8x256xf32>
    %137 = arith.subf %131, %136 : vector<8x256xf32>
    %138 = arith.mulf %137, %137 : vector<8x256xf32>
    %cst_41 = arith.constant dense<0.000000e+00> : vector<256xf32>
    %139 = vector.multi_reduction <add>, %138, %cst_41 [0] : vector<8x256xf32> to vector<256xf32>
    %140 = vector.shape_cast %139 : vector<256xf32> to vector<1x256xf32>
    %cst_42 = arith.constant 8.000000e+00 : f32
    %141 = vector.broadcast %cst_42 : f32 to vector<1x256xf32>
    %142 = arith.divf %140, %141 : vector<1x256xf32>
    %cst_43 = arith.constant 9.99999974E-6 : f32
    %143 = vector.broadcast %cst_43 : f32 to vector<1x256xf32>
    %144 = arith.addf %142, %143 : vector<1x256xf32>
    %145 = math.rsqrt %144 : vector<1x256xf32>
    %146 = vector.broadcast %145 : vector<1x256xf32> to vector<8x256xf32>
    %147 = arith.mulf %137, %146 : vector<8x256xf32>
    %148 = vector.broadcast %85 : vector<8x1xf32> to vector<8x256xf32>
    %149 = arith.mulf %147, %148 : vector<8x256xf32>
    %150 = vector.broadcast %86 : vector<8x1xf32> to vector<8x256xf32>
    %151 = arith.addf %149, %150 : vector<8x256xf32>
    %cst_44 = arith.constant 5.000000e-01 : f32
    %152 = vector.broadcast %cst_44 : f32 to vector<8x256xf32>
    %153 = arith.mulf %152, %151 : vector<8x256xf32>
    %154 = arith.mulf %151, %151 : vector<8x256xf32>
    %155 = arith.mulf %154, %151 : vector<8x256xf32>
    %cst_45 = arith.constant 4.471500e-02 : f32
    %156 = vector.broadcast %cst_45 : f32 to vector<8x256xf32>
    %157 = arith.mulf %156, %155 : vector<8x256xf32>
    %158 = arith.addf %151, %157 : vector<8x256xf32>
    %cst_46 = arith.constant 0.797884583 : f32
    %159 = vector.broadcast %cst_46 : f32 to vector<8x256xf32>
    %160 = arith.mulf %159, %158 : vector<8x256xf32>
    %161 = math.tanh %160 : vector<8x256xf32>
    %cst_47 = arith.constant 1.000000e+00 : f32
    %162 = vector.broadcast %cst_47 : f32 to vector<8x256xf32>
    %163 = arith.addf %162, %161 : vector<8x256xf32>
    %164 = arith.mulf %153, %163 : vector<8x256xf32>
    %cst_48 = arith.constant 0.000000e+00 : f32
    %165 = vector.broadcast %cst_48 : f32 to vector<8x3xf32>
    %166 = tpu.concatenate %164, %165 in 1 : vector<8x256xf32>, vector<8x3xf32> -> vector<8x259xf32>
    %167 = vector.extract_strided_slice %166 {offsets = [0, 0], sizes = [8, 256], strides = [1, 1]} : vector<8x259xf32> to vector<8x256xf32>
    %168 = vector.extract_strided_slice %166 {offsets = [0, 1], sizes = [8, 256], strides = [1, 1]} : vector<8x259xf32> to vector<8x256xf32>
    %169 = arith.maximumf %167, %168 : vector<8x256xf32>
    %170 = vector.extract_strided_slice %166 {offsets = [0, 2], sizes = [8, 256], strides = [1, 1]} : vector<8x259xf32> to vector<8x256xf32>
    %171 = arith.maximumf %169, %170 : vector<8x256xf32>
    %172 = vector.extract_strided_slice %166 {offsets = [0, 3], sizes = [8, 256], strides = [1, 1]} : vector<8x259xf32> to vector<8x256xf32>
    %173 = arith.maximumf %171, %172 : vector<8x256xf32>
    %174 = arith.truncf %173 : vector<8x256xf32> to vector<8x256xbf16>
    %175 = vector.extract_strided_slice %174 {offsets = [0, 0], sizes = [8, 128], strides = [1, 1]} : vector<8x256xbf16> to vector<8x128xbf16>
    %cst_49 = arith.constant dense<0.000000e+00> : vector<8x32xf32>
    %176 = tpu.matmul %175, %87, %cst_49 {dimension_numbers = #tpu.dot_dimension_numbers<[1], [0], [0], [1], [0, 0, 1, 1], [], []>} : vector<8x128xbf16>, vector<128x32xbf16>, vector<8x32xf32> -> vector<8x32xf32>
    %177 = vector.extract_strided_slice %174 {offsets = [0, 128], sizes = [8, 128], strides = [1, 1]} : vector<8x256xbf16> to vector<8x128xbf16>
    %cst_50 = arith.constant dense<0.000000e+00> : vector<8x32xf32>
    %178 = tpu.matmul %177, %87, %cst_50 {dimension_numbers = #tpu.dot_dimension_numbers<[1], [0], [0], [1], [0, 0, 1, 1], [], []>} : vector<8x128xbf16>, vector<128x32xbf16>, vector<8x32xf32> -> vector<8x32xf32>
    %179 = tpu.concatenate %176, %178 in 1 : vector<8x32xf32>, vector<8x32xf32> -> vector<8x64xf32>
    %c0_51 = arith.constant 0 : index
    %c0_52 = arith.constant 0 : index
    %180 = vector.load %arg7[%c0_51, %c0_52] : memref<16x24xbf16, #tpu.memory_space<vmem>>, vector<16x24xbf16>
    %c0_53 = arith.constant 0 : index
    %c0_54 = arith.constant 0 : index
    %181 = vector.load %arg8[%c0_53, %c0_54] : memref<16x2xf32, #tpu.memory_space<vmem>>, vector<16x2xf32>
    %182 = vector.extract_strided_slice %181 {offsets = [0, 0], sizes = [16, 1], strides = [1, 1]} : vector<16x2xf32> to vector<16x1xf32>
    %183 = vector.extract_strided_slice %181 {offsets = [0, 1], sizes = [16, 1], strides = [1, 1]} : vector<16x2xf32> to vector<16x1xf32>
    %c0_55 = arith.constant 0 : index
    %c0_56 = arith.constant 0 : index
    %184 = vector.load %arg9[%c0_55, %c0_56] : memref<64x16xbf16, #tpu.memory_space<vmem>>, vector<64x16xbf16>
    %cst_57 = arith.constant 0.000000e+00 : f32
    %185 = vector.broadcast %cst_57 : f32 to vector<8x1xf32>
    %cst_58 = arith.constant 0.000000e+00 : f32
    %186 = vector.broadcast %cst_58 : f32 to vector<8x1xf32>
    %187 = tpu.concatenate %185, %179, %186 in 1 : vector<8x1xf32>, vector<8x64xf32>, vector<8x1xf32> -> vector<8x66xf32>
    %188 = tpu.iota {dimensions = array<i32: 1>} : vector<1x64xi32>
    %189 = vector.extract_strided_slice %187 {offsets = [0, 0], sizes = [8, 64], strides = [1, 1]} : vector<8x66xf32> to vector<8x64xf32>
    %c0_i32_59 = arith.constant 0 : i32
    %190 = vector.broadcast %c0_i32_59 : i32 to vector<1x64xi32>
    %191 = arith.cmpi sge, %188, %190 : vector<1x64xi32>
    %c1_i32_60 = arith.constant 1 : i32
    %192 = vector.broadcast %c1_i32_60 : i32 to vector<1x64xi32>
    %193 = arith.cmpi slt, %188, %192 : vector<1x64xi32>
    %194 = arith.andi %191, %193 : vector<1x64xi1>
    %c32_i32 = arith.constant 32 : i32
    %195 = vector.broadcast %c32_i32 : i32 to vector<1x64xi32>
    %196 = arith.cmpi sge, %188, %195 : vector<1x64xi32>
    %c33_i32 = arith.constant 33 : i32
    %197 = vector.broadcast %c33_i32 : i32 to vector<1x64xi32>
    %198 = arith.cmpi slt, %188, %197 : vector<1x64xi32>
    %199 = arith.andi %196, %198 : vector<1x64xi1>
    %200 = arith.ori %194, %199 : vector<1x64xi1>
    %201 = arith.extui %200 : vector<1x64xi1> to vector<1x64xi32>
    %202 = arith.sitofp %201 : vector<1x64xi32> to vector<1x64xf32>
    %cst_61 = arith.constant 1.000000e+00 : f32
    %203 = vector.broadcast %cst_61 : f32 to vector<1x64xf32>
    %204 = arith.subf %203, %202 : vector<1x64xf32>
    %205 = vector.broadcast %204 : vector<1x64xf32> to vector<8x64xf32>
    %206 = arith.mulf %189, %205 : vector<8x64xf32>
    %207 = vector.extract_strided_slice %187 {offsets = [0, 1], sizes = [8, 64], strides = [1, 1]} : vector<8x66xf32> to vector<8x64xf32>
    %208 = vector.extract_strided_slice %187 {offsets = [0, 2], sizes = [8, 64], strides = [1, 1]} : vector<8x66xf32> to vector<8x64xf32>
    %c31_i32 = arith.constant 31 : i32
    %209 = vector.broadcast %c31_i32 : i32 to vector<1x64xi32>
    %210 = arith.cmpi sge, %188, %209 : vector<1x64xi32>
    %c32_i32_62 = arith.constant 32 : i32
    %211 = vector.broadcast %c32_i32_62 : i32 to vector<1x64xi32>
    %212 = arith.cmpi slt, %188, %211 : vector<1x64xi32>
    %213 = arith.andi %210, %212 : vector<1x64xi1>
    %c63_i32 = arith.constant 63 : i32
    %214 = vector.broadcast %c63_i32 : i32 to vector<1x64xi32>
    %215 = arith.cmpi sge, %188, %214 : vector<1x64xi32>
    %c64_i32 = arith.constant 64 : i32
    %216 = vector.broadcast %c64_i32 : i32 to vector<1x64xi32>
    %217 = arith.cmpi slt, %188, %216 : vector<1x64xi32>
    %218 = arith.andi %215, %217 : vector<1x64xi1>
    %219 = arith.ori %213, %218 : vector<1x64xi1>
    %220 = arith.extui %219 : vector<1x64xi1> to vector<1x64xi32>
    %221 = arith.sitofp %220 : vector<1x64xi32> to vector<1x64xf32>
    %cst_63 = arith.constant 1.000000e+00 : f32
    %222 = vector.broadcast %cst_63 : f32 to vector<1x64xf32>
    %223 = arith.subf %222, %221 : vector<1x64xf32>
    %224 = vector.broadcast %223 : vector<1x64xf32> to vector<8x64xf32>
    %225 = arith.mulf %208, %224 : vector<8x64xf32>
    %226 = tpu.concatenate %206, %207, %225 in 0 : vector<8x64xf32>, vector<8x64xf32>, vector<8x64xf32> -> vector<24x64xf32>
    %227 = arith.truncf %226 : vector<24x64xf32> to vector<24x64xbf16>
    %cst_64 = arith.constant dense<0.000000e+00> : vector<16x64xf32>
    %228 = tpu.matmul %180, %227, %cst_64 {dimension_numbers = #tpu.dot_dimension_numbers<[1], [0], [0], [1], [0, 0, 1, 1], [], []>} : vector<16x24xbf16>, vector<24x64xbf16>, vector<16x64xf32> -> vector<16x64xf32>
    %cst_65 = arith.constant dense<0.000000e+00> : vector<64xf32>
    %229 = vector.multi_reduction <add>, %228, %cst_65 [0] : vector<16x64xf32> to vector<64xf32>
    %230 = vector.shape_cast %229 : vector<64xf32> to vector<1x64xf32>
    %cst_66 = arith.constant 1.600000e+01 : f32
    %231 = vector.broadcast %cst_66 : f32 to vector<1x64xf32>
    %232 = arith.divf %230, %231 : vector<1x64xf32>
    %233 = vector.broadcast %232 : vector<1x64xf32> to vector<16x64xf32>
    %234 = arith.subf %228, %233 : vector<16x64xf32>
    %235 = arith.mulf %234, %234 : vector<16x64xf32>
    %cst_67 = arith.constant dense<0.000000e+00> : vector<64xf32>
    %236 = vector.multi_reduction <add>, %235, %cst_67 [0] : vector<16x64xf32> to vector<64xf32>
    %237 = vector.shape_cast %236 : vector<64xf32> to vector<1x64xf32>
    %cst_68 = arith.constant 1.600000e+01 : f32
    %238 = vector.broadcast %cst_68 : f32 to vector<1x64xf32>
    %239 = arith.divf %237, %238 : vector<1x64xf32>
    %cst_69 = arith.constant 9.99999974E-6 : f32
    %240 = vector.broadcast %cst_69 : f32 to vector<1x64xf32>
    %241 = arith.addf %239, %240 : vector<1x64xf32>
    %242 = math.rsqrt %241 : vector<1x64xf32>
    %243 = vector.broadcast %242 : vector<1x64xf32> to vector<16x64xf32>
    %244 = arith.mulf %234, %243 : vector<16x64xf32>
    %245 = vector.broadcast %182 : vector<16x1xf32> to vector<16x64xf32>
    %246 = arith.mulf %244, %245 : vector<16x64xf32>
    %247 = vector.broadcast %183 : vector<16x1xf32> to vector<16x64xf32>
    %248 = arith.addf %246, %247 : vector<16x64xf32>
    %cst_70 = arith.constant 5.000000e-01 : f32
    %249 = vector.broadcast %cst_70 : f32 to vector<16x64xf32>
    %250 = arith.mulf %249, %248 : vector<16x64xf32>
    %251 = arith.mulf %248, %248 : vector<16x64xf32>
    %252 = arith.mulf %251, %248 : vector<16x64xf32>
    %cst_71 = arith.constant 4.471500e-02 : f32
    %253 = vector.broadcast %cst_71 : f32 to vector<16x64xf32>
    %254 = arith.mulf %253, %252 : vector<16x64xf32>
    %255 = arith.addf %248, %254 : vector<16x64xf32>
    %cst_72 = arith.constant 0.797884583 : f32
    %256 = vector.broadcast %cst_72 : f32 to vector<16x64xf32>
    %257 = arith.mulf %256, %255 : vector<16x64xf32>
    %258 = math.tanh %257 : vector<16x64xf32>
    %cst_73 = arith.constant 1.000000e+00 : f32
    %259 = vector.broadcast %cst_73 : f32 to vector<16x64xf32>
    %260 = arith.addf %259, %258 : vector<16x64xf32>
    %261 = arith.mulf %250, %260 : vector<16x64xf32>
    %cst_74 = arith.constant 0.000000e+00 : f32
    %262 = vector.broadcast %cst_74 : f32 to vector<16x3xf32>
    %263 = tpu.concatenate %261, %262 in 1 : vector<16x64xf32>, vector<16x3xf32> -> vector<16x67xf32>
    %264 = vector.extract_strided_slice %263 {offsets = [0, 0], sizes = [16, 64], strides = [1, 1]} : vector<16x67xf32> to vector<16x64xf32>
    %265 = vector.extract_strided_slice %263 {offsets = [0, 1], sizes = [16, 64], strides = [1, 1]} : vector<16x67xf32> to vector<16x64xf32>
    %266 = arith.maximumf %264, %265 : vector<16x64xf32>
    %267 = vector.extract_strided_slice %263 {offsets = [0, 2], sizes = [16, 64], strides = [1, 1]} : vector<16x67xf32> to vector<16x64xf32>
    %268 = arith.maximumf %266, %267 : vector<16x64xf32>
    %269 = vector.extract_strided_slice %263 {offsets = [0, 3], sizes = [16, 64], strides = [1, 1]} : vector<16x67xf32> to vector<16x64xf32>
    %270 = arith.maximumf %268, %269 : vector<16x64xf32>
    %271 = arith.truncf %270 : vector<16x64xf32> to vector<16x64xbf16>
    %cst_75 = arith.constant dense<0.000000e+00> : vector<16x16xf32>
    %272 = tpu.matmul %271, %184, %cst_75 {dimension_numbers = #tpu.dot_dimension_numbers<[1], [0], [0], [1], [0, 0, 1, 1], [], []>} : vector<16x64xbf16>, vector<64x16xbf16>, vector<16x16xf32> -> vector<16x16xf32>
    %c0_76 = arith.constant 0 : index
    %c0_77 = arith.constant 0 : index
    %273 = vector.load %arg10[%c0_76, %c0_77] : memref<16x48xbf16, #tpu.memory_space<vmem>>, vector<16x48xbf16>
    %c0_78 = arith.constant 0 : index
    %c0_79 = arith.constant 0 : index
    %274 = vector.load %arg11[%c0_78, %c0_79] : memref<16x2xf32, #tpu.memory_space<vmem>>, vector<16x2xf32>
    %275 = vector.extract_strided_slice %274 {offsets = [0, 0], sizes = [16, 1], strides = [1, 1]} : vector<16x2xf32> to vector<16x1xf32>
    %276 = vector.extract_strided_slice %274 {offsets = [0, 1], sizes = [16, 1], strides = [1, 1]} : vector<16x2xf32> to vector<16x1xf32>
    %c0_80 = arith.constant 0 : index
    %c0_81 = arith.constant 0 : index
    %277 = vector.load %arg12[%c0_80, %c0_81] : memref<16x4xbf16, #tpu.memory_space<vmem>>, vector<16x4xbf16>
    %cst_82 = arith.constant 0.000000e+00 : f32
    %278 = vector.broadcast %cst_82 : f32 to vector<16x1xf32>
    %cst_83 = arith.constant 0.000000e+00 : f32
    %279 = vector.broadcast %cst_83 : f32 to vector<16x1xf32>
    %280 = tpu.concatenate %278, %272, %279 in 1 : vector<16x1xf32>, vector<16x16xf32>, vector<16x1xf32> -> vector<16x18xf32>
    %281 = tpu.iota {dimensions = array<i32: 1>} : vector<1x16xi32>
    %282 = vector.extract_strided_slice %280 {offsets = [0, 0], sizes = [16, 16], strides = [1, 1]} : vector<16x18xf32> to vector<16x16xf32>
    %c0_i32_84 = arith.constant 0 : i32
    %283 = vector.broadcast %c0_i32_84 : i32 to vector<1x16xi32>
    %284 = arith.cmpi sge, %281, %283 : vector<1x16xi32>
    %c1_i32_85 = arith.constant 1 : i32
    %285 = vector.broadcast %c1_i32_85 : i32 to vector<1x16xi32>
    %286 = arith.cmpi slt, %281, %285 : vector<1x16xi32>
    %287 = arith.andi %284, %286 : vector<1x16xi1>
    %c8_i32 = arith.constant 8 : i32
    %288 = vector.broadcast %c8_i32 : i32 to vector<1x16xi32>
    %289 = arith.cmpi sge, %281, %288 : vector<1x16xi32>
    %c9_i32 = arith.constant 9 : i32
    %290 = vector.broadcast %c9_i32 : i32 to vector<1x16xi32>
    %291 = arith.cmpi slt, %281, %290 : vector<1x16xi32>
    %292 = arith.andi %289, %291 : vector<1x16xi1>
    %293 = arith.ori %287, %292 : vector<1x16xi1>
    %294 = arith.extui %293 : vector<1x16xi1> to vector<1x16xi32>
    %295 = arith.sitofp %294 : vector<1x16xi32> to vector<1x16xf32>
    %cst_86 = arith.constant 1.000000e+00 : f32
    %296 = vector.broadcast %cst_86 : f32 to vector<1x16xf32>
    %297 = arith.subf %296, %295 : vector<1x16xf32>
    %298 = vector.broadcast %297 : vector<1x16xf32> to vector<16x16xf32>
    %299 = arith.mulf %282, %298 : vector<16x16xf32>
    %300 = vector.extract_strided_slice %280 {offsets = [0, 1], sizes = [16, 16], strides = [1, 1]} : vector<16x18xf32> to vector<16x16xf32>
    %301 = vector.extract_strided_slice %280 {offsets = [0, 2], sizes = [16, 16], strides = [1, 1]} : vector<16x18xf32> to vector<16x16xf32>
    %c7_i32 = arith.constant 7 : i32
    %302 = vector.broadcast %c7_i32 : i32 to vector<1x16xi32>
    %303 = arith.cmpi sge, %281, %302 : vector<1x16xi32>
    %c8_i32_87 = arith.constant 8 : i32
    %304 = vector.broadcast %c8_i32_87 : i32 to vector<1x16xi32>
    %305 = arith.cmpi slt, %281, %304 : vector<1x16xi32>
    %306 = arith.andi %303, %305 : vector<1x16xi1>
    %c15_i32 = arith.constant 15 : i32
    %307 = vector.broadcast %c15_i32 : i32 to vector<1x16xi32>
    %308 = arith.cmpi sge, %281, %307 : vector<1x16xi32>
    %c16_i32 = arith.constant 16 : i32
    %309 = vector.broadcast %c16_i32 : i32 to vector<1x16xi32>
    %310 = arith.cmpi slt, %281, %309 : vector<1x16xi32>
    %311 = arith.andi %308, %310 : vector<1x16xi1>
    %312 = arith.ori %306, %311 : vector<1x16xi1>
    %313 = arith.extui %312 : vector<1x16xi1> to vector<1x16xi32>
    %314 = arith.sitofp %313 : vector<1x16xi32> to vector<1x16xf32>
    %cst_88 = arith.constant 1.000000e+00 : f32
    %315 = vector.broadcast %cst_88 : f32 to vector<1x16xf32>
    %316 = arith.subf %315, %314 : vector<1x16xf32>
    %317 = vector.broadcast %316 : vector<1x16xf32> to vector<16x16xf32>
    %318 = arith.mulf %301, %317 : vector<16x16xf32>
    %319 = tpu.concatenate %299, %300, %318 in 0 : vector<16x16xf32>, vector<16x16xf32>, vector<16x16xf32> -> vector<48x16xf32>
    %320 = arith.truncf %319 : vector<48x16xf32> to vector<48x16xbf16>
    %cst_89 = arith.constant dense<0.000000e+00> : vector<16x16xf32>
    %321 = tpu.matmul %273, %320, %cst_89 {dimension_numbers = #tpu.dot_dimension_numbers<[1], [0], [0], [1], [0, 0, 1, 1], [], []>} : vector<16x48xbf16>, vector<48x16xbf16>, vector<16x16xf32> -> vector<16x16xf32>
    %cst_90 = arith.constant dense<0.000000e+00> : vector<16xf32>
    %322 = vector.multi_reduction <add>, %321, %cst_90 [0] : vector<16x16xf32> to vector<16xf32>
    %323 = vector.shape_cast %322 : vector<16xf32> to vector<1x16xf32>
    %cst_91 = arith.constant 1.600000e+01 : f32
    %324 = vector.broadcast %cst_91 : f32 to vector<1x16xf32>
    %325 = arith.divf %323, %324 : vector<1x16xf32>
    %326 = vector.broadcast %325 : vector<1x16xf32> to vector<16x16xf32>
    %327 = arith.subf %321, %326 : vector<16x16xf32>
    %328 = arith.mulf %327, %327 : vector<16x16xf32>
    %cst_92 = arith.constant dense<0.000000e+00> : vector<16xf32>
    %329 = vector.multi_reduction <add>, %328, %cst_92 [0] : vector<16x16xf32> to vector<16xf32>
    %330 = vector.shape_cast %329 : vector<16xf32> to vector<1x16xf32>
    %cst_93 = arith.constant 1.600000e+01 : f32
    %331 = vector.broadcast %cst_93 : f32 to vector<1x16xf32>
    %332 = arith.divf %330, %331 : vector<1x16xf32>
    %cst_94 = arith.constant 9.99999974E-6 : f32
    %333 = vector.broadcast %cst_94 : f32 to vector<1x16xf32>
    %334 = arith.addf %332, %333 : vector<1x16xf32>
    %335 = math.rsqrt %334 : vector<1x16xf32>
    %336 = vector.broadcast %335 : vector<1x16xf32> to vector<16x16xf32>
    %337 = arith.mulf %327, %336 : vector<16x16xf32>
    %338 = vector.broadcast %275 : vector<16x1xf32> to vector<16x16xf32>
    %339 = arith.mulf %337, %338 : vector<16x16xf32>
    %340 = vector.broadcast %276 : vector<16x1xf32> to vector<16x16xf32>
    %341 = arith.addf %339, %340 : vector<16x16xf32>
    %cst_95 = arith.constant 5.000000e-01 : f32
    %342 = vector.broadcast %cst_95 : f32 to vector<16x16xf32>
    %343 = arith.mulf %342, %341 : vector<16x16xf32>
    %344 = arith.mulf %341, %341 : vector<16x16xf32>
    %345 = arith.mulf %344, %341 : vector<16x16xf32>
    %cst_96 = arith.constant 4.471500e-02 : f32
    %346 = vector.broadcast %cst_96 : f32 to vector<16x16xf32>
    %347 = arith.mulf %346, %345 : vector<16x16xf32>
    %348 = arith.addf %341, %347 : vector<16x16xf32>
    %cst_97 = arith.constant 0.797884583 : f32
    %349 = vector.broadcast %cst_97 : f32 to vector<16x16xf32>
    %350 = arith.mulf %349, %348 : vector<16x16xf32>
    %351 = math.tanh %350 : vector<16x16xf32>
    %cst_98 = arith.constant 1.000000e+00 : f32
    %352 = vector.broadcast %cst_98 : f32 to vector<16x16xf32>
    %353 = arith.addf %352, %351 : vector<16x16xf32>
    %354 = arith.mulf %343, %353 : vector<16x16xf32>
    %cst_99 = arith.constant 0.000000e+00 : f32
    %355 = vector.broadcast %cst_99 : f32 to vector<16x3xf32>
    %356 = tpu.concatenate %354, %355 in 1 : vector<16x16xf32>, vector<16x3xf32> -> vector<16x19xf32>
    %357 = vector.extract_strided_slice %356 {offsets = [0, 0], sizes = [16, 16], strides = [1, 1]} : vector<16x19xf32> to vector<16x16xf32>
    %358 = vector.extract_strided_slice %356 {offsets = [0, 1], sizes = [16, 16], strides = [1, 1]} : vector<16x19xf32> to vector<16x16xf32>
    %359 = arith.maximumf %357, %358 : vector<16x16xf32>
    %360 = vector.extract_strided_slice %356 {offsets = [0, 2], sizes = [16, 16], strides = [1, 1]} : vector<16x19xf32> to vector<16x16xf32>
    %361 = arith.maximumf %359, %360 : vector<16x16xf32>
    %362 = vector.extract_strided_slice %356 {offsets = [0, 3], sizes = [16, 16], strides = [1, 1]} : vector<16x19xf32> to vector<16x16xf32>
    %363 = arith.maximumf %361, %362 : vector<16x16xf32>
    %364 = arith.truncf %363 : vector<16x16xf32> to vector<16x16xbf16>
    %cst_100 = arith.constant dense<0.000000e+00> : vector<16x4xf32>
    %365 = tpu.matmul %364, %277, %cst_100 {dimension_numbers = #tpu.dot_dimension_numbers<[1], [0], [0], [1], [0, 0, 1, 1], [], []>} : vector<16x16xbf16>, vector<16x4xbf16>, vector<16x4xf32> -> vector<16x4xf32>
    %c0_101 = arith.constant 0 : index
    %c0_102 = arith.constant 0 : index
    %366 = vector.load %arg13[%c0_101, %c0_102] : memref<16x48xbf16, #tpu.memory_space<vmem>>, vector<16x48xbf16>
    %c0_103 = arith.constant 0 : index
    %c0_104 = arith.constant 0 : index
    %367 = vector.load %arg14[%c0_103, %c0_104] : memref<16x2xf32, #tpu.memory_space<vmem>>, vector<16x2xf32>
    %368 = vector.extract_strided_slice %367 {offsets = [0, 0], sizes = [16, 1], strides = [1, 1]} : vector<16x2xf32> to vector<16x1xf32>
    %369 = vector.extract_strided_slice %367 {offsets = [0, 1], sizes = [16, 1], strides = [1, 1]} : vector<16x2xf32> to vector<16x1xf32>
    %c0_105 = arith.constant 0 : index
    %c0_106 = arith.constant 0 : index
    %370 = vector.load %arg15[%c0_105, %c0_106] : memref<4x8xbf16, #tpu.memory_space<vmem>>, vector<4x8xbf16>
    %cst_107 = arith.constant 0.000000e+00 : f32
    %371 = vector.broadcast %cst_107 : f32 to vector<16x1xf32>
    %cst_108 = arith.constant 0.000000e+00 : f32
    %372 = vector.broadcast %cst_108 : f32 to vector<16x1xf32>
    %373 = tpu.concatenate %371, %365, %372 in 1 : vector<16x1xf32>, vector<16x4xf32>, vector<16x1xf32> -> vector<16x6xf32>
    %374 = tpu.iota {dimensions = array<i32: 1>} : vector<1x4xi32>
    %375 = vector.extract_strided_slice %373 {offsets = [0, 0], sizes = [16, 4], strides = [1, 1]} : vector<16x6xf32> to vector<16x4xf32>
    %c0_i32_109 = arith.constant 0 : i32
    %376 = vector.broadcast %c0_i32_109 : i32 to vector<1x4xi32>
    %377 = arith.cmpi sge, %374, %376 : vector<1x4xi32>
    %c1_i32_110 = arith.constant 1 : i32
    %378 = vector.broadcast %c1_i32_110 : i32 to vector<1x4xi32>
    %379 = arith.cmpi slt, %374, %378 : vector<1x4xi32>
    %380 = arith.andi %377, %379 : vector<1x4xi1>
    %c2_i32 = arith.constant 2 : i32
    %381 = vector.broadcast %c2_i32 : i32 to vector<1x4xi32>
    %382 = arith.cmpi sge, %374, %381 : vector<1x4xi32>
    %c3_i32 = arith.constant 3 : i32
    %383 = vector.broadcast %c3_i32 : i32 to vector<1x4xi32>
    %384 = arith.cmpi slt, %374, %383 : vector<1x4xi32>
    %385 = arith.andi %382, %384 : vector<1x4xi1>
    %386 = arith.ori %380, %385 : vector<1x4xi1>
    %387 = arith.extui %386 : vector<1x4xi1> to vector<1x4xi32>
    %388 = arith.sitofp %387 : vector<1x4xi32> to vector<1x4xf32>
    %cst_111 = arith.constant 1.000000e+00 : f32
    %389 = vector.broadcast %cst_111 : f32 to vector<1x4xf32>
    %390 = arith.subf %389, %388 : vector<1x4xf32>
    %391 = vector.broadcast %390 : vector<1x4xf32> to vector<16x4xf32>
    %392 = arith.mulf %375, %391 : vector<16x4xf32>
    %393 = vector.extract_strided_slice %373 {offsets = [0, 1], sizes = [16, 4], strides = [1, 1]} : vector<16x6xf32> to vector<16x4xf32>
    %394 = vector.extract_strided_slice %373 {offsets = [0, 2], sizes = [16, 4], strides = [1, 1]} : vector<16x6xf32> to vector<16x4xf32>
    %c1_i32_112 = arith.constant 1 : i32
    %395 = vector.broadcast %c1_i32_112 : i32 to vector<1x4xi32>
    %396 = arith.cmpi sge, %374, %395 : vector<1x4xi32>
    %c2_i32_113 = arith.constant 2 : i32
    %397 = vector.broadcast %c2_i32_113 : i32 to vector<1x4xi32>
    %398 = arith.cmpi slt, %374, %397 : vector<1x4xi32>
    %399 = arith.andi %396, %398 : vector<1x4xi1>
    %c3_i32_114 = arith.constant 3 : i32
    %400 = vector.broadcast %c3_i32_114 : i32 to vector<1x4xi32>
    %401 = arith.cmpi sge, %374, %400 : vector<1x4xi32>
    %c4_i32 = arith.constant 4 : i32
    %402 = vector.broadcast %c4_i32 : i32 to vector<1x4xi32>
    %403 = arith.cmpi slt, %374, %402 : vector<1x4xi32>
    %404 = arith.andi %401, %403 : vector<1x4xi1>
    %405 = arith.ori %399, %404 : vector<1x4xi1>
    %406 = arith.extui %405 : vector<1x4xi1> to vector<1x4xi32>
    %407 = arith.sitofp %406 : vector<1x4xi32> to vector<1x4xf32>
    %cst_115 = arith.constant 1.000000e+00 : f32
    %408 = vector.broadcast %cst_115 : f32 to vector<1x4xf32>
    %409 = arith.subf %408, %407 : vector<1x4xf32>
    %410 = vector.broadcast %409 : vector<1x4xf32> to vector<16x4xf32>
    %411 = arith.mulf %394, %410 : vector<16x4xf32>
    %412 = tpu.concatenate %392, %393, %411 in 0 : vector<16x4xf32>, vector<16x4xf32>, vector<16x4xf32> -> vector<48x4xf32>
    %413 = arith.truncf %412 : vector<48x4xf32> to vector<48x4xbf16>
    %cst_116 = arith.constant dense<0.000000e+00> : vector<16x4xf32>
    %414 = tpu.matmul %366, %413, %cst_116 {dimension_numbers = #tpu.dot_dimension_numbers<[1], [0], [0], [1], [0, 0, 1, 1], [], []>} : vector<16x48xbf16>, vector<48x4xbf16>, vector<16x4xf32> -> vector<16x4xf32>
    %cst_117 = arith.constant dense<0.000000e+00> : vector<4xf32>
    %415 = vector.multi_reduction <add>, %414, %cst_117 [0] : vector<16x4xf32> to vector<4xf32>
    %416 = vector.shape_cast %415 : vector<4xf32> to vector<1x4xf32>
    %cst_118 = arith.constant 1.600000e+01 : f32
    %417 = vector.broadcast %cst_118 : f32 to vector<1x4xf32>
    %418 = arith.divf %416, %417 : vector<1x4xf32>
    %419 = vector.broadcast %418 : vector<1x4xf32> to vector<16x4xf32>
    %420 = arith.subf %414, %419 : vector<16x4xf32>
    %421 = arith.mulf %420, %420 : vector<16x4xf32>
    %cst_119 = arith.constant dense<0.000000e+00> : vector<4xf32>
    %422 = vector.multi_reduction <add>, %421, %cst_119 [0] : vector<16x4xf32> to vector<4xf32>
    %423 = vector.shape_cast %422 : vector<4xf32> to vector<1x4xf32>
    %cst_120 = arith.constant 1.600000e+01 : f32
    %424 = vector.broadcast %cst_120 : f32 to vector<1x4xf32>
    %425 = arith.divf %423, %424 : vector<1x4xf32>
    %cst_121 = arith.constant 9.99999974E-6 : f32
    %426 = vector.broadcast %cst_121 : f32 to vector<1x4xf32>
    %427 = arith.addf %425, %426 : vector<1x4xf32>
    %428 = math.rsqrt %427 : vector<1x4xf32>
    %429 = vector.broadcast %428 : vector<1x4xf32> to vector<16x4xf32>
    %430 = arith.mulf %420, %429 : vector<16x4xf32>
    %431 = vector.broadcast %368 : vector<16x1xf32> to vector<16x4xf32>
    %432 = arith.mulf %430, %431 : vector<16x4xf32>
    %433 = vector.broadcast %369 : vector<16x1xf32> to vector<16x4xf32>
    %434 = arith.addf %432, %433 : vector<16x4xf32>
    %cst_122 = arith.constant 5.000000e-01 : f32
    %435 = vector.broadcast %cst_122 : f32 to vector<16x4xf32>
    %436 = arith.mulf %435, %434 : vector<16x4xf32>
    %437 = arith.mulf %434, %434 : vector<16x4xf32>
    %438 = arith.mulf %437, %434 : vector<16x4xf32>
    %cst_123 = arith.constant 4.471500e-02 : f32
    %439 = vector.broadcast %cst_123 : f32 to vector<16x4xf32>
    %440 = arith.mulf %439, %438 : vector<16x4xf32>
    %441 = arith.addf %434, %440 : vector<16x4xf32>
    %cst_124 = arith.constant 0.797884583 : f32
    %442 = vector.broadcast %cst_124 : f32 to vector<16x4xf32>
    %443 = arith.mulf %442, %441 : vector<16x4xf32>
    %444 = math.tanh %443 : vector<16x4xf32>
    %cst_125 = arith.constant 1.000000e+00 : f32
    %445 = vector.broadcast %cst_125 : f32 to vector<16x4xf32>
    %446 = arith.addf %445, %444 : vector<16x4xf32>
    %447 = arith.mulf %436, %446 : vector<16x4xf32>
    %448 = arith.truncf %447 : vector<16x4xf32> to vector<16x4xbf16>
    %449 = vector.extract_strided_slice %448 {offsets = [0, 0], sizes = [16, 1], strides = [1, 1]} : vector<16x4xbf16> to vector<16x1xbf16>
    %450 = vector.extract_strided_slice %448 {offsets = [0, 1], sizes = [16, 1], strides = [1, 1]} : vector<16x4xbf16> to vector<16x1xbf16>
    %451 = vector.extract_strided_slice %448 {offsets = [0, 0], sizes = [16, 2], strides = [1, 1]} : vector<16x4xbf16> to vector<16x2xbf16>
    %452 = tpu.concatenate %449, %451, %450 in 1 : vector<16x1xbf16>, vector<16x2xbf16>, vector<16x1xbf16> -> vector<16x4xbf16>
    %cst_126 = arith.constant dense<0.000000e+00> : vector<16x8xf32>
    %453 = tpu.matmul %452, %370, %cst_126 {dimension_numbers = #tpu.dot_dimension_numbers<[1], [0], [0], [1], [0, 0, 1, 1], [], []>} : vector<16x4xbf16>, vector<4x8xbf16>, vector<16x8xf32> -> vector<16x8xf32>
    %454 = vector.extract_strided_slice %448 {offsets = [0, 2], sizes = [16, 1], strides = [1, 1]} : vector<16x4xbf16> to vector<16x1xbf16>
    %455 = vector.extract_strided_slice %448 {offsets = [0, 3], sizes = [16, 1], strides = [1, 1]} : vector<16x4xbf16> to vector<16x1xbf16>
    %456 = vector.extract_strided_slice %448 {offsets = [0, 2], sizes = [16, 2], strides = [1, 1]} : vector<16x4xbf16> to vector<16x2xbf16>
    %457 = tpu.concatenate %454, %456, %455 in 1 : vector<16x1xbf16>, vector<16x2xbf16>, vector<16x1xbf16> -> vector<16x4xbf16>
    %cst_127 = arith.constant dense<0.000000e+00> : vector<16x8xf32>
    %458 = tpu.matmul %457, %370, %cst_127 {dimension_numbers = #tpu.dot_dimension_numbers<[1], [0], [0], [1], [0, 0, 1, 1], [], []>} : vector<16x4xbf16>, vector<4x8xbf16>, vector<16x8xf32> -> vector<16x8xf32>
    %459 = tpu.concatenate %453, %458 in 1 : vector<16x8xf32>, vector<16x8xf32> -> vector<16x16xf32>
    %460 = tpu.concatenate %459, %272 in 0 : vector<16x16xf32>, vector<16x16xf32> -> vector<32x16xf32>
    %c0_128 = arith.constant 0 : index
    %c0_129 = arith.constant 0 : index
    %461 = vector.load %arg16[%c0_128, %c0_129] : memref<8x96xbf16, #tpu.memory_space<vmem>>, vector<8x96xbf16>
    %c0_130 = arith.constant 0 : index
    %c0_131 = arith.constant 0 : index
    %462 = vector.load %arg17[%c0_130, %c0_131] : memref<8x2xf32, #tpu.memory_space<vmem>>, vector<8x2xf32>
    %463 = vector.extract_strided_slice %462 {offsets = [0, 0], sizes = [8, 1], strides = [1, 1]} : vector<8x2xf32> to vector<8x1xf32>
    %464 = vector.extract_strided_slice %462 {offsets = [0, 1], sizes = [8, 1], strides = [1, 1]} : vector<8x2xf32> to vector<8x1xf32>
    %c0_132 = arith.constant 0 : index
    %c0_133 = arith.constant 0 : index
    %465 = vector.load %arg18[%c0_132, %c0_133] : memref<10x32xbf16, #tpu.memory_space<vmem>>, vector<10x32xbf16>
    %cst_134 = arith.constant 0.000000e+00 : f32
    %466 = vector.broadcast %cst_134 : f32 to vector<32x1xf32>
    %cst_135 = arith.constant 0.000000e+00 : f32
    %467 = vector.broadcast %cst_135 : f32 to vector<32x1xf32>
    %468 = tpu.concatenate %466, %460, %467 in 1 : vector<32x1xf32>, vector<32x16xf32>, vector<32x1xf32> -> vector<32x18xf32>
    %469 = tpu.iota {dimensions = array<i32: 1>} : vector<1x16xi32>
    %470 = vector.extract_strided_slice %468 {offsets = [0, 0], sizes = [32, 16], strides = [1, 1]} : vector<32x18xf32> to vector<32x16xf32>
    %c0_i32_136 = arith.constant 0 : i32
    %471 = vector.broadcast %c0_i32_136 : i32 to vector<1x16xi32>
    %472 = arith.cmpi sge, %469, %471 : vector<1x16xi32>
    %c1_i32_137 = arith.constant 1 : i32
    %473 = vector.broadcast %c1_i32_137 : i32 to vector<1x16xi32>
    %474 = arith.cmpi slt, %469, %473 : vector<1x16xi32>
    %475 = arith.andi %472, %474 : vector<1x16xi1>
    %c8_i32_138 = arith.constant 8 : i32
    %476 = vector.broadcast %c8_i32_138 : i32 to vector<1x16xi32>
    %477 = arith.cmpi sge, %469, %476 : vector<1x16xi32>
    %c9_i32_139 = arith.constant 9 : i32
    %478 = vector.broadcast %c9_i32_139 : i32 to vector<1x16xi32>
    %479 = arith.cmpi slt, %469, %478 : vector<1x16xi32>
    %480 = arith.andi %477, %479 : vector<1x16xi1>
    %481 = arith.ori %475, %480 : vector<1x16xi1>
    %482 = arith.extui %481 : vector<1x16xi1> to vector<1x16xi32>
    %483 = arith.sitofp %482 : vector<1x16xi32> to vector<1x16xf32>
    %cst_140 = arith.constant 1.000000e+00 : f32
    %484 = vector.broadcast %cst_140 : f32 to vector<1x16xf32>
    %485 = arith.subf %484, %483 : vector<1x16xf32>
    %486 = vector.broadcast %485 : vector<1x16xf32> to vector<32x16xf32>
    %487 = arith.mulf %470, %486 : vector<32x16xf32>
    %488 = vector.extract_strided_slice %468 {offsets = [0, 1], sizes = [32, 16], strides = [1, 1]} : vector<32x18xf32> to vector<32x16xf32>
    %489 = vector.extract_strided_slice %468 {offsets = [0, 2], sizes = [32, 16], strides = [1, 1]} : vector<32x18xf32> to vector<32x16xf32>
    %c7_i32_141 = arith.constant 7 : i32
    %490 = vector.broadcast %c7_i32_141 : i32 to vector<1x16xi32>
    %491 = arith.cmpi sge, %469, %490 : vector<1x16xi32>
    %c8_i32_142 = arith.constant 8 : i32
    %492 = vector.broadcast %c8_i32_142 : i32 to vector<1x16xi32>
    %493 = arith.cmpi slt, %469, %492 : vector<1x16xi32>
    %494 = arith.andi %491, %493 : vector<1x16xi1>
    %c15_i32_143 = arith.constant 15 : i32
    %495 = vector.broadcast %c15_i32_143 : i32 to vector<1x16xi32>
    %496 = arith.cmpi sge, %469, %495 : vector<1x16xi32>
    %c16_i32_144 = arith.constant 16 : i32
    %497 = vector.broadcast %c16_i32_144 : i32 to vector<1x16xi32>
    %498 = arith.cmpi slt, %469, %497 : vector<1x16xi32>
    %499 = arith.andi %496, %498 : vector<1x16xi1>
    %500 = arith.ori %494, %499 : vector<1x16xi1>
    %501 = arith.extui %500 : vector<1x16xi1> to vector<1x16xi32>
    %502 = arith.sitofp %501 : vector<1x16xi32> to vector<1x16xf32>
    %cst_145 = arith.constant 1.000000e+00 : f32
    %503 = vector.broadcast %cst_145 : f32 to vector<1x16xf32>
    %504 = arith.subf %503, %502 : vector<1x16xf32>
    %505 = vector.broadcast %504 : vector<1x16xf32> to vector<32x16xf32>
    %506 = arith.mulf %489, %505 : vector<32x16xf32>
    %507 = tpu.concatenate %487, %488, %506 in 0 : vector<32x16xf32>, vector<32x16xf32>, vector<32x16xf32> -> vector<96x16xf32>
    %508 = arith.truncf %507 : vector<96x16xf32> to vector<96x16xbf16>
    %cst_146 = arith.constant dense<0.000000e+00> : vector<8x16xf32>
    %509 = tpu.matmul %461, %508, %cst_146 {dimension_numbers = #tpu.dot_dimension_numbers<[1], [0], [0], [1], [0, 0, 1, 1], [], []>} : vector<8x96xbf16>, vector<96x16xbf16>, vector<8x16xf32> -> vector<8x16xf32>
    %cst_147 = arith.constant dense<0.000000e+00> : vector<16xf32>
    %510 = vector.multi_reduction <add>, %509, %cst_147 [0] : vector<8x16xf32> to vector<16xf32>
    %511 = vector.shape_cast %510 : vector<16xf32> to vector<1x16xf32>
    %cst_148 = arith.constant 8.000000e+00 : f32
    %512 = vector.broadcast %cst_148 : f32 to vector<1x16xf32>
    %513 = arith.divf %511, %512 : vector<1x16xf32>
    %514 = vector.broadcast %513 : vector<1x16xf32> to vector<8x16xf32>
    %515 = arith.subf %509, %514 : vector<8x16xf32>
    %516 = arith.mulf %515, %515 : vector<8x16xf32>
    %cst_149 = arith.constant dense<0.000000e+00> : vector<16xf32>
    %517 = vector.multi_reduction <add>, %516, %cst_149 [0] : vector<8x16xf32> to vector<16xf32>
    %518 = vector.shape_cast %517 : vector<16xf32> to vector<1x16xf32>
    %cst_150 = arith.constant 8.000000e+00 : f32
    %519 = vector.broadcast %cst_150 : f32 to vector<1x16xf32>
    %520 = arith.divf %518, %519 : vector<1x16xf32>
    %cst_151 = arith.constant 9.99999974E-6 : f32
    %521 = vector.broadcast %cst_151 : f32 to vector<1x16xf32>
    %522 = arith.addf %520, %521 : vector<1x16xf32>
    %523 = math.rsqrt %522 : vector<1x16xf32>
    %524 = vector.broadcast %523 : vector<1x16xf32> to vector<8x16xf32>
    %525 = arith.mulf %515, %524 : vector<8x16xf32>
    %526 = vector.broadcast %463 : vector<8x1xf32> to vector<8x16xf32>
    %527 = arith.mulf %525, %526 : vector<8x16xf32>
    %528 = vector.broadcast %464 : vector<8x1xf32> to vector<8x16xf32>
    %529 = arith.addf %527, %528 : vector<8x16xf32>
    %cst_152 = arith.constant 5.000000e-01 : f32
    %530 = vector.broadcast %cst_152 : f32 to vector<8x16xf32>
    %531 = arith.mulf %530, %529 : vector<8x16xf32>
    %532 = arith.mulf %529, %529 : vector<8x16xf32>
    %533 = arith.mulf %532, %529 : vector<8x16xf32>
    %cst_153 = arith.constant 4.471500e-02 : f32
    %534 = vector.broadcast %cst_153 : f32 to vector<8x16xf32>
    %535 = arith.mulf %534, %533 : vector<8x16xf32>
    %536 = arith.addf %529, %535 : vector<8x16xf32>
    %cst_154 = arith.constant 0.797884583 : f32
    %537 = vector.broadcast %cst_154 : f32 to vector<8x16xf32>
    %538 = arith.mulf %537, %536 : vector<8x16xf32>
    %539 = math.tanh %538 : vector<8x16xf32>
    %cst_155 = arith.constant 1.000000e+00 : f32
    %540 = vector.broadcast %cst_155 : f32 to vector<8x16xf32>
    %541 = arith.addf %540, %539 : vector<8x16xf32>
    %542 = arith.mulf %531, %541 : vector<8x16xf32>
    %543 = arith.truncf %542 : vector<8x16xf32> to vector<8x16xbf16>
    %544 = vector.extract_strided_slice %543 {offsets = [0, 0], sizes = [8, 1], strides = [1, 1]} : vector<8x16xbf16> to vector<8x1xbf16>
    %545 = vector.extract_strided_slice %543 {offsets = [0, 7], sizes = [8, 1], strides = [1, 1]} : vector<8x16xbf16> to vector<8x1xbf16>
    %546 = vector.extract_strided_slice %543 {offsets = [0, 0], sizes = [8, 8], strides = [1, 1]} : vector<8x16xbf16> to vector<8x8xbf16>
    %547 = tpu.concatenate %544, %546, %545 in 1 : vector<8x1xbf16>, vector<8x8xbf16>, vector<8x1xbf16> -> vector<8x10xbf16>
    %cst_156 = arith.constant dense<0.000000e+00> : vector<8x32xf32>
    %548 = tpu.matmul %547, %465, %cst_156 {dimension_numbers = #tpu.dot_dimension_numbers<[1], [0], [0], [1], [0, 0, 1, 1], [], []>} : vector<8x10xbf16>, vector<10x32xbf16>, vector<8x32xf32> -> vector<8x32xf32>
    %549 = vector.extract_strided_slice %543 {offsets = [0, 8], sizes = [8, 1], strides = [1, 1]} : vector<8x16xbf16> to vector<8x1xbf16>
    %550 = vector.extract_strided_slice %543 {offsets = [0, 15], sizes = [8, 1], strides = [1, 1]} : vector<8x16xbf16> to vector<8x1xbf16>
    %551 = vector.extract_strided_slice %543 {offsets = [0, 8], sizes = [8, 8], strides = [1, 1]} : vector<8x16xbf16> to vector<8x8xbf16>
    %552 = tpu.concatenate %549, %551, %550 in 1 : vector<8x1xbf16>, vector<8x8xbf16>, vector<8x1xbf16> -> vector<8x10xbf16>
    %cst_157 = arith.constant dense<0.000000e+00> : vector<8x32xf32>
    %553 = tpu.matmul %552, %465, %cst_157 {dimension_numbers = #tpu.dot_dimension_numbers<[1], [0], [0], [1], [0, 0, 1, 1], [], []>} : vector<8x10xbf16>, vector<10x32xbf16>, vector<8x32xf32> -> vector<8x32xf32>
    %554 = tpu.concatenate %548, %553 in 1 : vector<8x32xf32>, vector<8x32xf32> -> vector<8x64xf32>
    %555 = tpu.concatenate %554, %179 in 0 : vector<8x64xf32>, vector<8x64xf32> -> vector<16x64xf32>
    %c0_158 = arith.constant 0 : index
    %c0_159 = arith.constant 0 : index
    %556 = vector.load %arg19[%c0_158, %c0_159] : memref<8x48xbf16, #tpu.memory_space<vmem>>, vector<8x48xbf16>
    %c0_160 = arith.constant 0 : index
    %c0_161 = arith.constant 0 : index
    %557 = vector.load %arg20[%c0_160, %c0_161] : memref<8x2xf32, #tpu.memory_space<vmem>>, vector<8x2xf32>
    %558 = vector.extract_strided_slice %557 {offsets = [0, 0], sizes = [8, 1], strides = [1, 1]} : vector<8x2xf32> to vector<8x1xf32>
    %559 = vector.extract_strided_slice %557 {offsets = [0, 1], sizes = [8, 1], strides = [1, 1]} : vector<8x2xf32> to vector<8x1xf32>
    %c0_162 = arith.constant 0 : index
    %c0_163 = arith.constant 0 : index
    %560 = vector.load %arg21[%c0_162, %c0_163] : memref<34x128xbf16, #tpu.memory_space<vmem>>, vector<34x128xbf16>
    %cst_164 = arith.constant 0.000000e+00 : f32
    %561 = vector.broadcast %cst_164 : f32 to vector<16x1xf32>
    %cst_165 = arith.constant 0.000000e+00 : f32
    %562 = vector.broadcast %cst_165 : f32 to vector<16x1xf32>
    %563 = tpu.concatenate %561, %555, %562 in 1 : vector<16x1xf32>, vector<16x64xf32>, vector<16x1xf32> -> vector<16x66xf32>
    %564 = tpu.iota {dimensions = array<i32: 1>} : vector<1x64xi32>
    %565 = vector.extract_strided_slice %563 {offsets = [0, 0], sizes = [16, 64], strides = [1, 1]} : vector<16x66xf32> to vector<16x64xf32>
    %c0_i32_166 = arith.constant 0 : i32
    %566 = vector.broadcast %c0_i32_166 : i32 to vector<1x64xi32>
    %567 = arith.cmpi sge, %564, %566 : vector<1x64xi32>
    %c1_i32_167 = arith.constant 1 : i32
    %568 = vector.broadcast %c1_i32_167 : i32 to vector<1x64xi32>
    %569 = arith.cmpi slt, %564, %568 : vector<1x64xi32>
    %570 = arith.andi %567, %569 : vector<1x64xi1>
    %c32_i32_168 = arith.constant 32 : i32
    %571 = vector.broadcast %c32_i32_168 : i32 to vector<1x64xi32>
    %572 = arith.cmpi sge, %564, %571 : vector<1x64xi32>
    %c33_i32_169 = arith.constant 33 : i32
    %573 = vector.broadcast %c33_i32_169 : i32 to vector<1x64xi32>
    %574 = arith.cmpi slt, %564, %573 : vector<1x64xi32>
    %575 = arith.andi %572, %574 : vector<1x64xi1>
    %576 = arith.ori %570, %575 : vector<1x64xi1>
    %577 = arith.extui %576 : vector<1x64xi1> to vector<1x64xi32>
    %578 = arith.sitofp %577 : vector<1x64xi32> to vector<1x64xf32>
    %cst_170 = arith.constant 1.000000e+00 : f32
    %579 = vector.broadcast %cst_170 : f32 to vector<1x64xf32>
    %580 = arith.subf %579, %578 : vector<1x64xf32>
    %581 = vector.broadcast %580 : vector<1x64xf32> to vector<16x64xf32>
    %582 = arith.mulf %565, %581 : vector<16x64xf32>
    %583 = vector.extract_strided_slice %563 {offsets = [0, 1], sizes = [16, 64], strides = [1, 1]} : vector<16x66xf32> to vector<16x64xf32>
    %584 = vector.extract_strided_slice %563 {offsets = [0, 2], sizes = [16, 64], strides = [1, 1]} : vector<16x66xf32> to vector<16x64xf32>
    %c31_i32_171 = arith.constant 31 : i32
    %585 = vector.broadcast %c31_i32_171 : i32 to vector<1x64xi32>
    %586 = arith.cmpi sge, %564, %585 : vector<1x64xi32>
    %c32_i32_172 = arith.constant 32 : i32
    %587 = vector.broadcast %c32_i32_172 : i32 to vector<1x64xi32>
    %588 = arith.cmpi slt, %564, %587 : vector<1x64xi32>
    %589 = arith.andi %586, %588 : vector<1x64xi1>
    %c63_i32_173 = arith.constant 63 : i32
    %590 = vector.broadcast %c63_i32_173 : i32 to vector<1x64xi32>
    %591 = arith.cmpi sge, %564, %590 : vector<1x64xi32>
    %c64_i32_174 = arith.constant 64 : i32
    %592 = vector.broadcast %c64_i32_174 : i32 to vector<1x64xi32>
    %593 = arith.cmpi slt, %564, %592 : vector<1x64xi32>
    %594 = arith.andi %591, %593 : vector<1x64xi1>
    %595 = arith.ori %589, %594 : vector<1x64xi1>
    %596 = arith.extui %595 : vector<1x64xi1> to vector<1x64xi32>
    %597 = arith.sitofp %596 : vector<1x64xi32> to vector<1x64xf32>
    %cst_175 = arith.constant 1.000000e+00 : f32
    %598 = vector.broadcast %cst_175 : f32 to vector<1x64xf32>
    %599 = arith.subf %598, %597 : vector<1x64xf32>
    %600 = vector.broadcast %599 : vector<1x64xf32> to vector<16x64xf32>
    %601 = arith.mulf %584, %600 : vector<16x64xf32>
    %602 = tpu.concatenate %582, %583, %601 in 0 : vector<16x64xf32>, vector<16x64xf32>, vector<16x64xf32> -> vector<48x64xf32>
    %603 = arith.truncf %602 : vector<48x64xf32> to vector<48x64xbf16>
    %cst_176 = arith.constant dense<0.000000e+00> : vector<8x64xf32>
    %604 = tpu.matmul %556, %603, %cst_176 {dimension_numbers = #tpu.dot_dimension_numbers<[1], [0], [0], [1], [0, 0, 1, 1], [], []>} : vector<8x48xbf16>, vector<48x64xbf16>, vector<8x64xf32> -> vector<8x64xf32>
    %cst_177 = arith.constant dense<0.000000e+00> : vector<64xf32>
    %605 = vector.multi_reduction <add>, %604, %cst_177 [0] : vector<8x64xf32> to vector<64xf32>
    %606 = vector.shape_cast %605 : vector<64xf32> to vector<1x64xf32>
    %cst_178 = arith.constant 8.000000e+00 : f32
    %607 = vector.broadcast %cst_178 : f32 to vector<1x64xf32>
    %608 = arith.divf %606, %607 : vector<1x64xf32>
    %609 = vector.broadcast %608 : vector<1x64xf32> to vector<8x64xf32>
    %610 = arith.subf %604, %609 : vector<8x64xf32>
    %611 = arith.mulf %610, %610 : vector<8x64xf32>
    %cst_179 = arith.constant dense<0.000000e+00> : vector<64xf32>
    %612 = vector.multi_reduction <add>, %611, %cst_179 [0] : vector<8x64xf32> to vector<64xf32>
    %613 = vector.shape_cast %612 : vector<64xf32> to vector<1x64xf32>
    %cst_180 = arith.constant 8.000000e+00 : f32
    %614 = vector.broadcast %cst_180 : f32 to vector<1x64xf32>
    %615 = arith.divf %613, %614 : vector<1x64xf32>
    %cst_181 = arith.constant 9.99999974E-6 : f32
    %616 = vector.broadcast %cst_181 : f32 to vector<1x64xf32>
    %617 = arith.addf %615, %616 : vector<1x64xf32>
    %618 = math.rsqrt %617 : vector<1x64xf32>
    %619 = vector.broadcast %618 : vector<1x64xf32> to vector<8x64xf32>
    %620 = arith.mulf %610, %619 : vector<8x64xf32>
    %621 = vector.broadcast %558 : vector<8x1xf32> to vector<8x64xf32>
    %622 = arith.mulf %620, %621 : vector<8x64xf32>
    %623 = vector.broadcast %559 : vector<8x1xf32> to vector<8x64xf32>
    %624 = arith.addf %622, %623 : vector<8x64xf32>
    %cst_182 = arith.constant 5.000000e-01 : f32
    %625 = vector.broadcast %cst_182 : f32 to vector<8x64xf32>
    %626 = arith.mulf %625, %624 : vector<8x64xf32>
    %627 = arith.mulf %624, %624 : vector<8x64xf32>
    %628 = arith.mulf %627, %624 : vector<8x64xf32>
    %cst_183 = arith.constant 4.471500e-02 : f32
    %629 = vector.broadcast %cst_183 : f32 to vector<8x64xf32>
    %630 = arith.mulf %629, %628 : vector<8x64xf32>
    %631 = arith.addf %624, %630 : vector<8x64xf32>
    %cst_184 = arith.constant 0.797884583 : f32
    %632 = vector.broadcast %cst_184 : f32 to vector<8x64xf32>
    %633 = arith.mulf %632, %631 : vector<8x64xf32>
    %634 = math.tanh %633 : vector<8x64xf32>
    %cst_185 = arith.constant 1.000000e+00 : f32
    %635 = vector.broadcast %cst_185 : f32 to vector<8x64xf32>
    %636 = arith.addf %635, %634 : vector<8x64xf32>
    %637 = arith.mulf %626, %636 : vector<8x64xf32>
    %638 = arith.truncf %637 : vector<8x64xf32> to vector<8x64xbf16>
    %639 = vector.extract_strided_slice %638 {offsets = [0, 0], sizes = [8, 1], strides = [1, 1]} : vector<8x64xbf16> to vector<8x1xbf16>
    %640 = vector.extract_strided_slice %638 {offsets = [0, 31], sizes = [8, 1], strides = [1, 1]} : vector<8x64xbf16> to vector<8x1xbf16>
    %641 = vector.extract_strided_slice %638 {offsets = [0, 0], sizes = [8, 32], strides = [1, 1]} : vector<8x64xbf16> to vector<8x32xbf16>
    %642 = tpu.concatenate %639, %641, %640 in 1 : vector<8x1xbf16>, vector<8x32xbf16>, vector<8x1xbf16> -> vector<8x34xbf16>
    %cst_186 = arith.constant dense<0.000000e+00> : vector<8x128xf32>
    %643 = tpu.matmul %642, %560, %cst_186 {dimension_numbers = #tpu.dot_dimension_numbers<[1], [0], [0], [1], [0, 0, 1, 1], [], []>} : vector<8x34xbf16>, vector<34x128xbf16>, vector<8x128xf32> -> vector<8x128xf32>
    %644 = vector.extract_strided_slice %638 {offsets = [0, 32], sizes = [8, 1], strides = [1, 1]} : vector<8x64xbf16> to vector<8x1xbf16>
    %645 = vector.extract_strided_slice %638 {offsets = [0, 63], sizes = [8, 1], strides = [1, 1]} : vector<8x64xbf16> to vector<8x1xbf16>
    %646 = vector.extract_strided_slice %638 {offsets = [0, 32], sizes = [8, 32], strides = [1, 1]} : vector<8x64xbf16> to vector<8x32xbf16>
    %647 = tpu.concatenate %644, %646, %645 in 1 : vector<8x1xbf16>, vector<8x32xbf16>, vector<8x1xbf16> -> vector<8x34xbf16>
    %cst_187 = arith.constant dense<0.000000e+00> : vector<8x128xf32>
    %648 = tpu.matmul %647, %560, %cst_187 {dimension_numbers = #tpu.dot_dimension_numbers<[1], [0], [0], [1], [0, 0, 1, 1], [], []>} : vector<8x34xbf16>, vector<34x128xbf16>, vector<8x128xf32> -> vector<8x128xf32>
    %649 = tpu.concatenate %643, %648 in 1 : vector<8x128xf32>, vector<8x128xf32> -> vector<8x256xf32>
    %650 = tpu.concatenate %649, %82 in 0 : vector<8x256xf32>, vector<8x256xf32> -> vector<16x256xf32>
    %c0_188 = arith.constant 0 : index
    %c0_189 = arith.constant 0 : index
    %651 = vector.load %arg22[%c0_188, %c0_189] : memref<8x16xbf16, #tpu.memory_space<vmem>>, vector<8x16xbf16>
    %c0_190 = arith.constant 0 : index
    %c0_191 = arith.constant 0 : index
    %652 = vector.load %arg23[%c0_190, %c0_191] : memref<8x1xf32, #tpu.memory_space<vmem>>, vector<8x1xf32>
    %653 = arith.truncf %650 : vector<16x256xf32> to vector<16x256xbf16>
    %cst_192 = arith.constant dense<0.000000e+00> : vector<8x256xf32>
    %654 = tpu.matmul %651, %653, %cst_192 {dimension_numbers = #tpu.dot_dimension_numbers<[1], [0], [0], [1], [0, 0, 1, 1], [], []>} : vector<8x16xbf16>, vector<16x256xbf16>, vector<8x256xf32> -> vector<8x256xf32>
    %655 = vector.broadcast %652 : vector<8x1xf32> to vector<8x256xf32>
    %656 = arith.addf %654, %655 : vector<8x256xf32>
    %c0_193 = arith.constant 0 : index
    %c0_194 = arith.constant 0 : index
    %c0_195 = arith.constant 0 : index
    %657 = vector.load %arg24[%c0_193, %c0_194, %c0_195] : memref<1x8x256xf32, #tpu.memory_space<vmem>>, vector<1x8x256xf32>
    %658 = vector.shape_cast %657 : vector<1x8x256xf32> to vector<8x256xf32>
    %659 = vector.shape_cast %656 : vector<8x256xf32> to vector<1x8x256xf32>
    tpu.vector_store %arg24[%c0_193, %c0_194, %c0_195], %659 {strides = array<i32>} : memref<1x8x256xf32, #tpu.memory_space<vmem>>, vector<1x8x256xf32>,
    return
  }
  func.func @transform_0(%arg0: i32) -> (i32, i32, i32) {
    %c0_i32 = arith.constant 0 : i32
    %c0_i32_0 = arith.constant 0 : i32
    %c0_i32_1 = arith.constant 0 : i32
    return %arg0, %c0_i32, %c0_i32_0 : i32, i32, i32
  }
  func.func @transform_1(%arg0: i32) -> (i32, i32) {
    %c0_i32 = arith.constant 0 : i32
    %c0_i32_0 = arith.constant 0 : i32
    %c0_i32_1 = arith.constant 0 : i32
    return %c0_i32, %c0_i32_0 : i32, i32
  }
  func.func @transform_2(%arg0: i32) -> (i32, i32) {
    %c0_i32 = arith.constant 0 : i32
    %c0_i32_0 = arith.constant 0 : i32
    %c0_i32_1 = arith.constant 0 : i32
    return %c0_i32, %c0_i32_0 : i32, i32
  }
  func.func @transform_3(%arg0: i32) -> (i32, i32) {
    %c0_i32 = arith.constant 0 : i32
    %c0_i32_0 = arith.constant 0 : i32
    %c0_i32_1 = arith.constant 0 : i32
    return %c0_i32, %c0_i32_0 : i32, i32
  }
  func.func @transform_4(%arg0: i32) -> (i32, i32) {
    %c0_i32 = arith.constant 0 : i32
    %c0_i32_0 = arith.constant 0 : i32
    %c0_i32_1 = arith.constant 0 : i32
    return %c0_i32, %c0_i32_0 : i32, i32
  }
  func.func @transform_5(%arg0: i32) -> (i32, i32) {
    %c0_i32 = arith.constant 0 : i32
    %c0_i32_0 = arith.constant 0 : i32
    %c0_i32_1 = arith.constant 0 : i32
    return %c0_i32, %c0_i32_0 : i32, i32
  }
  func.func @transform_6(%arg0: i32) -> (i32, i32) {
    %c0_i32 = arith.constant 0 : i32
    %c0_i32_0 = arith.constant 0 : i32
    %c0_i32_1 = arith.constant 0 : i32
    return %c0_i32, %c0_i32_0 : i32, i32
  }
  func.func @transform_7(%arg0: i32) -> (i32, i32) {
    %c0_i32 = arith.constant 0 : i32
    %c0_i32_0 = arith.constant 0 : i32
    %c0_i32_1 = arith.constant 0 : i32
    return %c0_i32, %c0_i32_0 : i32, i32
  }
  func.func @transform_8(%arg0: i32) -> (i32, i32) {
    %c0_i32 = arith.constant 0 : i32
    %c0_i32_0 = arith.constant 0 : i32
    %c0_i32_1 = arith.constant 0 : i32
    return %c0_i32, %c0_i32_0 : i32, i32
  }
  func.func @transform_9(%arg0: i32) -> (i32, i32) {
    %c0_i32 = arith.constant 0 : i32
    %c0_i32_0 = arith.constant 0 : i32
    %c0_i32_1 = arith.constant 0 : i32
    return %c0_i32, %c0_i32_0 : i32, i32
  }
  func.func @transform_10(%arg0: i32) -> (i32, i32) {
    %c0_i32 = arith.constant 0 : i32
    %c0_i32_0 = arith.constant 0 : i32
    %c0_i32_1 = arith.constant 0 : i32
    return %c0_i32, %c0_i32_0 : i32, i32
  }
  func.func @transform_11(%arg0: i32) -> (i32, i32) {
    %c0_i32 = arith.constant 0 : i32
    %c0_i32_0 = arith.constant 0 : i32
    %c0_i32_1 = arith.constant 0 : i32
    return %c0_i32, %c0_i32_0 : i32, i32
  }
  func.func @transform_12(%arg0: i32) -> (i32, i32) {
    %c0_i32 = arith.constant 0 : i32
    %c0_i32_0 = arith.constant 0 : i32
    %c0_i32_1 = arith.constant 0 : i32
    return %c0_i32, %c0_i32_0 : i32, i32
  }
  func.func @transform_13(%arg0: i32) -> (i32, i32) {
    %c0_i32 = arith.constant 0 : i32
    %c0_i32_0 = arith.constant 0 : i32
    %c0_i32_1 = arith.constant 0 : i32
    return %c0_i32, %c0_i32_0 : i32, i32
  }
  func.func @transform_14(%arg0: i32) -> (i32, i32) {
    %c0_i32 = arith.constant 0 : i32
    %c0_i32_0 = arith.constant 0 : i32
    %c0_i32_1 = arith.constant 0 : i32
    return %c0_i32, %c0_i32_0 : i32, i32
  }
  func.func @transform_15(%arg0: i32) -> (i32, i32) {
    %c0_i32 = arith.constant 0 : i32
    %c0_i32_0 = arith.constant 0 : i32
    %c0_i32_1 = arith.constant 0 : i32
    return %c0_i32, %c0_i32_0 : i32, i32
  }
  func.func @transform_16(%arg0: i32) -> (i32, i32) {
    %c0_i32 = arith.constant 0 : i32
    %c0_i32_0 = arith.constant 0 : i32
    %c0_i32_1 = arith.constant 0 : i32
    return %c0_i32, %c0_i32_0 : i32, i32
  }
  func.func @transform_17(%arg0: i32) -> (i32, i32) {
    %c0_i32 = arith.constant 0 : i32
    %c0_i32_0 = arith.constant 0 : i32
    %c0_i32_1 = arith.constant 0 : i32
    return %c0_i32, %c0_i32_0 : i32, i32
  }
  func.func @transform_18(%arg0: i32) -> (i32, i32) {
    %c0_i32 = arith.constant 0 : i32
    %c0_i32_0 = arith.constant 0 : i32
    %c0_i32_1 = arith.constant 0 : i32
    return %c0_i32, %c0_i32_0 : i32, i32
  }
  func.func @transform_19(%arg0: i32) -> (i32, i32) {
    %c0_i32 = arith.constant 0 : i32
    %c0_i32_0 = arith.constant 0 : i32
    %c0_i32_1 = arith.constant 0 : i32
    return %c0_i32, %c0_i32_0 : i32, i32
  }
  func.func @transform_20(%arg0: i32) -> (i32, i32) {
    %c0_i32 = arith.constant 0 : i32
    %c0_i32_0 = arith.constant 0 : i32
    %c0_i32_1 = arith.constant 0 : i32
    return %c0_i32, %c0_i32_0 : i32, i32
  }
  func.func @transform_21(%arg0: i32) -> (i32, i32) {
    %c0_i32 = arith.constant 0 : i32
    %c0_i32_0 = arith.constant 0 : i32
    %c0_i32_1 = arith.constant 0 : i32
    return %c0_i32, %c0_i32_0 : i32, i32
  }
  func.func @transform_22(%arg0: i32) -> (i32, i32) {
    %c0_i32 = arith.constant 0 : i32
    %c0_i32_0 = arith.constant 0 : i32
    %c0_i32_1 = arith.constant 0 : i32
    return %c0_i32, %c0_i32_0 : i32, i32
  }
  func.func @transform_23(%arg0: i32) -> (i32, i32, i32) {
    %c0_i32 = arith.constant 0 : i32
    %c0_i32_0 = arith.constant 0 : i32
    %c0_i32_1 = arith.constant 0 : i32
    return %arg0, %c0_i32, %c0_i32_0 : i32, i32, i32
  }
}

</mosaic_0001>

<llo_original>
// kernel: hvatnet_forward.1
$region0: #{hvatnet_forward.1}
  #allocation0 [shape = 'u32[]', space=smem, size = 0x4, offset = 0x4, fixed_abs, tag = 'smem constant byte address 0x4 - core index']
  #allocation1 [shape = 'u32[144,128]{1,0:T(1,128)}', space=vmem, size = 0x12000, scoped, tag = 'internal scratch']
  %s0 = inlined_call_operand.hbm [shape: f32[2,8,256], index: 0, kind: input, shape index: {}]
  %s1 = inlined_call_operand.hbm [shape: bf16[8,24], index: 1, kind: input, shape index: {}]
  %s2 = inlined_call_operand.vmem [shape: f32[8,2], index: 2, kind: input, shape index: {}, may-alias: {2,4,16,19}]
  %s3 = inlined_call_operand.hbm [shape: bf16[8,24], index: 3, kind: input, shape index: {}]
  %s4 = inlined_call_operand.vmem [shape: f32[8,2], index: 4, kind: input, shape index: {}, may-alias: {2,4,16,19}]
  %s5 = inlined_call_operand.hbm [shape: bf16[128,32], index: 5, kind: input, shape index: {}]
  %s6 = inlined_call_operand.vmem [shape: bf16[16,24], index: 6, kind: input, shape index: {}]
  %s7 = inlined_call_operand.vmem [shape: f32[16,2], index: 7, kind: input, shape index: {}, may-alias: {7,10,13}]
  %s8 = inlined_call_operand.vmem [shape: bf16[64,16], index: 8, kind: input, shape index: {}]
  %s9 = inlined_call_operand.hbm [shape: bf16[16,48], index: 9, kind: input, shape index: {}]
  %s10 = inlined_call_operand.vmem [shape: f32[16,2], index: 10, kind: input, shape index: {}, may-alias: {7,10,13}]
  %s11 = inlined_call_operand.vmem [shape: bf16[16,4], index: 11, kind: input, shape index: {}]
  %s12 = inlined_call_operand.hbm [shape: bf16[16,48], index: 12, kind: input, shape index: {}]
  %s13 = inlined_call_operand.vmem [shape: f32[16,2], index: 13, kind: input, shape index: {}, may-alias: {7,10,13}]
  %s14 = inlined_call_operand.hbm [shape: bf16[4,8], index: 14, kind: input, shape index: {}]
  %s15 = inlined_call_operand.hbm [shape: bf16[8,96], index: 15, kind: input, shape index: {}]
  %s16 = inlined_call_operand.vmem [shape: f32[8,2], index: 16, kind: input, shape index: {}, may-alias: {2,4,16,19}]
  %s17 = inlined_call_operand.hbm [shape: bf16[10,32], index: 17, kind: input, shape index: {}]
  %s18 = inlined_call_operand.hbm [shape: bf16[8,48], index: 18, kind: input, shape index: {}]
  %s19 = inlined_call_operand.vmem [shape: f32[8,2], index: 19, kind: input, shape index: {}, may-alias: {2,4,16,19}]
  %s20 = inlined_call_operand.hbm [shape: bf16[34,128], index: 20, kind: input, shape index: {}]
  %s21 = inlined_call_operand.hbm [shape: bf16[8,16], index: 21, kind: input, shape index: {}]
  %s22 = inlined_call_operand.hbm [shape: f32[8,1], index: 22, kind: input, shape index: {}]
  %s23 = inlined_call_operand.vmem [shape: f32[2,8,256], index: 23, kind: output, shape index: {}]
  %s24 = sld [smem:[#allocation0]]
  $region177: #{hvatnet_forward.1} parent=0
    _
  %s26 = ssub.s32 1, %s24
  %s27 = scalar_select 0, %s26, %s24
  $region1: #{hvatnet_forward.1} parent=0
    #allocation2 [shape = 'u8[16384]{0}', space=vmem, size = 0x4000, scoped, tag = 'input window, operand 0']
    #allocation3 [shape = 's32[2]{0}', space=sflag, size = 0x8, scoped, tag = 'scoped memory for hvatnet_forward.1']
    #allocation4 [shape = 'u8[2048]{0}', space=vmem, size = 0x800, scoped, tag = 'input window, operand 1, single buffered']
    #allocation5 [shape = 's32[1]{0}', space=sflag, size = 0x4, scoped, tag = 'scoped memory for hvatnet_forward.1']
    #allocation6 [shape = 'u8[2048]{0}', space=vmem, size = 0x800, scoped, tag = 'input window, operand 3, single buffered']
    #allocation7 [shape = 'u8[32768]{0}', space=vmem, size = 0x8000, scoped, tag = 'input window, operand 5, single buffered']
    #allocation8 [shape = 's32[1]{0}', space=sflag, size = 0x4, scoped, tag = 'scoped memory for hvatnet_forward.1']
    #allocation9 [shape = 'u8[4096]{0}', space=vmem, size = 0x1000, scoped, tag = 'input window, operand 9, single buffered']
    #allocation10 [shape = 'u8[4096]{0}', space=vmem, size = 0x1000, scoped, tag = 'input window, operand 12, single buffered']
    #allocation11 [shape = 's32[1]{0}', space=sflag, size = 0x4, scoped, tag = 'scoped memory for hvatnet_forward.1']
    #allocation12 [shape = 'u8[1024]{0}', space=vmem, size = 0x400, scoped, tag = 'input window, operand 14, single buffered']
    #allocation13 [shape = 'u8[2048]{0}', space=vmem, size = 0x800, scoped, tag = 'input window, operand 15, single buffered']
    #allocation14 [shape = 's32[1]{0}', space=sflag, size = 0x4, scoped, tag = 'scoped memory for hvatnet_forward.1']
    #allocation15 [shape = 'u8[4096]{0}', space=vmem, size = 0x1000, scoped, tag = 'input window, operand 17, single buffered']
    #allocation16 [shape = 'u8[2048]{0}', space=vmem, size = 0x800, scoped, tag = 'input window, operand 18, single buffered']
    #allocation17 [shape = 's32[1]{0}', space=sflag, size = 0x4, scoped, tag = 'scoped memory for hvatnet_forward.1']
    #allocation18 [shape = 'u8[10240]{0}', space=vmem, size = 0x2800, scoped, tag = 'input window, operand 20, single buffered']
    #allocation19 [shape = 'u8[2048]{0}', space=vmem, size = 0x800, scoped, tag = 'input window, operand 21, single buffered']
    #allocation20 [shape = 's32[1]{0}', space=sflag, size = 0x4, scoped, tag = 'scoped memory for hvatnet_forward.1']
    #allocation21 [shape = 'u8[4096]{0}', space=vmem, size = 0x1000, scoped, tag = 'input window, operand 22, single buffered']
    %28 = vsyncpa [#allocation3], 0
    %s29 = scalar_lea.sflag [#allocation3], 1
    %30 = vsyncpa %s29, 0
    %31 = vsyncpa [#allocation5], 0
    %32 = vsyncpa [#allocation8], 0
    %33 = vsyncpa [#allocation11], 0
    %34 = vsyncpa [#allocation14], 0
    %35 = vsyncpa [#allocation17], 0
    %36 = vsyncpa [#allocation20], 0
    loop: start=0, step=1, limit=4
    $region2: #{hvatnet_forward.1} parent=1 // loop_pre_header
      _
    $region3: #{hvatnet_forward.1} parent=1 // loop_header
      %s38 = sphi 0, %s42
      %p39 = scmp.ge.s32.totalorder %s38, 4
      %s48 = sphi 0, %s50
      %s51 = sphi 0, %s48
      %s52 = sphi 0, %s51
      %s68 = sphi 0, %s52
      %s72 = sphi 0, %s72
      %s74 = sphi 0, %s72
      %s75 = sphi 0, %s74
      %s89 = sphi 0, %s75
      %s93 = sphi 0, %s93
      %s95 = sphi 0, %s93
      %s96 = sphi 0, %s95
      %s110 = sphi 0, %s96
      %s114 = sphi 0, %s114
      %s116 = sphi 0, %s114
      %s117 = sphi 0, %s116
      %s131 = sphi 0, %s117
      %s135 = sphi 0, %s135
      %s137 = sphi 0, %s135
      %s138 = sphi 0, %s137
      %s152 = sphi 0, %s138
      %s156 = sphi 0, %s156
      %s158 = sphi 0, %s156
      %s159 = sphi 0, %s158
      %s173 = sphi 0, %s159
      %s177 = sphi 0, %s177
      %s179 = sphi 0, %s177
      %s180 = sphi 0, %s179
      %s194 = sphi 0, %s180
      %s198 = sphi 0, %s198
      %s200 = sphi 0, %s198
      %s201 = sphi 0, %s200
      %s215 = sphi 0, %s201
      %s219 = sphi 0, %s219
      %s221 = sphi 0, %s219
      %s222 = sphi 0, %s221
      %s236 = sphi 0, %s222
      %s240 = sphi 0, %s240
      %s242 = sphi 0, %s240
      %s243 = sphi 0, %s242
      %s257 = sphi 0, %s243
      %s261 = sphi 0, %s261
      %s263 = sphi 0, %s261
      %s264 = sphi 0, %s263
      %s278 = sphi 0, %s264
      %s282 = sphi 0, %s282
      %s284 = sphi 0, %s282
      %s285 = sphi 0, %s284
      %s299 = sphi 0, %s285
      %s303 = sphi 0, %s303
      %s305 = sphi 0, %s303
      %s306 = sphi 0, %s305
      %s320 = sphi 0, %s306
      %s324 = sphi 0, %s324
      %s326 = sphi 0, %s324
      %s327 = sphi 0, %s326
      %s341 = sphi 0, %s327
      %s345 = sphi 0, %s345
      %s347 = sphi 0, %s345
      %s348 = sphi 0, %s347
      %s362 = sphi 0, %s348
      %s366 = sphi 0, %s366
      %s368 = sphi 0, %s366
      %s369 = sphi 0, %s368
      %s383 = sphi 0, %s369
      %s387 = sphi 0, %s387
      %s389 = sphi 0, %s387
      %s390 = sphi 0, %s389
      %s404 = sphi 0, %s390
      %s408 = sphi 0, %s408
      %s410 = sphi 0, %s408
      %s411 = sphi 0, %s410
      %s425 = sphi 0, %s411
      %s429 = sphi 0, %s429
      %s431 = sphi 0, %s429
      %s432 = sphi 0, %s431
      %s446 = sphi 0, %s432
      %s450 = sphi 0, %s450
      %s452 = sphi 0, %s450
      %s453 = sphi 0, %s452
      %s467 = sphi 0, %s453
      %s471 = sphi 0, %s471
      %s473 = sphi 0, %s471
      %s474 = sphi 0, %s473
      %s488 = sphi 0, %s474
      %s492 = sphi 0, %s492
      %s494 = sphi 0, %s492
      %s495 = sphi 0, %s494
      %s509 = sphi 0, %s495
      %s513 = sphi 0, %s513
      %s515 = sphi 0, %s513
      %s516 = sphi 0, %s515
      %s530 = sphi 0, %s516
      %s536 = sphi 0, %s538
      %s539 = sphi 0, %s536
      %s540 = sphi 0, %s539
      %s556 = sphi 0, %s540
    $region4: #{hvatnet_forward.1} parent=1 // loop_header_branch
      %41 = sbr.rel (%p39) target = $region8
    $region5: #{hvatnet_forward.1} parent=1 // loop_body
      %s43 = ssub.s32 %s38, 1
      %s44 = ssub.s32 %s38, 2
      %s45 = sadd.s32 %s38, 1
      %s46 = ssub.s32 %s38, %s45
      %p47 = scmp.eq.s32.totalorder %s46, 0
      %s49 = sadd.s32 %s48, 1
      %s50 = scalar_select %p47, %s48, %s49
      %p53 = pneg %p47
      %p54 = scmp.eq.s32.totalorder %s38, 1
      %p55 = por %p53, %p54
      %p56 = scmp.ne.s32.totalorder %s48, %s51
      %p57 = scmp.eq.s32.totalorder %s38, 0
      %p58 = por %p56, %p57
      %p59 = scmp.ne.s32.totalorder %s48, %s51
      %p60 = scmp.eq.s32.totalorder %s43, 1
      %p61 = por %p59, %p60
      %p62 = scmp.ne.s32.totalorder %s51, %s52
      %p63 = scmp.eq.s32.totalorder %s43, 0
      %p64 = por %p62, %p63
      %p65 = scmp.ne.s32.totalorder %s51, %s52
      %p66 = scmp.eq.s32.totalorder %s44, 1
      %p67 = por %p65, %p66
      %p69 = scmp.ne.s32.totalorder %s52, %s68
      %p70 = scmp.eq.s32.totalorder %s44, 0
      %p71 = por %p69, %p70
      %s73 = sadd.s32 %s72, 1
      %p76 = scmp.eq.s32.totalorder %s38, 1
      %p77 = scmp.ne.s32.totalorder %s72, %s74
      %p78 = scmp.eq.s32.totalorder %s38, 0
      %p79 = por %p77, %p78
      %p80 = scmp.ne.s32.totalorder %s72, %s74
      %p81 = scmp.eq.s32.totalorder %s43, 1
      %p82 = por %p80, %p81
      %p83 = scmp.ne.s32.totalorder %s74, %s75
      %p84 = scmp.eq.s32.totalorder %s43, 0
      %p85 = por %p83, %p84
      %p86 = scmp.ne.s32.totalorder %s74, %s75
      %p87 = scmp.eq.s32.totalorder %s44, 1
      %p88 = por %p86, %p87
      %p90 = scmp.ne.s32.totalorder %s75, %s89
      %p91 = scmp.eq.s32.totalorder %s44, 0
      %p92 = por %p90, %p91
      %s94 = sadd.s32 %s93, 1
      %p97 = scmp.eq.s32.totalorder %s38, 1
      %p98 = scmp.ne.s32.totalorder %s93, %s95
      %p99 = scmp.eq.s32.totalorder %s38, 0
      %p100 = por %p98, %p99
      %p101 = scmp.ne.s32.totalorder %s93, %s95
      %p102 = scmp.eq.s32.totalorder %s43, 1
      %p103 = por %p101, %p102
      %p104 = scmp.ne.s32.totalorder %s95, %s96
      %p105 = scmp.eq.s32.totalorder %s43, 0
      %p106 = por %p104, %p105
      %p107 = scmp.ne.s32.totalorder %s95, %s96
      %p108 = scmp.eq.s32.totalorder %s44, 1
      %p109 = por %p107, %p108
      %p111 = scmp.ne.s32.totalorder %s96, %s110
      %p112 = scmp.eq.s32.totalorder %s44, 0
      %p113 = por %p111, %p112
      %s115 = sadd.s32 %s114, 1
      %p118 = scmp.eq.s32.totalorder %s38, 1
      %p119 = scmp.ne.s32.totalorder %s114, %s116
      %p120 = scmp.eq.s32.totalorder %s38, 0
      %p121 = por %p119, %p120
      %p122 = scmp.ne.s32.totalorder %s114, %s116
      %p123 = scmp.eq.s32.totalorder %s43, 1
      %p124 = por %p122, %p123
      %p125 = scmp.ne.s32.totalorder %s116, %s117
      %p126 = scmp.eq.s32.totalorder %s43, 0
      %p127 = por %p125, %p126
      %p128 = scmp.ne.s32.totalorder %s116, %s117
      %p129 = scmp.eq.s32.totalorder %s44, 1
      %p130 = por %p128, %p129
      %p132 = scmp.ne.s32.totalorder %s117, %s131
      %p133 = scmp.eq.s32.totalorder %s44, 0
      %p134 = por %p132, %p133
      %s136 = sadd.s32 %s135, 1
      %p139 = scmp.eq.s32.totalorder %s38, 1
      %p140 = scmp.ne.s32.totalorder %s135, %s137
      %p141 = scmp.eq.s32.totalorder %s38, 0
      %p142 = por %p140, %p141
      %p143 = scmp.ne.s32.totalorder %s135, %s137
      %p144 = scmp.eq.s32.totalorder %s43, 1
      %p145 = por %p143, %p144
      %p146 = scmp.ne.s32.totalorder %s137, %s138
      %p147 = scmp.eq.s32.totalorder %s43, 0
      %p148 = por %p146, %p147
      %p149 = scmp.ne.s32.totalorder %s137, %s138
      %p150 = scmp.eq.s32.totalorder %s44, 1
      %p151 = por %p149, %p150
      %p153 = scmp.ne.s32.totalorder %s138, %s152
      %p154 = scmp.eq.s32.totalorder %s44, 0
      %p155 = por %p153, %p154
      %s157 = sadd.s32 %s156, 1
      %p160 = scmp.eq.s32.totalorder %s38, 1
      %p161 = scmp.ne.s32.totalorder %s156, %s158
      %p162 = scmp.eq.s32.totalorder %s38, 0
      %p163 = por %p161, %p162
      %p164 = scmp.ne.s32.totalorder %s156, %s158
      %p165 = scmp.eq.s32.totalorder %s43, 1
      %p166 = por %p164, %p165
      %p167 = scmp.ne.s32.totalorder %s158, %s159
      %p168 = scmp.eq.s32.totalorder %s43, 0
      %p169 = por %p167, %p168
      %p170 = scmp.ne.s32.totalorder %s158, %s159
      %p171 = scmp.eq.s32.totalorder %s44, 1
      %p172 = por %p170, %p171
      %p174 = scmp.ne.s32.totalorder %s159, %s173
      %p175 = scmp.eq.s32.totalorder %s44, 0
      %p176 = por %p174, %p175
      %s178 = sadd.s32 %s177, 1
      %p181 = scmp.eq.s32.totalorder %s38, 1
      %p182 = scmp.ne.s32.totalorder %s177, %s179
      %p183 = scmp.eq.s32.totalorder %s38, 0
      %p184 = por %p182, %p183
      %p185 = scmp.ne.s32.totalorder %s177, %s179
      %p186 = scmp.eq.s32.totalorder %s43, 1
      %p187 = por %p185, %p186
      %p188 = scmp.ne.s32.totalorder %s179, %s180
      %p189 = scmp.eq.s32.totalorder %s43, 0
      %p190 = por %p188, %p189
      %p191 = scmp.ne.s32.totalorder %s179, %s180
      %p192 = scmp.eq.s32.totalorder %s44, 1
      %p193 = por %p191, %p192
      %p195 = scmp.ne.s32.totalorder %s180, %s194
      %p196 = scmp.eq.s32.totalorder %s44, 0
      %p197 = por %p195, %p196
      %s199 = sadd.s32 %s198, 1
      %p202 = scmp.eq.s32.totalorder %s38, 1
      %p203 = scmp.ne.s32.totalorder %s198, %s200
      %p204 = scmp.eq.s32.totalorder %s38, 0
      %p205 = por %p203, %p204
      %p206 = scmp.ne.s32.totalorder %s198, %s200
      %p207 = scmp.eq.s32.totalorder %s43, 1
      %p208 = por %p206, %p207
      %p209 = scmp.ne.s32.totalorder %s200, %s201
      %p210 = scmp.eq.s32.totalorder %s43, 0
      %p211 = por %p209, %p210
      %p212 = scmp.ne.s32.totalorder %s200, %s201
      %p213 = scmp.eq.s32.totalorder %s44, 1
      %p214 = por %p212, %p213
      %p216 = scmp.ne.s32.totalorder %s201, %s215
      %p217 = scmp.eq.s32.totalorder %s44, 0
      %p218 = por %p216, %p217
      %s220 = sadd.s32 %s219, 1
      %p223 = scmp.eq.s32.totalorder %s38, 1
      %p224 = scmp.ne.s32.totalorder %s219, %s221
      %p225 = scmp.eq.s32.totalorder %s38, 0
      %p226 = por %p224, %p225
      %p227 = scmp.ne.s32.totalorder %s219, %s221
      %p228 = scmp.eq.s32.totalorder %s43, 1
      %p229 = por %p227, %p228
      %p230 = scmp.ne.s32.totalorder %s221, %s222
      %p231 = scmp.eq.s32.totalorder %s43, 0
      %p232 = por %p230, %p231
      %p233 = scmp.ne.s32.totalorder %s221, %s222
      %p234 = scmp.eq.s32.totalorder %s44, 1
      %p235 = por %p233, %p234
      %p237 = scmp.ne.s32.totalorder %s222, %s236
      %p238 = scmp.eq.s32.totalorder %s44, 0
      %p239 = por %p237, %p238
      %s241 = sadd.s32 %s240, 1
      %p244 = scmp.eq.s32.totalorder %s38, 1
      %p245 = scmp.ne.s32.totalorder %s240, %s242
      %p246 = scmp.eq.s32.totalorder %s38, 0
      %p247 = por %p245, %p246
      %p248 = scmp.ne.s32.totalorder %s240, %s242
      %p249 = scmp.eq.s32.totalorder %s43, 1
      %p250 = por %p248, %p249
      %p251 = scmp.ne.s32.totalorder %s242, %s243
      %p252 = scmp.eq.s32.totalorder %s43, 0
      %p253 = por %p251, %p252
      %p254 = scmp.ne.s32.totalorder %s242, %s243
      %p255 = scmp.eq.s32.totalorder %s44, 1
      %p256 = por %p254, %p255
      %p258 = scmp.ne.s32.totalorder %s243, %s257
      %p259 = scmp.eq.s32.totalorder %s44, 0
      %p260 = por %p258, %p259
      %s262 = sadd.s32 %s261, 1
      %p265 = scmp.eq.s32.totalorder %s38, 1
      %p266 = scmp.ne.s32.totalorder %s261, %s263
      %p267 = scmp.eq.s32.totalorder %s38, 0
      %p268 = por %p266, %p267
      %p269 = scmp.ne.s32.totalorder %s261, %s263
      %p270 = scmp.eq.s32.totalorder %s43, 1
      %p271 = por %p269, %p270
      %p272 = scmp.ne.s32.totalorder %s263, %s264
      %p273 = scmp.eq.s32.totalorder %s43, 0
      %p274 = por %p272, %p273
      %p275 = scmp.ne.s32.totalorder %s263, %s264
      %p276 = scmp.eq.s32.totalorder %s44, 1
      %p277 = por %p275, %p276
      %p279 = scmp.ne.s32.totalorder %s264, %s278
      %p280 = scmp.eq.s32.totalorder %s44, 0
      %p281 = por %p279, %p280
      %s283 = sadd.s32 %s282, 1
      %p286 = scmp.eq.s32.totalorder %s38, 1
      %p287 = scmp.ne.s32.totalorder %s282, %s284
      %p288 = scmp.eq.s32.totalorder %s38, 0
      %p289 = por %p287, %p288
      %p290 = scmp.ne.s32.totalorder %s282, %s284
      %p291 = scmp.eq.s32.totalorder %s43, 1
      %p292 = por %p290, %p291
      %p293 = scmp.ne.s32.totalorder %s284, %s285
      %p294 = scmp.eq.s32.totalorder %s43, 0
      %p295 = por %p293, %p294
      %p296 = scmp.ne.s32.totalorder %s284, %s285
      %p297 = scmp.eq.s32.totalorder %s44, 1
      %p298 = por %p296, %p297
      %p300 = scmp.ne.s32.totalorder %s285, %s299
      %p301 = scmp.eq.s32.totalorder %s44, 0
      %p302 = por %p300, %p301
      %s304 = sadd.s32 %s303, 1
      %p307 = scmp.eq.s32.totalorder %s38, 1
      %p308 = scmp.ne.s32.totalorder %s303, %s305
      %p309 = scmp.eq.s32.totalorder %s38, 0
      %p310 = por %p308, %p309
      %p311 = scmp.ne.s32.totalorder %s303, %s305
      %p312 = scmp.eq.s32.totalorder %s43, 1
      %p313 = por %p311, %p312
      %p314 = scmp.ne.s32.totalorder %s305, %s306
      %p315 = scmp.eq.s32.totalorder %s43, 0
      %p316 = por %p314, %p315
      %p317 = scmp.ne.s32.totalorder %s305, %s306
      %p318 = scmp.eq.s32.totalorder %s44, 1
      %p319 = por %p317, %p318
      %p321 = scmp.ne.s32.totalorder %s306, %s320
      %p322 = scmp.eq.s32.totalorder %s44, 0
      %p323 = por %p321, %p322
      %s325 = sadd.s32 %s324, 1
      %p328 = scmp.eq.s32.totalorder %s38, 1
      %p329 = scmp.ne.s32.totalorder %s324, %s326
      %p330 = scmp.eq.s32.totalorder %s38, 0
      %p331 = por %p329, %p330
      %p332 = scmp.ne.s32.totalorder %s324, %s326
      %p333 = scmp.eq.s32.totalorder %s43, 1
      %p334 = por %p332, %p333
      %p335 = scmp.ne.s32.totalorder %s326, %s327
      %p336 = scmp.eq.s32.totalorder %s43, 0
      %p337 = por %p335, %p336
      %p338 = scmp.ne.s32.totalorder %s326, %s327
      %p339 = scmp.eq.s32.totalorder %s44, 1
      %p340 = por %p338, %p339
      %p342 = scmp.ne.s32.totalorder %s327, %s341
      %p343 = scmp.eq.s32.totalorder %s44, 0
      %p344 = por %p342, %p343
      %s346 = sadd.s32 %s345, 1
      %p349 = scmp.eq.s32.totalorder %s38, 1
      %p350 = scmp.ne.s32.totalorder %s345, %s347
      %p351 = scmp.eq.s32.totalorder %s38, 0
      %p352 = por %p350, %p351
      %p353 = scmp.ne.s32.totalorder %s345, %s347
      %p354 = scmp.eq.s32.totalorder %s43, 1
      %p355 = por %p353, %p354
      %p356 = scmp.ne.s32.totalorder %s347, %s348
      %p357 = scmp.eq.s32.totalorder %s43, 0
      %p358 = por %p356, %p357
      %p359 = scmp.ne.s32.totalorder %s347, %s348
      %p360 = scmp.eq.s32.totalorder %s44, 1
      %p361 = por %p359, %p360
      %p363 = scmp.ne.s32.totalorder %s348, %s362
      %p364 = scmp.eq.s32.totalorder %s44, 0
      %p365 = por %p363, %p364
      %s367 = sadd.s32 %s366, 1
      %p370 = scmp.eq.s32.totalorder %s38, 1
      %p371 = scmp.ne.s32.totalorder %s366, %s368
      %p372 = scmp.eq.s32.totalorder %s38, 0
      %p373 = por %p371, %p372
      %p374 = scmp.ne.s32.totalorder %s366, %s368
      %p375 = scmp.eq.s32.totalorder %s43, 1
      %p376 = por %p374, %p375
      %p377 = scmp.ne.s32.totalorder %s368, %s369
      %p378 = scmp.eq.s32.totalorder %s43, 0
      %p379 = por %p377, %p378
      %p380 = scmp.ne.s32.totalorder %s368, %s369
      %p381 = scmp.eq.s32.totalorder %s44, 1
      %p382 = por %p380, %p381
      %p384 = scmp.ne.s32.totalorder %s369, %s383
      %p385 = scmp.eq.s32.totalorder %s44, 0
      %p386 = por %p384, %p385
      %s388 = sadd.s32 %s387, 1
      %p391 = scmp.eq.s32.totalorder %s38, 1
      %p392 = scmp.ne.s32.totalorder %s387, %s389
      %p393 = scmp.eq.s32.totalorder %s38, 0
      %p394 = por %p392, %p393
      %p395 = scmp.ne.s32.totalorder %s387, %s389
      %p396 = scmp.eq.s32.totalorder %s43, 1
      %p397 = por %p395, %p396
      %p398 = scmp.ne.s32.totalorder %s389, %s390
      %p399 = scmp.eq.s32.totalorder %s43, 0
      %p400 = por %p398, %p399
      %p401 = scmp.ne.s32.totalorder %s389, %s390
      %p402 = scmp.eq.s32.totalorder %s44, 1
      %p403 = por %p401, %p402
      %p405 = scmp.ne.s32.totalorder %s390, %s404
      %p406 = scmp.eq.s32.totalorder %s44, 0
      %p407 = por %p405, %p406
      %s409 = sadd.s32 %s408, 1
      %p412 = scmp.eq.s32.totalorder %s38, 1
      %p413 = scmp.ne.s32.totalorder %s408, %s410
      %p414 = scmp.eq.s32.totalorder %s38, 0
      %p415 = por %p413, %p414
      %p416 = scmp.ne.s32.totalorder %s408, %s410
      %p417 = scmp.eq.s32.totalorder %s43, 1
      %p418 = por %p416, %p417
      %p419 = scmp.ne.s32.totalorder %s410, %s411
      %p420 = scmp.eq.s32.totalorder %s43, 0
      %p421 = por %p419, %p420
      %p422 = scmp.ne.s32.totalorder %s410, %s411
      %p423 = scmp.eq.s32.totalorder %s44, 1
      %p424 = por %p422, %p423
      %p426 = scmp.ne.s32.totalorder %s411, %s425
      %p427 = scmp.eq.s32.totalorder %s44, 0
      %p428 = por %p426, %p427
      %s430 = sadd.s32 %s429, 1
      %p433 = scmp.eq.s32.totalorder %s38, 1
      %p434 = scmp.ne.s32.totalorder %s429, %s431
      %p435 = scmp.eq.s32.totalorder %s38, 0
      %p436 = por %p434, %p435
      %p437 = scmp.ne.s32.totalorder %s429, %s431
      %p438 = scmp.eq.s32.totalorder %s43, 1
      %p439 = por %p437, %p438
      %p440 = scmp.ne.s32.totalorder %s431, %s432
      %p441 = scmp.eq.s32.totalorder %s43, 0
      %p442 = por %p440, %p441
      %p443 = scmp.ne.s32.totalorder %s431, %s432
      %p444 = scmp.eq.s32.totalorder %s44, 1
      %p445 = por %p443, %p444
      %p447 = scmp.ne.s32.totalorder %s432, %s446
      %p448 = scmp.eq.s32.totalorder %s44, 0
      %p449 = por %p447, %p448
      %s451 = sadd.s32 %s450, 1
      %p454 = scmp.eq.s32.totalorder %s38, 1
      %p455 = scmp.ne.s32.totalorder %s450, %s452
      %p456 = scmp.eq.s32.totalorder %s38, 0
      %p457 = por %p455, %p456
      %p458 = scmp.ne.s32.totalorder %s450, %s452
      %p459 = scmp.eq.s32.totalorder %s43, 1
      %p460 = por %p458, %p459
      %p461 = scmp.ne.s32.totalorder %s452, %s453
      %p462 = scmp.eq.s32.totalorder %s43, 0
      %p463 = por %p461, %p462
      %p464 = scmp.ne.s32.totalorder %s452, %s453
      %p465 = scmp.eq.s32.totalorder %s44, 1
      %p466 = por %p464, %p465
      %p468 = scmp.ne.s32.totalorder %s453, %s467
      %p469 = scmp.eq.s32.totalorder %s44, 0
      %p470 = por %p468, %p469
      %s472 = sadd.s32 %s471, 1
      %p475 = scmp.eq.s32.totalorder %s38, 1
      %p476 = scmp.ne.s32.totalorder %s471, %s473
      %p477 = scmp.eq.s32.totalorder %s38, 0
      %p478 = por %p476, %p477
      %p479 = scmp.ne.s32.totalorder %s471, %s473
      %p480 = scmp.eq.s32.totalorder %s43, 1
      %p481 = por %p479, %p480
      %p482 = scmp.ne.s32.totalorder %s473, %s474
      %p483 = scmp.eq.s32.totalorder %s43, 0
      %p484 = por %p482, %p483
      %p485 = scmp.ne.s32.totalorder %s473, %s474
      %p486 = scmp.eq.s32.totalorder %s44, 1
      %p487 = por %p485, %p486
      %p489 = scmp.ne.s32.totalorder %s474, %s488
      %p490 = scmp.eq.s32.totalorder %s44, 0
      %p491 = por %p489, %p490
      %s493 = sadd.s32 %s492, 1
      %p496 = scmp.eq.s32.totalorder %s38, 1
      %p497 = scmp.ne.s32.totalorder %s492, %s494
      %p498 = scmp.eq.s32.totalorder %s38, 0
      %p499 = por %p497, %p498
      %p500 = scmp.ne.s32.totalorder %s492, %s494
      %p501 = scmp.eq.s32.totalorder %s43, 1
      %p502 = por %p500, %p501
      %p503 = scmp.ne.s32.totalorder %s494, %s495
      %p504 = scmp.eq.s32.totalorder %s43, 0
      %p505 = por %p503, %p504
      %p506 = scmp.ne.s32.totalorder %s494, %s495
      %p507 = scmp.eq.s32.totalorder %s44, 1
      %p508 = por %p506, %p507
      %p510 = scmp.ne.s32.totalorder %s495, %s509
      %p511 = scmp.eq.s32.totalorder %s44, 0
      %p512 = por %p510, %p511
      %s514 = sadd.s32 %s513, 1
      %p517 = scmp.eq.s32.totalorder %s38, 1
      %p518 = scmp.ne.s32.totalorder %s513, %s515
      %p519 = scmp.eq.s32.totalorder %s38, 0
      %p520 = por %p518, %p519
      %p521 = scmp.ne.s32.totalorder %s513, %s515
      %p522 = scmp.eq.s32.totalorder %s43, 1
      %p523 = por %p521, %p522
      %p524 = scmp.ne.s32.totalorder %s515, %s516
      %p525 = scmp.eq.s32.totalorder %s43, 0
      %p526 = por %p524, %p525
      %p527 = scmp.ne.s32.totalorder %s515, %s516
      %p528 = scmp.eq.s32.totalorder %s44, 1
      %p529 = por %p527, %p528
      %p531 = scmp.ne.s32.totalorder %s516, %s530
      %p532 = scmp.eq.s32.totalorder %s44, 0
      %p533 = por %p531, %p532
      %s534 = ssub.s32 %s38, %s45
      %p535 = scmp.eq.s32.totalorder %s534, 0
      %s537 = sadd.s32 %s536, 1
      %s538 = scalar_select %p535, %s536, %s537
      %p541 = pneg %p535
      %p542 = scmp.eq.s32.totalorder %s38, 1
      %p543 = por %p541, %p542
      %p544 = scmp.ne.s32.totalorder %s536, %s539
      %p545 = scmp.eq.s32.totalorder %s38, 0
      %p546 = por %p544, %p545
      %p547 = scmp.ne.s32.totalorder %s536, %s539
      %p548 = scmp.eq.s32.totalorder %s43, 1
      %p549 = por %p547, %p548
      %p550 = scmp.ne.s32.totalorder %s539, %s540
      %p551 = scmp.eq.s32.totalorder %s43, 0
      %p552 = por %p550, %p551
      %p553 = scmp.ne.s32.totalorder %s539, %s540
      %p554 = scmp.eq.s32.totalorder %s44, 1
      %p555 = por %p553, %p554
      %p557 = scmp.ne.s32.totalorder %s540, %s556
      %p558 = scmp.eq.s32.totalorder %s44, 0
      %p559 = por %p557, %p558
      %p560 = scmp.le.s32.totalorder 1, %s38
      %p561 = scmp.lt.s32.totalorder %s38, 3
      %p562 = pnand %p560, %p561
      %p563 = pneg %p562
      // Predicated region
      $region9: #{hvatnet_forward.1} parent=5 // pred_check
        _
      $region10: #{hvatnet_forward.1} parent=5 // pred_check_branch
        %565 = sbr.rel (%p562) target = $region12
      $region11: #{hvatnet_forward.1} parent=5 // pred_region
        %s566 = ssub.s32 %s38, 1
        // Predicated region
        $region13: #{hvatnet_forward.1} parent=11 // pred_check
          %p567 = pneg %p85
        $region14: #{hvatnet_forward.1} parent=11 // pred_check_branch
          %569 = sbr.rel (%p567) target = $region16
        $region15: #{hvatnet_forward.1} parent=11 // pred_region
          %s571 = ssub.s32 64, 64
          %572 = vsyncadd [#allocation5], %s571
          %s574 = sshll.u32 [#allocation4], 4
          %s575 = int_to_ptr.vmem [resolvable:$true] %s574
          %577 = dma.hbm_to_vmem [thread:$0]  %s1, 64, %s575, [#allocation5]
        $region16: #{hvatnet_forward.1} parent=11 // pred_fallthru
          _
        // Predicated region
        $region17: #{hvatnet_forward.1} parent=11 // pred_check
          %p578 = pneg %p106
        $region18: #{hvatnet_forward.1} parent=11 // pred_check_branch
          %580 = sbr.rel (%p578) target = $region20
        $region19: #{hvatnet_forward.1} parent=11 // pred_region
          _
        $region20: #{hvatnet_forward.1} parent=11 // pred_fallthru
          _
        // Predicated region
        $region21: #{hvatnet_forward.1} parent=11 // pred_check
          %p581 = pneg %p127
        $region22: #{hvatnet_forward.1} parent=11 // pred_check_branch
          %583 = sbr.rel (%p581) target = $region24
        $region23: #{hvatnet_forward.1} parent=11 // pred_region
          %s585 = ssub.s32 64, 64
          %586 = vsyncadd [#allocation5], %s585
          %s588 = sshll.u32 [#allocation6], 4
          %s589 = int_to_ptr.vmem [resolvable:$true] %s588
          %591 = dma.hbm_to_vmem [thread:$0]  %s3, 64, %s589, [#allocation5]
        $region24: #{hvatnet_forward.1} parent=11 // pred_fallthru
          _
        // Predicated region
        $region25: #{hvatnet_forward.1} parent=11 // pred_check
          %p592 = pneg %p148
        $region26: #{hvatnet_forward.1} parent=11 // pred_check_branch
          %594 = sbr.rel (%p592) target = $region28
        $region27: #{hvatnet_forward.1} parent=11 // pred_region
          _
        $region28: #{hvatnet_forward.1} parent=11 // pred_fallthru
          _
        // Predicated region
        $region29: #{hvatnet_forward.1} parent=11 // pred_check
          %p595 = pneg %p169
        $region30: #{hvatnet_forward.1} parent=11 // pred_check_branch
          %597 = sbr.rel (%p595) target = $region32
        $region31: #{hvatnet_forward.1} parent=11 // pred_region
          %s599 = ssub.s32 1024, 1024
          %600 = vsyncadd [#allocation8], %s599
          %s601 = sshll.u32 [#allocation7], 4
          %s602 = int_to_ptr.vmem [resolvable:$true] %s601
          %607 = dma.hbm_to_vmem [thread:$0]  %s5, 1024, %s602, [#allocation8], 64, 64, 4
        $region32: #{hvatnet_forward.1} parent=11 // pred_fallthru
          _
        // Predicated region
        $region33: #{hvatnet_forward.1} parent=11 // pred_check
          %p608 = pneg %p190
        $region34: #{hvatnet_forward.1} parent=11 // pred_check_branch
          %610 = sbr.rel (%p608) target = $region36
        $region35: #{hvatnet_forward.1} parent=11 // pred_region
          _
        $region36: #{hvatnet_forward.1} parent=11 // pred_fallthru
          _
        // Predicated region
        $region37: #{hvatnet_forward.1} parent=11 // pred_check
          %p611 = pneg %p211
        $region38: #{hvatnet_forward.1} parent=11 // pred_check_branch
          %613 = sbr.rel (%p611) target = $region40
        $region39: #{hvatnet_forward.1} parent=11 // pred_region
          _
        $region40: #{hvatnet_forward.1} parent=11 // pred_fallthru
          _
        // Predicated region
        $region41: #{hvatnet_forward.1} parent=11 // pred_check
          %p614 = pneg %p232
        $region42: #{hvatnet_forward.1} parent=11 // pred_check_branch
          %616 = sbr.rel (%p614) target = $region44
        $region43: #{hvatnet_forward.1} parent=11 // pred_region
          _
        $region44: #{hvatnet_forward.1} parent=11 // pred_fallthru
          _
        // Predicated region
        $region45: #{hvatnet_forward.1} parent=11 // pred_check
          %p617 = pneg %p253
        $region46: #{hvatnet_forward.1} parent=11 // pred_check_branch
          %619 = sbr.rel (%p617) target = $region48
        $region47: #{hvatnet_forward.1} parent=11 // pred_region
          %s621 = ssub.s32 128, 128
          %622 = vsyncadd [#allocation8], %s621
          %s623 = sshll.u32 [#allocation9], 4
          %s624 = int_to_ptr.vmem [resolvable:$true] %s623
          %629 = dma.hbm_to_vmem [thread:$0]  %s9, 128, %s624, [#allocation8], 64, 64, 4
        $region48: #{hvatnet_forward.1} parent=11 // pred_fallthru
          _
        // Predicated region
        $region49: #{hvatnet_forward.1} parent=11 // pred_check
          %p630 = pneg %p274
        $region50: #{hvatnet_forward.1} parent=11 // pred_check_branch
          %632 = sbr.rel (%p630) target = $region52
        $region51: #{hvatnet_forward.1} parent=11 // pred_region
          _
        $region52: #{hvatnet_forward.1} parent=11 // pred_fallthru
          _
        // Predicated region
        $region53: #{hvatnet_forward.1} parent=11 // pred_check
          %p633 = pneg %p295
        $region54: #{hvatnet_forward.1} parent=11 // pred_check_branch
          %635 = sbr.rel (%p633) target = $region56
        $region55: #{hvatnet_forward.1} parent=11 // pred_region
          _
        $region56: #{hvatnet_forward.1} parent=11 // pred_fallthru
          _
        // Predicated region
        $region57: #{hvatnet_forward.1} parent=11 // pred_check
          %p636 = pneg %p316
        $region58: #{hvatnet_forward.1} parent=11 // pred_check_branch
          %638 = sbr.rel (%p636) target = $region60
        $region59: #{hvatnet_forward.1} parent=11 // pred_region
          %s640 = ssub.s32 128, 128
          %641 = vsyncadd [#allocation11], %s640
          %s642 = sshll.u32 [#allocation10], 4
          %s643 = int_to_ptr.vmem [resolvable:$true] %s642
          %648 = dma.hbm_to_vmem [thread:$0]  %s12, 128, %s643, [#allocation11], 64, 64, 4
        $region60: #{hvatnet_forward.1} parent=11 // pred_fallthru
          _
        // Predicated region
        $region61: #{hvatnet_forward.1} parent=11 // pred_check
          %p649 = pneg %p337
        $region62: #{hvatnet_forward.1} parent=11 // pred_check_branch
          %651 = sbr.rel (%p649) target = $region64
        $region63: #{hvatnet_forward.1} parent=11 // pred_region
          _
        $region64: #{hvatnet_forward.1} parent=11 // pred_fallthru
          _
        // Predicated region
        $region65: #{hvatnet_forward.1} parent=11 // pred_check
          %p652 = pneg %p358
        $region66: #{hvatnet_forward.1} parent=11 // pred_check_branch
          %654 = sbr.rel (%p652) target = $region68
        $region67: #{hvatnet_forward.1} parent=11 // pred_region
          %s656 = ssub.s32 32, 32
          %657 = vsyncadd [#allocation11], %s656
          %s659 = sshll.u32 [#allocation12], 4
          %s660 = int_to_ptr.vmem [resolvable:$true] %s659
          %662 = dma.hbm_to_vmem [thread:$0]  %s14, 32, %s660, [#allocation11]
        $region68: #{hvatnet_forward.1} parent=11 // pred_fallthru
          _
        // Predicated region
        $region69: #{hvatnet_forward.1} parent=11 // pred_check
          %p663 = pneg %p379
        $region70: #{hvatnet_forward.1} parent=11 // pred_check_branch
          %665 = sbr.rel (%p663) target = $region72
        $region71: #{hvatnet_forward.1} parent=11 // pred_region
          %s667 = ssub.s32 64, 64
          %668 = vsyncadd [#allocation14], %s667
          %s670 = sshll.u32 [#allocation13], 4
          %s671 = int_to_ptr.vmem [resolvable:$true] %s670
          %673 = dma.hbm_to_vmem [thread:$0]  %s15, 64, %s671, [#allocation14]
        $region72: #{hvatnet_forward.1} parent=11 // pred_fallthru
          _
        // Predicated region
        $region73: #{hvatnet_forward.1} parent=11 // pred_check
          %p674 = pneg %p400
        $region74: #{hvatnet_forward.1} parent=11 // pred_check_branch
          %676 = sbr.rel (%p674) target = $region76
        $region75: #{hvatnet_forward.1} parent=11 // pred_region
          _
        $region76: #{hvatnet_forward.1} parent=11 // pred_fallthru
          _
        // Predicated region
        $region77: #{hvatnet_forward.1} parent=11 // pred_check
          %p677 = pneg %p421
        $region78: #{hvatnet_forward.1} parent=11 // pred_check_branch
          %679 = sbr.rel (%p677) target = $region80
        $region79: #{hvatnet_forward.1} parent=11 // pred_region
          %s681 = ssub.s32 128, 128
          %682 = vsyncadd [#allocation14], %s681
          %s683 = sshll.u32 [#allocation15], 4
          %s684 = int_to_ptr.vmem [resolvable:$true] %s683
          %689 = dma.hbm_to_vmem [thread:$0]  %s17, 128, %s684, [#allocation14], 64, 64, 4
        $region80: #{hvatnet_forward.1} parent=11 // pred_fallthru
          _
        // Predicated region
        $region81: #{hvatnet_forward.1} parent=11 // pred_check
          %p690 = pneg %p442
        $region82: #{hvatnet_forward.1} parent=11 // pred_check_branch
          %692 = sbr.rel (%p690) target = $region84
        $region83: #{hvatnet_forward.1} parent=11 // pred_region
          %s694 = ssub.s32 64, 64
          %695 = vsyncadd [#allocation17], %s694
          %s697 = sshll.u32 [#allocation16], 4
          %s698 = int_to_ptr.vmem [resolvable:$true] %s697
          %700 = dma.hbm_to_vmem [thread:$0]  %s18, 64, %s698, [#allocation17]
        $region84: #{hvatnet_forward.1} parent=11 // pred_fallthru
          _
        // Predicated region
        $region85: #{hvatnet_forward.1} parent=11 // pred_check
          %p701 = pneg %p463
        $region86: #{hvatnet_forward.1} parent=11 // pred_check_branch
          %703 = sbr.rel (%p701) target = $region88
        $region87: #{hvatnet_forward.1} parent=11 // pred_region
          _
        $region88: #{hvatnet_forward.1} parent=11 // pred_fallthru
          _
        // Predicated region
        $region89: #{hvatnet_forward.1} parent=11 // pred_check
          %p704 = pneg %p484
        $region90: #{hvatnet_forward.1} parent=11 // pred_check_branch
          %706 = sbr.rel (%p704) target = $region92
        $region91: #{hvatnet_forward.1} parent=11 // pred_region
          %s708 = ssub.s32 320, 320
          %709 = vsyncadd [#allocation17], %s708
          %s710 = sshll.u32 [#allocation18], 4
          %s711 = int_to_ptr.vmem [resolvable:$true] %s710
          %716 = dma.hbm_to_vmem [thread:$0]  %s20, 320, %s711, [#allocation17], 64, 64, 4
        $region92: #{hvatnet_forward.1} parent=11 // pred_fallthru
          _
        // Predicated region
        $region93: #{hvatnet_forward.1} parent=11 // pred_check
          %p717 = pneg %p505
        $region94: #{hvatnet_forward.1} parent=11 // pred_check_branch
          %719 = sbr.rel (%p717) target = $region96
        $region95: #{hvatnet_forward.1} parent=11 // pred_region
          %s721 = ssub.s32 64, 64
          %722 = vsyncadd [#allocation20], %s721
          %s724 = sshll.u32 [#allocation19], 4
          %s725 = int_to_ptr.vmem [resolvable:$true] %s724
          %727 = dma.hbm_to_vmem [thread:$0]  %s21, 64, %s725, [#allocation20]
        $region96: #{hvatnet_forward.1} parent=11 // pred_fallthru
          _
        // Predicated region
        $region97: #{hvatnet_forward.1} parent=11 // pred_check
          %p728 = pneg %p526
        $region98: #{hvatnet_forward.1} parent=11 // pred_check_branch
          %730 = sbr.rel (%p728) target = $region100
        $region99: #{hvatnet_forward.1} parent=11 // pred_region
          %s732 = ssub.s32 128, 128
          %733 = vsyncadd [#allocation20], %s732
          %s735 = sshll.u32 [#allocation21], 4
          %s736 = int_to_ptr.vmem [resolvable:$true] %s735
          %738 = dma.hbm_to_vmem [thread:$0]  %s22, 128, %s736, [#allocation20]
        $region100: #{hvatnet_forward.1} parent=11 // pred_fallthru
          _
      $region12: #{hvatnet_forward.1} parent=5 // pred_fallthru
        _
      %p739 = scmp.lt.s32.totalorder %s38, 2
      // Predicated region
      $region101: #{hvatnet_forward.1} parent=5 // pred_check
        %p740 = pneg %p739
      $region102: #{hvatnet_forward.1} parent=5 // pred_check_branch
        %742 = sbr.rel (%p740) target = $region104
      $region103: #{hvatnet_forward.1} parent=5 // pred_region
        // Predicated region
        $region105: #{hvatnet_forward.1} parent=103 // pred_check
          %p743 = pneg %p58
        $region106: #{hvatnet_forward.1} parent=103 // pred_check_branch
          %745 = sbr.rel (%p743) target = $region108
        $region107: #{hvatnet_forward.1} parent=103 // pred_region
          %s746 = sand.u32 %s48, 1
          %s747 = scalar_lea.sflag [#allocation3], %s746
          %s748 = sand.u32 %s48, 1
          %s749 = smul.addr %s748, 16
          %s750 = scalar_lea.vmem [#allocation2], %s749
          %s752 = ssub.s32 256, 256
          %753 = vsyncadd %s747, %s752
          %s754 = smul.addr %s38, 2
          %s755 = smul.addr %s754, 128
          %s756 = scalar_lea.hbm %s0, %s755
          %s758 = sshll.u32 %s750, 4
          %s759 = int_to_ptr.vmem [resolvable:$true] %s758
          %761 = dma.hbm_to_vmem [thread:$0]  %s756, 256, %s759, %s747
        $region108: #{hvatnet_forward.1} parent=103 // pred_fallthru
          _
      $region104: #{hvatnet_forward.1} parent=5 // pred_fallthru
        _
      %p762 = scmp.le.s32.totalorder 1, %s38
      %p763 = scmp.lt.s32.totalorder %s38, 3
      %p764 = pnand %p762, %p763
      %p765 = pneg %p764
      // Predicated region
      $region109: #{hvatnet_forward.1} parent=5 // pred_check
        _
      $region110: #{hvatnet_forward.1} parent=5 // pred_check_branch
        %767 = sbr.rel (%p764) target = $region112
      $region111: #{hvatnet_forward.1} parent=5 // pred_region
        %s768 = ssub.s32 %s38, 1
        %s769 = sand.u32 %s51, 1
        %s770 = scalar_lea.sflag [#allocation3], %s769
        %s771 = sand.u32 %s51, 1
        %s772 = smul.addr %s771, 16
        %s773 = scalar_lea.vmem [#allocation2], %s772
        // Predicated region
        $region113: #{hvatnet_forward.1} parent=111 // pred_check
          %p774 = pneg %p64
        $region114: #{hvatnet_forward.1} parent=111 // pred_check_branch
          %776 = sbr.rel (%p774) target = $region116
        $region115: #{hvatnet_forward.1} parent=111 // pred_region
          %777 = dma.done %s770, 256
        $region116: #{hvatnet_forward.1} parent=111 // pred_fallthru
          _
        // Predicated region
        $region117: #{hvatnet_forward.1} parent=111 // pred_check
          %p778 = pneg %p85
        $region118: #{hvatnet_forward.1} parent=111 // pred_check_branch
          %780 = sbr.rel (%p778) target = $region120
        $region119: #{hvatnet_forward.1} parent=111 // pred_region
          %781 = dma.done [#allocation5], 64
        $region120: #{hvatnet_forward.1} parent=111 // pred_fallthru
          _
        // Predicated region
        $region121: #{hvatnet_forward.1} parent=111 // pred_check
          %p782 = pneg %p127
        $region122: #{hvatnet_forward.1} parent=111 // pred_check_branch
          %784 = sbr.rel (%p782) target = $region124
        $region123: #{hvatnet_forward.1} parent=111 // pred_region
          %785 = dma.done [#allocation5], 64
        $region124: #{hvatnet_forward.1} parent=111 // pred_fallthru
          _
        // Predicated region
        $region125: #{hvatnet_forward.1} parent=111 // pred_check
          %p786 = pneg %p169
        $region126: #{hvatnet_forward.1} parent=111 // pred_check_branch
          %788 = sbr.rel (%p786) target = $region128
        $region127: #{hvatnet_forward.1} parent=111 // pred_region
          %789 = dma.done [#allocation8], 1024
        $region128: #{hvatnet_forward.1} parent=111 // pred_fallthru
          _
        // Predicated region
        $region129: #{hvatnet_forward.1} parent=111 // pred_check
          %p790 = pneg %p253
        $region130: #{hvatnet_forward.1} parent=111 // pred_check_branch
          %792 = sbr.rel (%p790) target = $region132
        $region131: #{hvatnet_forward.1} parent=111 // pred_region
          %793 = dma.done [#allocation8], 128
        $region132: #{hvatnet_forward.1} parent=111 // pred_fallthru
          _
        // Predicated region
        $region133: #{hvatnet_forward.1} parent=111 // pred_check
          %p794 = pneg %p316
        $region134: #{hvatnet_forward.1} parent=111 // pred_check_branch
          %796 = sbr.rel (%p794) target = $region136
        $region135: #{hvatnet_forward.1} parent=111 // pred_region
          %797 = dma.done [#allocation11], 128
        $region136: #{hvatnet_forward.1} parent=111 // pred_fallthru
          _
        // Predicated region
        $region137: #{hvatnet_forward.1} parent=111 // pred_check
          %p798 = pneg %p358
        $region138: #{hvatnet_forward.1} parent=111 // pred_check_branch
          %800 = sbr.rel (%p798) target = $region140
        $region139: #{hvatnet_forward.1} parent=111 // pred_region
          %801 = dma.done [#allocation11], 32
        $region140: #{hvatnet_forward.1} parent=111 // pred_fallthru
          _
        // Predicated region
        $region141: #{hvatnet_forward.1} parent=111 // pred_check
          %p802 = pneg %p379
        $region142: #{hvatnet_forward.1} parent=111 // pred_check_branch
          %804 = sbr.rel (%p802) target = $region144
        $region143: #{hvatnet_forward.1} parent=111 // pred_region
          %805 = dma.done [#allocation14], 64
        $region144: #{hvatnet_forward.1} parent=111 // pred_fallthru
          _
        // Predicated region
        $region145: #{hvatnet_forward.1} parent=111 // pred_check
          %p806 = pneg %p421
        $region146: #{hvatnet_forward.1} parent=111 // pred_check_branch
          %808 = sbr.rel (%p806) target = $region148
        $region147: #{hvatnet_forward.1} parent=111 // pred_region
          %809 = dma.done [#allocation14], 128
        $region148: #{hvatnet_forward.1} parent=111 // pred_fallthru
          _
        // Predicated region
        $region149: #{hvatnet_forward.1} parent=111 // pred_check
          %p810 = pneg %p442
        $region150: #{hvatnet_forward.1} parent=111 // pred_check_branch
          %812 = sbr.rel (%p810) target = $region152
        $region151: #{hvatnet_forward.1} parent=111 // pred_region
          %813 = dma.done [#allocation17], 64
        $region152: #{hvatnet_forward.1} parent=111 // pred_fallthru
          _
        // Predicated region
        $region153: #{hvatnet_forward.1} parent=111 // pred_check
          %p814 = pneg %p484
        $region154: #{hvatnet_forward.1} parent=111 // pred_check_branch
          %816 = sbr.rel (%p814) target = $region156
        $region155: #{hvatnet_forward.1} parent=111 // pred_region
          %817 = dma.done [#allocation17], 320
        $region156: #{hvatnet_forward.1} parent=111 // pred_fallthru
          _
        // Predicated region
        $region157: #{hvatnet_forward.1} parent=111 // pred_check
          %p818 = pneg %p505
        $region158: #{hvatnet_forward.1} parent=111 // pred_check_branch
          %820 = sbr.rel (%p818) target = $region160
        $region159: #{hvatnet_forward.1} parent=111 // pred_region
          %821 = dma.done [#allocation20], 64
        $region160: #{hvatnet_forward.1} parent=111 // pred_fallthru
          _
        // Predicated region
        $region161: #{hvatnet_forward.1} parent=111 // pred_check
          %p822 = pneg %p526
        $region162: #{hvatnet_forward.1} parent=111 // pred_check_branch
          %824 = sbr.rel (%p822) target = $region164
        $region163: #{hvatnet_forward.1} parent=111 // pred_region
          %825 = dma.done [#allocation20], 128
        $region164: #{hvatnet_forward.1} parent=111 // pred_fallthru
          _
        %s826 = sand.u32 %s51, 1
        %s827 = scalar_lea.sflag [#allocation3], %s826
        %s828 = sand.u32 %s51, 1
        %s829 = smul.addr %s828, 16
        %s830 = scalar_lea.vmem [#allocation2], %s829
        %p831 = pneg %p64
        %p832 = pneg %p61
        %p833 = pneg %p85
        %p834 = pneg %p82
        %p835 = pneg %p106
        %p836 = pneg %p103
        %p837 = pneg %p127
        %p838 = pneg %p124
        %p839 = pneg %p148
        %p840 = pneg %p145
        %p841 = pneg %p169
        %p842 = pneg %p166
        %p843 = pneg %p190
        %p844 = pneg %p187
        %p845 = pneg %p211
        %p846 = pneg %p208
        %p847 = pneg %p232
        %p848 = pneg %p229
        %p849 = pneg %p253
        %p850 = pneg %p250
        %p851 = pneg %p274
        %p852 = pneg %p271
        %p853 = pneg %p295
        %p854 = pneg %p292
        %p855 = pneg %p316
        %p856 = pneg %p313
        %p857 = pneg %p337
        %p858 = pneg %p334
        %p859 = pneg %p358
        %p860 = pneg %p355
        %p861 = pneg %p379
        %p862 = pneg %p376
        %p863 = pneg %p400
        %p864 = pneg %p397
        %p865 = pneg %p421
        %p866 = pneg %p418
        %p867 = pneg %p442
        %p868 = pneg %p439
        %p869 = pneg %p463
        %p870 = pneg %p460
        %p871 = pneg %p484
        %p872 = pneg %p481
        %p873 = pneg %p505
        %p874 = pneg %p502
        %p875 = pneg %p526
        %p876 = pneg %p523
        %p877 = pneg %p552
        %p878 = pneg %p549
        %p879 = scmp.lt.s32.totalorder %s43, 1
        %s880 = scalar_select %p879, %s43, 1
        %s881 = smul.addr %s880, 2
        %s882 = smul.addr %s881, 8
        %s883 = scalar_lea.vmem %s23, %s882
        %p884 = scmp.lt.s32.totalorder %s43, 1
        %s885 = scalar_select %p884, %s43, 1
        %s886 = smul.addr %s885, 2
        %s887 = smul.addr %s886, 8
        %s888 = scalar_lea.vmem %s23, %s887
        %v890 = vld [vmem:[%s773] sm:$0xff]
        %v891 = vld [vmem:[%s773 + $0x8] sm:$0xff]
        %v892 = vld [vmem:[#allocation4] sm:$0xf]
        %v893 = vld [vmem:[%s2] sm:$0xff]
        %896 = vrot.lane.b32.xlu0 %v890, 1
        %v897 = vpop.permute.xlu0 %896
        %898 = vrot.lane.b32.xlu0 %v891, 1
        %v899 = vpop.permute.xlu0 %898
        %vm900 = vcmask 7168
        %v901 = vsel %vm900, %v897, %v899
        %v905 = vsel %vm900, 0.0, %v897
        %v906 = vsel %vm900, %v899, 0.0
        %v907 = vlaneseq
        %v908 = vand.u32 %v907, 127
        %v909 = vadd.s32 %v908, 128
        %vm910 = vcmp.ge.s32.totalorder %v908, 0
        %vm911 = vcmp.ge.s32.totalorder %v909, 0
        %vm912 = vcmp.lt.s32.totalorder %v908, 1
        %vm913 = vcmp.lt.s32.totalorder %v909, 1
        %vm914 = vmand %vm910, %vm912
        %vm915 = vmand %vm911, %vm913
        %vm916 = vcmp.ge.s32.totalorder %v908, 128
        %vm917 = vcmp.ge.s32.totalorder %v909, 128
        %vm918 = vcmp.lt.s32.totalorder %v908, 129
        %vm919 = vcmp.lt.s32.totalorder %v909, 129
        %vm920 = vmand %vm916, %vm918
        %vm921 = vmand %vm917, %vm919
        %vm922 = vmor %vm914, %vm920
        %vm923 = vmor %vm915, %vm921
        %v924 = vsel %vm922, 1, 0
        %v925 = vsel %vm923, 1, 0
        %v926 = vcvt.s32.f32 %v924
        %v927 = vcvt.s32.f32 %v925
        %v928 = vsub.f32 1.0, %v926
        %v929 = vsub.f32 1.0, %v927
        %v930 = vmul.f32 %v905, %v928
        %v931 = vmul.f32 %v901, %v929
        %vm932 = vcmp.ge.s32.totalorder %v908, 127
        %vm933 = vcmp.ge.s32.totalorder %v909, 127
        %vm934 = vcmp.lt.s32.totalorder %v908, 128
        %vm935 = vcmp.lt.s32.totalorder %v909, 128
        %vm936 = vmand %vm932, %vm934
        %vm937 = vmand %vm933, %vm935
        %vm938 = vcmp.ge.s32.totalorder %v908, 255
        %vm939 = vcmp.ge.s32.totalorder %v909, 255
        %vm940 = vcmp.lt.s32.totalorder %v908, 256
        %vm941 = vcmp.lt.s32.totalorder %v909, 256
        %vm942 = vmand %vm938, %vm940
        %vm943 = vmand %vm939, %vm941
        %vm944 = vmor %vm936, %vm942
        %vm945 = vmor %vm937, %vm943
        %v946 = vsel %vm944, 1, 0
        %v947 = vsel %vm945, 1, 0
        %v948 = vcvt.s32.f32 %v946
        %v949 = vcvt.s32.f32 %v947
        %v950 = vsub.f32 1.0, %v948
        %v951 = vsub.f32 1.0, %v949
        %954 = vrot.lane.b32.xlu0 %v950, 2
        %v955 = vpop.permute.xlu0 %954
        %956 = vrot.lane.b32.xlu0 %v951, 2
        %v957 = vpop.permute.xlu0 %956
        %vm958 = vcmask 15360
        %v959 = vsel %vm958, %v955, %v957
        %v963 = vmul.f32 %v905, %v955
        %v964 = vmul.f32 %v901, %v959
        %v965 = vmul.f32 %v906, %v957
        %968 = vrot.lane.b32.xlu0 %v905, 127
        %v969 = vpop.permute.xlu0 %968
        %970 = vrot.lane.b32.xlu0 %v901, 127
        %v971 = vpop.permute.xlu0 %970
        %972 = vrot.lane.b32.xlu0 %v906, 127
        %v973 = vpop.permute.xlu0 %972
        %vm974 = vcmask 1039360
        %v975 = vsel %vm974, %v969, %v971
        %v976 = vsel %vm974, %v971, %v973
        %982 = vrot.lane.b32.xlu0 %v963, 126
        %v983 = vpop.permute.xlu0 %982
        %984 = vrot.lane.b32.xlu0 %v964, 126
        %v985 = vpop.permute.xlu0 %984
        %986 = vrot.lane.b32.xlu0 %v965, 126
        %v987 = vpop.permute.xlu0 %986
        %vm988 = vcmask 1031168
        %v989 = vsel %vm988, %v983, %v985
        %v990 = vsel %vm988, %v985, %v987
        %v993 = vpack.c.bf16 %v975, %v930
        %v994 = vpack.c.bf16 %v976, %v931
        %v995 = vpack.c.bf16 %v989, %v989
        %v996 = vpack.c.bf16 %v990, %v990
        %vm997 = vcmask 195584
        %v999 = vsel %vm997, %v892, 0
        %vm1001 = vcmask 1043456
        %v1003 = vsel %vm1001, %v995, 0
        %v1006 = vsel %vm1001, %v996, 0
        %1008 = vmatprep.subr.bf16.mxu0 %v994
        %1009 = vmatpush1.bf16.msra.mxu0 %v993
        %1010 = vmatprep.subr.bf16.mxu0 %v1006
        %1011 = vmatpush1.bf16.msra.mxu0 %v1003
        %1012 = vmatprep.subr.bf16.mxu0 0
        %1013 = vmatpush1.bf16.msra.mxu0 0
        %1014 = vmatprep.subr.bf16.mxu0 0
        %1015 = vmatpush1.bf16.msra.mxu0 0
        %1016 = vmatprep.subr.bf16.mxu0 0
        %1017 = vmatpush1.bf16.msra.mxu0 0
        %1018 = vmatprep.subr.bf16.mxu0 0
        %1019 = vmatpush1.bf16.msra.mxu0 0
        %1020 = vmatprep.subr.bf16.mxu0 0
        %1021 = vmatpush1.bf16.msra.mxu0 0
        %1022 = vmatprep.subr.bf16.mxu0 0
        %1023 = vmatpush1.bf16.msra.mxu0 0
        %1024 = vmatprep.subr.bf16.mxu0 0
        %1025 = vmatpush1.bf16.msra.mxu0 0
        %1026 = vmatprep.subr.bf16.mxu0 0
        %1027 = vmatpush1.bf16.msra.mxu0 0
        %1028 = vmatprep.subr.bf16.mxu0 0
        %1029 = vmatpush1.bf16.msra.mxu0 0
        %1030 = vmatprep.subr.bf16.mxu0 0
        %1031 = vmatpush1.bf16.msra.mxu0 0
        %1032 = vmatprep.subr.bf16.mxu0 0
        %1033 = vmatpush1.bf16.msra.mxu0 0
        %1034 = vmatprep.subr.bf16.mxu0 0
        %1035 = vmatpush1.bf16.msra.mxu0 0
        %1036 = vmatprep.subr.bf16.mxu0 0
        %1037 = vmatpush1.bf16.msra.mxu0 0
        %1038 = vmatprep.subr.bf16.mxu0 0
        %1039 = vmatpush1.bf16.msra.mxu0 0
        %1040 = vmatprep.mubr.bf16.mxu0 0
        %1041 = vmatmul.mubr.bf16.gmra.mrb[0].mxu0 %v999
        %v1042 = vpop.f32.mrb[0].mxu0
        %v1043 = vadd.f32 0.0, %v1042
        %v1044 = vpop.f32.mrb[0].mxu0
        %v1045 = vadd.f32 0.0, %v1044
        %v1046 = vpop.f32.mrb[0].mxu0
        %v1047 = vpop.f32.mrb[0].mxu0
        %1048 = vdwg.mxu0
        %v1049 = vrot.slane %v1043, 4
        %v1050 = vadd.f32 %v1043, %v1049
        %v1051 = vrot.slane %v1050, 2
        %v1052 = vadd.f32 %v1050, %v1051
        %v1053 = vrot.slane %v1052, 1
        %v1054 = vadd.f32 %v1052, %v1053
        %v1055 = vrot.slane %v1045, 4
        %v1056 = vadd.f32 %v1045, %v1055
        %v1057 = vrot.slane %v1056, 2
        %v1058 = vadd.f32 %v1056, %v1057
        %v1059 = vrot.slane %v1058, 1
        %v1060 = vadd.f32 %v1058, %v1059
        %v1061 = vrcp.pop 8.0
        %v1062 = vmul.f32 %v1054, %v1061
        %v1063 = vmul.f32 %v1060, %v1061
        %v1064 = vsub.f32 %v1043, %v1062
        %v1065 = vsub.f32 %v1045, %v1063
        %v1066 = vmul.f32 %v1064, %v1064
        %v1067 = vmul.f32 %v1065, %v1065
        %v1068 = vrot.slane %v1066, 4
        %v1069 = vadd.f32 %v1066, %v1068
        %v1070 = vrot.slane %v1069, 2
        %v1071 = vadd.f32 %v1069, %v1070
        %v1072 = vrot.slane %v1071, 1
        %v1073 = vadd.f32 %v1071, %v1072
        %v1074 = vrot.slane %v1067, 4
        %v1075 = vadd.f32 %v1067, %v1074
        %v1076 = vrot.slane %v1075, 2
        %v1077 = vadd.f32 %v1075, %v1076
        %v1078 = vrot.slane %v1077, 1
        %v1079 = vadd.f32 %v1077, %v1078
        %v1080 = vmul.f32 %v1073, %v1061
        %v1081 = vmul.f32 %v1079, %v1061
        %v1082 = vadd.f32 %v1080, 1e-05
        %v1083 = vadd.f32 %v1081, 1e-05
        %v1084 = vrsqrt.pop %v1082
        %v1085 = vrsqrt.pop %v1083
        %v1086 = vmul.f32 %v1064, %v1084
        %v1087 = vmul.f32 %v1065, %v1085
        %1089 = vset.pattern.permute.xlu0 0
        %1090 = vperm.xlu0 %1089, %v893
        %v1091 = vpop.permute.xlu0 %1090
        %v1093 = vmul.f32 %v1086, %v1091
        %v1094 = vmul.f32 %v1087, %v1091
        %1095 = vset.pattern.permute.xlu0 1
        %1096 = vperm.xlu0 %1095, %v893
        %v1097 = vpop.permute.xlu0 %1096
        %v1099 = vadd.f32 %v1093, %v1097
        %v1100 = vadd.f32 %v1094, %v1097
        %v1101 = vmul.f32 %v1099, 0.5
        %v1102 = vmul.f32 %v1100, 0.5
        %v1103 = vmul.f32 %v1099, %v1099
        %v1104 = vmul.f32 %v1100, %v1100
        %v1105 = vmul.f32 %v1103, %v1099
        %v1106 = vmul.f32 %v1104, %v1100
        %v1107 = vmul.f32 %v1105, 0.044715
        %v1108 = vmul.f32 %v1106, 0.044715
        %v1109 = vadd.f32 %v1099, %v1107
        %v1110 = vadd.f32 %v1100, %v1108
        %v1111 = vmul.f32 %v1109, 0.7978846
        %v1112 = vmul.f32 %v1110, 0.7978846
        %v1113 = vtanh.pop %v1111
        %v1114 = vtanh.pop %v1112
        %v1115 = vadd.f32 %v1113, 1.0
        %v1116 = vadd.f32 %v1114, 1.0
        %v1117 = vmul.f32 %v1101, %v1115
        %v1118 = vmul.f32 %v1102, %v1116
        %v1119 = vld [vmem:[#allocation6] sm:$0xf]
        %v1120 = vld [vmem:[%s4] sm:$0xff]
        %v1121 = vld [vmem:[#allocation7] sm:$0xf]
        %v1122 = vld [vmem:[#allocation7 + $0x4] sm:$0xf]
        %v1123 = vld [vmem:[#allocation7 + $0x8] sm:$0xf]
        %v1124 = vld [vmem:[#allocation7 + $0xc] sm:$0xf]
        %v1125 = vld [vmem:[#allocation7 + $0x10] sm:$0xf]
        %v1126 = vld [vmem:[#allocation7 + $0x14] sm:$0xf]
        %v1127 = vld [vmem:[#allocation7 + $0x18] sm:$0xf]
        %v1128 = vld [vmem:[#allocation7 + $0x1c] sm:$0xf]
        %v1129 = vld [vmem:[#allocation7 + $0x20] sm:$0xf]
        %v1130 = vld [vmem:[#allocation7 + $0x24] sm:$0xf]
        %v1131 = vld [vmem:[#allocation7 + $0x28] sm:$0xf]
        %v1132 = vld [vmem:[#allocation7 + $0x2c] sm:$0xf]
        %v1133 = vld [vmem:[#allocation7 + $0x30] sm:$0xf]
        %v1134 = vld [vmem:[#allocation7 + $0x34] sm:$0xf]
        %v1135 = vld [vmem:[#allocation7 + $0x38] sm:$0xf]
        %v1136 = vld [vmem:[#allocation7 + $0x3c] sm:$0xf]
        %1139 = vrot.lane.b32.xlu0 %v1117, 1
        %v1140 = vpop.permute.xlu0 %1139
        %1141 = vrot.lane.b32.xlu0 %v1118, 1
        %v1142 = vpop.permute.xlu0 %1141
        %v1143 = vsel %vm900, %v1140, %v1142
        %v1147 = vsel %vm900, 0.0, %v1140
        %v1148 = vsel %vm900, %v1142, 0.0
        %v1149 = vmul.f32 %v1147, %v928
        %v1150 = vmul.f32 %v1143, %v929
        %v1151 = vmul.f32 %v1147, %v955
        %v1152 = vmul.f32 %v1143, %v959
        %v1153 = vmul.f32 %v1148, %v957
        %1156 = vrot.lane.b32.xlu0 %v1147, 127
        %v1157 = vpop.permute.xlu0 %1156
        %1158 = vrot.lane.b32.xlu0 %v1143, 127
        %v1159 = vpop.permute.xlu0 %1158
        %1160 = vrot.lane.b32.xlu0 %v1148, 127
        %v1161 = vpop.permute.xlu0 %1160
        %v1162 = vsel %vm974, %v1157, %v1159
        %v1163 = vsel %vm974, %v1159, %v1161
        %1169 = vrot.lane.b32.xlu0 %v1151, 126
        %v1170 = vpop.permute.xlu0 %1169
        %1171 = vrot.lane.b32.xlu0 %v1152, 126
        %v1172 = vpop.permute.xlu0 %1171
        %1173 = vrot.lane.b32.xlu0 %v1153, 126
        %v1174 = vpop.permute.xlu0 %1173
        %v1175 = vsel %vm988, %v1170, %v1172
        %v1176 = vsel %vm988, %v1172, %v1174
        %v1179 = vpack.c.bf16 %v1162, %v1149
        %v1180 = vpack.c.bf16 %v1163, %v1150
        %v1181 = vpack.c.bf16 %v1175, %v1175
        %v1182 = vpack.c.bf16 %v1176, %v1176
        %v1184 = vsel %vm997, %v1119, 0
        %v1187 = vsel %vm1001, %v1181, 0
        %v1190 = vsel %vm1001, %v1182, 0
        %1192 = vmatprep.subr.bf16.mxu0 %v1180
        %1193 = vmatpush1.bf16.msra.mxu0 %v1179
        %1194 = vmatprep.subr.bf16.mxu0 %v1190
        %1195 = vmatpush1.bf16.msra.mxu0 %v1187
        %1196 = vmatprep.subr.bf16.mxu0 0
        %1197 = vmatpush1.bf16.msra.mxu0 0
        %1198 = vmatprep.subr.bf16.mxu0 0
        %1199 = vmatpush1.bf16.msra.mxu0 0
        %1200 = vmatprep.subr.bf16.mxu0 0
        %1201 = vmatpush1.bf16.msra.mxu0 0
        %1202 = vmatprep.subr.bf16.mxu0 0
        %1203 = vmatpush1.bf16.msra.mxu0 0
        %1204 = vmatprep.subr.bf16.mxu0 0
        %1205 = vmatpush1.bf16.msra.mxu0 0
        %1206 = vmatprep.subr.bf16.mxu0 0
        %1207 = vmatpush1.bf16.msra.mxu0 0
        %1208 = vmatprep.subr.bf16.mxu0 0
        %1209 = vmatpush1.bf16.msra.mxu0 0
        %1210 = vmatprep.subr.bf16.mxu0 0
        %1211 = vmatpush1.bf16.msra.mxu0 0
        %1212 = vmatprep.subr.bf16.mxu0 0
        %1213 = vmatpush1.bf16.msra.mxu0 0
        %1214 = vmatprep.subr.bf16.mxu0 0
        %1215 = vmatpush1.bf16.msra.mxu0 0
        %1216 = vmatprep.subr.bf16.mxu0 0
        %1217 = vmatpush1.bf16.msra.mxu0 0
        %1218 = vmatprep.subr.bf16.mxu0 0
        %1219 = vmatpush1.bf16.msra.mxu0 0
        %1220 = vmatprep.subr.bf16.mxu0 0
        %1221 = vmatpush1.bf16.msra.mxu0 0
        %1222 = vmatprep.subr.bf16.mxu0 0
        %1223 = vmatpush1.bf16.msra.mxu0 0
        %1224 = vmatprep.mubr.bf16.mxu0 0
        %1225 = vmatmul.mubr.bf16.gmra.mrb[0].mxu0 %v1184
        %v1226 = vpop.f32.mrb[0].mxu0
        %v1227 = vadd.f32 0.0, %v1226
        %v1228 = vpop.f32.mrb[0].mxu0
        %v1229 = vadd.f32 0.0, %v1228
        %v1230 = vpop.f32.mrb[0].mxu0
        %v1231 = vpop.f32.mrb[0].mxu0
        %1232 = vdwg.mxu0
        %v1233 = vrot.slane %v1227, 4
        %v1234 = vadd.f32 %v1227, %v1233
        %v1235 = vrot.slane %v1234, 2
        %v1236 = vadd.f32 %v1234, %v1235
        %v1237 = vrot.slane %v1236, 1
        %v1238 = vadd.f32 %v1236, %v1237
        %v1239 = vrot.slane %v1229, 4
        %v1240 = vadd.f32 %v1229, %v1239
        %v1241 = vrot.slane %v1240, 2
        %v1242 = vadd.f32 %v1240, %v1241
        %v1243 = vrot.slane %v1242, 1
        %v1244 = vadd.f32 %v1242, %v1243
        %v1245 = vmul.f32 %v1238, %v1061
        %v1246 = vmul.f32 %v1244, %v1061
        %v1247 = vsub.f32 %v1227, %v1245
        %v1248 = vsub.f32 %v1229, %v1246
        %v1249 = vmul.f32 %v1247, %v1247
        %v1250 = vmul.f32 %v1248, %v1248
        %v1251 = vrot.slane %v1249, 4
        %v1252 = vadd.f32 %v1249, %v1251
        %v1253 = vrot.slane %v1252, 2
        %v1254 = vadd.f32 %v1252, %v1253
        %v1255 = vrot.slane %v1254, 1
        %v1256 = vadd.f32 %v1254, %v1255
        %v1257 = vrot.slane %v1250, 4
        %v1258 = vadd.f32 %v1250, %v1257
        %v1259 = vrot.slane %v1258, 2
        %v1260 = vadd.f32 %v1258, %v1259
        %v1261 = vrot.slane %v1260, 1
        %v1262 = vadd.f32 %v1260, %v1261
        %v1263 = vmul.f32 %v1256, %v1061
        %v1264 = vmul.f32 %v1262, %v1061
        %v1265 = vadd.f32 %v1263, 1e-05
        %v1266 = vadd.f32 %v1264, 1e-05
        %v1267 = vrsqrt.pop %v1265
        %v1268 = vrsqrt.pop %v1266
        %v1269 = vmul.f32 %v1247, %v1267
        %v1270 = vmul.f32 %v1248, %v1268
        %1272 = vset.pattern.permute.xlu0 0
        %1273 = vperm.xlu0 %1272, %v1120
        %v1274 = vpop.permute.xlu0 %1273
        %v1276 = vmul.f32 %v1269, %v1274
        %v1277 = vmul.f32 %v1270, %v1274
        %1278 = vset.pattern.permute.xlu0 1
        %1279 = vperm.xlu0 %1278, %v1120
        %v1280 = vpop.permute.xlu0 %1279
        %v1282 = vadd.f32 %v1276, %v1280
        %v1283 = vadd.f32 %v1277, %v1280
        %v1284 = vmul.f32 %v1282, 0.5
        %v1285 = vmul.f32 %v1283, 0.5
        %v1286 = vmul.f32 %v1282, %v1282
        %v1287 = vmul.f32 %v1283, %v1283
        %v1288 = vmul.f32 %v1286, %v1282
        %v1289 = vmul.f32 %v1287, %v1283
        %v1290 = vmul.f32 %v1288, 0.044715
        %v1291 = vmul.f32 %v1289, 0.044715
        %v1292 = vadd.f32 %v1282, %v1290
        %v1293 = vadd.f32 %v1283, %v1291
        %v1294 = vmul.f32 %v1292, 0.7978846
        %v1295 = vmul.f32 %v1293, 0.7978846
        %v1296 = vtanh.pop %v1294
        %v1297 = vtanh.pop %v1295
        %v1298 = vadd.f32 %v1296, 1.0
        %v1299 = vadd.f32 %v1297, 1.0
        %v1300 = vmul.f32 %v1284, %v1298
        %v1301 = vmul.f32 %v1285, %v1299
        %1305 = vrot.lane.b32.xlu0 %v1300, 127
        %v1306 = vpop.permute.xlu0 %1305
        %1307 = vrot.lane.b32.xlu0 %v1301, 127
        %v1308 = vpop.permute.xlu0 %1307
        %1309 = vrot.lane.b32.xlu0 0.0, 127
        %v1310 = vpop.permute.xlu0 %1309
        %v1311 = vsel %vm974, %v1306, %v1308
        %v1312 = vsel %vm974, %v1308, %v1310
        %v1315 = vmax.f32 %v1300, %v1311
        %v1316 = vmax.f32 %v1301, %v1312
        %1317 = vrot.lane.b32.xlu0 %v1300, 126
        %v1318 = vpop.permute.xlu0 %1317
        %1319 = vrot.lane.b32.xlu0 %v1301, 126
        %v1320 = vpop.permute.xlu0 %1319
        %1321 = vrot.lane.b32.xlu0 0.0, 126
        %v1322 = vpop.permute.xlu0 %1321
        %v1323 = vsel %vm988, %v1318, %v1320
        %v1324 = vsel %vm988, %v1320, %v1322
        %v1327 = vmax.f32 %v1315, %v1323
        %v1328 = vmax.f32 %v1316, %v1324
        %1329 = vrot.lane.b32.xlu0 %v1300, 125
        %v1330 = vpop.permute.xlu0 %1329
        %1331 = vrot.lane.b32.xlu0 %v1301, 125
        %v1332 = vpop.permute.xlu0 %1331
        %1333 = vrot.lane.b32.xlu0 0.0, 125
        %v1334 = vpop.permute.xlu0 %1333
        %vm1335 = vcmask 1022976
        %v1336 = vsel %vm1335, %v1330, %v1332
        %v1337 = vsel %vm1335, %v1332, %v1334
        %v1340 = vmax.f32 %v1327, %v1336
        %v1341 = vmax.f32 %v1328, %v1337
        %v1342 = vpack.c.bf16 %v1340, %v1340
        %v1343 = vpack.c.bf16 %v1341, %v1341
        %v1360 = vunpack.c.l.b16 %v1121
        %v1361 = vunpack.c.l.b16 %v1122
        %v1362 = vunpack.c.l.b16 %v1123
        %v1363 = vunpack.c.l.b16 %v1124
        %v1364 = vunpack.c.l.b16 %v1125
        %v1365 = vunpack.c.l.b16 %v1126
        %v1366 = vunpack.c.l.b16 %v1127
        %v1367 = vunpack.c.l.b16 %v1128
        %v1368 = vunpack.c.l.b16 %v1129
        %v1369 = vunpack.c.l.b16 %v1130
        %v1370 = vunpack.c.l.b16 %v1131
        %v1371 = vunpack.c.l.b16 %v1132
        %v1372 = vunpack.c.l.b16 %v1133
        %v1373 = vunpack.c.l.b16 %v1134
        %v1374 = vunpack.c.l.b16 %v1135
        %v1375 = vunpack.c.l.b16 %v1136
        %v1376 = vpack.c.b16 %v1361, %v1360
        %v1377 = vpack.c.b16 %v1363, %v1362
        %v1378 = vpack.c.b16 %v1365, %v1364
        %v1379 = vpack.c.b16 %v1367, %v1366
        %v1380 = vpack.c.b16 %v1369, %v1368
        %v1381 = vpack.c.b16 %v1371, %v1370
        %v1382 = vpack.c.b16 %v1373, %v1372
        %v1383 = vpack.c.b16 %v1375, %v1374
        %1392 = vmatprep.subr.bf16.mxu0 0
        %1393 = vmatpush1.bf16.msra.mxu0 %v1376
        %1394 = vmatprep.subr.bf16.mxu0 0
        %1395 = vmatpush1.bf16.msra.mxu0 %v1377
        %1396 = vmatprep.subr.bf16.mxu0 0
        %1397 = vmatpush1.bf16.msra.mxu0 %v1378
        %1398 = vmatprep.subr.bf16.mxu0 0
        %1399 = vmatpush1.bf16.msra.mxu0 %v1379
        %1400 = vmatprep.subr.bf16.mxu0 0
        %1401 = vmatpush1.bf16.msra.mxu0 %v1380
        %1402 = vmatprep.subr.bf16.mxu0 0
        %1403 = vmatpush1.bf16.msra.mxu0 %v1381
        %1404 = vmatprep.subr.bf16.mxu0 0
        %1405 = vmatpush1.bf16.msra.mxu0 %v1382
        %1406 = vmatprep.subr.bf16.mxu0 0
        %1407 = vmatpush1.bf16.msra.mxu0 %v1383
        %1408 = vmatprep.subr.bf16.mxu0 0
        %1409 = vmatpush1.bf16.msra.mxu0 0
        %1410 = vmatprep.subr.bf16.mxu0 0
        %1411 = vmatpush1.bf16.msra.mxu0 0
        %1412 = vmatprep.subr.bf16.mxu0 0
        %1413 = vmatpush1.bf16.msra.mxu0 0
        %1414 = vmatprep.subr.bf16.mxu0 0
        %1415 = vmatpush1.bf16.msra.mxu0 0
        %1416 = vmatprep.subr.bf16.mxu0 0
        %1417 = vmatpush1.bf16.msra.mxu0 0
        %1418 = vmatprep.subr.bf16.mxu0 0
        %1419 = vmatpush1.bf16.msra.mxu0 0
        %1420 = vmatprep.subr.bf16.mxu0 0
        %1421 = vmatpush1.bf16.msra.mxu0 0
        %1422 = vmatprep.subr.bf16.mxu0 0
        %1423 = vmatpush1.bf16.msra.mxu0 0
        %1424 = vmatprep.mubr.bf16.mxu0 0
        %1425 = vmatmul.mubr.bf16.gmra.mrb[0].mxu0 %v1342
        %v1426 = vpop.f32.mrb[0].mxu0
        %v1427 = vadd.f32 0.0, %v1426
        %v1428 = vpop.f32.mrb[0].mxu0
        %v1429 = vpop.f32.mrb[0].mxu0
        %v1430 = vpop.f32.mrb[0].mxu0
        %1431 = vdwg.mxu0
        %1432 = vmatprep.subr.bf16.mxu0 0
        %1433 = vmatpush1.bf16.msra.mxu0 %v1376
        %1434 = vmatprep.subr.bf16.mxu0 0
        %1435 = vmatpush1.bf16.msra.mxu0 %v1377
        %1436 = vmatprep.subr.bf16.mxu0 0
        %1437 = vmatpush1.bf16.msra.mxu0 %v1378
        %1438 = vmatprep.subr.bf16.mxu0 0
        %1439 = vmatpush1.bf16.msra.mxu0 %v1379
        %1440 = vmatprep.subr.bf16.mxu0 0
        %1441 = vmatpush1.bf16.msra.mxu0 %v1380
        %1442 = vmatprep.subr.bf16.mxu0 0
        %1443 = vmatpush1.bf16.msra.mxu0 %v1381
        %1444 = vmatprep.subr.bf16.mxu0 0
        %1445 = vmatpush1.bf16.msra.mxu0 %v1382
        %1446 = vmatprep.subr.bf16.mxu0 0
        %1447 = vmatpush1.bf16.msra.mxu0 %v1383
        %1448 = vmatprep.subr.bf16.mxu0 0
        %1449 = vmatpush1.bf16.msra.mxu0 0
        %1450 = vmatprep.subr.bf16.mxu0 0
        %1451 = vmatpush1.bf16.msra.mxu0 0
        %1452 = vmatprep.subr.bf16.mxu0 0
        %1453 = vmatpush1.bf16.msra.mxu0 0
        %1454 = vmatprep.subr.bf16.mxu0 0
        %1455 = vmatpush1.bf16.msra.mxu0 0
        %1456 = vmatprep.subr.bf16.mxu0 0
        %1457 = vmatpush1.bf16.msra.mxu0 0
        %1458 = vmatprep.subr.bf16.mxu0 0
        %1459 = vmatpush1.bf16.msra.mxu0 0
        %1460 = vmatprep.subr.bf16.mxu0 0
        %1461 = vmatpush1.bf16.msra.mxu0 0
        %1462 = vmatprep.subr.bf16.mxu0 0
        %1463 = vmatpush1.bf16.msra.mxu0 0
        %1464 = vmatprep.mubr.bf16.mxu0 0
        %1465 = vmatmul.mubr.bf16.gmra.mrb[0].mxu0 %v1343
        %v1466 = vpop.f32.mrb[0].mxu0
        %v1467 = vadd.f32 0.0, %v1466
        %v1468 = vpop.f32.mrb[0].mxu0
        %v1469 = vpop.f32.mrb[0].mxu0
        %v1470 = vpop.f32.mrb[0].mxu0
        %1471 = vdwg.mxu0
        %1473 = vrot.lane.b32.xlu0 %v1467, 32
        %v1474 = vpop.permute.xlu0 %1473
        %vm1476 = vcmask 261120
        %v1477 = vsel %vm1476, %v1427, %v1474
        %v1478 = vld [vmem:[%s6] sm:$0xf]
        %v1479 = vld [vmem:[%s6 + $0x4] sm:$0xf]
        %v1480 = vld [vmem:[%s7] sm:$0xff]
        %v1481 = vld [vmem:[%s7 + $0x8] sm:$0xff]
        %v1482 = vld [vmem:[%s8] sm:$0xf]
        %v1483 = vld [vmem:[%s8 + $0x4] sm:$0xf]
        %v1484 = vld [vmem:[%s8 + $0x8] sm:$0xf]
        %v1485 = vld [vmem:[%s8 + $0xc] sm:$0xf]
        %v1486 = vld [vmem:[%s8 + $0x10] sm:$0xf]
        %v1487 = vld [vmem:[%s8 + $0x14] sm:$0xf]
        %v1488 = vld [vmem:[%s8 + $0x18] sm:$0xf]
        %v1489 = vld [vmem:[%s8 + $0x1c] sm:$0xf]
        %1491 = vrot.lane.b32.xlu0 %v1477, 1
        %v1492 = vpop.permute.xlu0 %1491
        %v1494 = vsel %vm900, 0.0, %v1492
        %vm1495 = vcmask 531456
        %v1496 = vsel %vm1495, %v1494, 0.0
        %vm1497 = vcmp.ge.s32.totalorder %v908, 32
        %vm1498 = vcmp.lt.s32.totalorder %v908, 33
        %vm1499 = vmand %vm1497, %vm1498
        %vm1500 = vmor %vm914, %vm1499
        %v1501 = vsel %vm1500, 1, 0
        %v1502 = vcvt.s32.f32 %v1501
        %v1503 = vsub.f32 1.0, %v1502
        %v1504 = vmul.f32 %v1496, %v1503
        %vm1505 = vcmp.ge.s32.totalorder %v908, 31
        %vm1506 = vcmp.lt.s32.totalorder %v908, 32
        %vm1507 = vmand %vm1505, %vm1506
        %vm1508 = vcmp.ge.s32.totalorder %v908, 63
        %vm1509 = vcmp.lt.s32.totalorder %v908, 64
        %vm1510 = vmand %vm1508, %vm1509
        %vm1511 = vmor %vm1507, %vm1510
        %v1512 = vsel %vm1511, 1, 0
        %v1513 = vcvt.s32.f32 %v1512
        %v1514 = vsub.f32 1.0, %v1513
        %1516 = vrot.lane.b32.xlu0 %v1514, 2
        %v1517 = vpop.permute.xlu0 %1516
        %v1519 = vmul.f32 %v1496, %v1517
        %1521 = vrot.lane.b32.xlu0 %v1496, 127
        %v1522 = vpop.permute.xlu0 %1521
        %1525 = vrot.lane.b32.xlu0 %v1519, 126
        %v1526 = vpop.permute.xlu0 %1525
        %v1528 = vpack.c.bf16 %v1522, %v1504
        %v1529 = vpack.c.bf16 %v1526, %v1526
        %v1532 = vunpack.c.l.b16 %v1478
        %v1533 = vunpack.c.l.b16 %v1479
        %v1534 = vpack.c.b16 %v1533, %v1532
        %v1536 = vsel %vm997, %v1534, 0
        %v1539 = vsel %vm1001, %v1529, 0
        %1541 = vmatprep.subr.bf16.mxu0 0
        %1542 = vmatpush1.bf16.msra.mxu0 %v1528
        %1543 = vmatprep.subr.bf16.mxu0 0
        %1544 = vmatpush1.bf16.msra.mxu0 %v1539
        %1545 = vmatprep.subr.bf16.mxu0 0
        %1546 = vmatpush1.bf16.msra.mxu0 0
        %1547 = vmatprep.subr.bf16.mxu0 0
        %1548 = vmatpush1.bf16.msra.mxu0 0
        %1549 = vmatprep.subr.bf16.mxu0 0
        %1550 = vmatpush1.bf16.msra.mxu0 0
        %1551 = vmatprep.subr.bf16.mxu0 0
        %1552 = vmatpush1.bf16.msra.mxu0 0
        %1553 = vmatprep.subr.bf16.mxu0 0
        %1554 = vmatpush1.bf16.msra.mxu0 0
        %1555 = vmatprep.subr.bf16.mxu0 0
        %1556 = vmatpush1.bf16.msra.mxu0 0
        %1557 = vmatprep.subr.bf16.mxu0 0
        %1558 = vmatpush1.bf16.msra.mxu0 0
        %1559 = vmatprep.subr.bf16.mxu0 0
        %1560 = vmatpush1.bf16.msra.mxu0 0
        %1561 = vmatprep.subr.bf16.mxu0 0
        %1562 = vmatpush1.bf16.msra.mxu0 0
        %1563 = vmatprep.subr.bf16.mxu0 0
        %1564 = vmatpush1.bf16.msra.mxu0 0
        %1565 = vmatprep.subr.bf16.mxu0 0
        %1566 = vmatpush1.bf16.msra.mxu0 0
        %1567 = vmatprep.subr.bf16.mxu0 0
        %1568 = vmatpush1.bf16.msra.mxu0 0
        %1569 = vmatprep.subr.bf16.mxu0 0
        %1570 = vmatpush1.bf16.msra.mxu0 0
        %1571 = vmatprep.subr.bf16.mxu0 0
        %1572 = vmatpush1.bf16.msra.mxu0 0
        %1573 = vmatprep.mubr.bf16.mxu0 0
        %1574 = vmatmul.mubr.bf16.gmra.mrb[0].mxu0 %v1536
        %v1575 = vpop.f32.mrb[0].mxu0
        %v1576 = vadd.f32 0.0, %v1575
        %v1577 = vpop.f32.mrb[0].mxu0
        %v1578 = vpop.f32.mrb[0].mxu0
        %v1579 = vadd.f32 0.0, %v1578
        %v1580 = vpop.f32.mrb[0].mxu0
        %1581 = vdwg.mxu0
        %vm1582 = vcmask 523264
        %v1583 = vsel %vm1582, %v1576, 0.0
        %v1584 = vsel %vm1582, %v1579, 0.0
        %v1585 = vadd.f32 %v1583, %v1584
        %v1586 = vrot.slane %v1585, 4
        %v1587 = vadd.f32 %v1585, %v1586
        %v1588 = vrot.slane %v1587, 2
        %v1589 = vadd.f32 %v1587, %v1588
        %v1590 = vrot.slane %v1589, 1
        %v1591 = vadd.f32 %v1589, %v1590
        %v1592 = vrcp.pop 16.0
        %v1593 = vmul.f32 %v1591, %v1592
        %v1594 = vsub.f32 %v1576, %v1593
        %v1595 = vsub.f32 %v1579, %v1593
        %v1596 = vmul.f32 %v1594, %v1594
        %v1597 = vmul.f32 %v1595, %v1595
        %v1598 = vsel %vm1582, %v1596, 0.0
        %v1599 = vsel %vm1582, %v1597, 0.0
        %v1600 = vadd.f32 %v1598, %v1599
        %v1601 = vrot.slane %v1600, 4
        %v1602 = vadd.f32 %v1600, %v1601
        %v1603 = vrot.slane %v1602, 2
        %v1604 = vadd.f32 %v1602, %v1603
        %v1605 = vrot.slane %v1604, 1
        %v1606 = vadd.f32 %v1604, %v1605
        %v1607 = vmul.f32 %v1606, %v1592
        %v1608 = vadd.f32 %v1607, 1e-05
        %v1609 = vrsqrt.pop %v1608
        %v1610 = vmul.f32 %v1594, %v1609
        %v1611 = vmul.f32 %v1595, %v1609
        %1613 = vset.pattern.permute.xlu0 0
        %1614 = vperm.xlu0 %1613, %v1480
        %v1615 = vpop.permute.xlu0 %1614
        %1618 = vset.pattern.permute.xlu0 0
        %1619 = vperm.xlu0 %1618, %v1481
        %v1620 = vpop.permute.xlu0 %1619
        %v1622 = vmul.f32 %v1610, %v1615
        %v1623 = vmul.f32 %v1611, %v1620
        %1624 = vset.pattern.permute.xlu0 1
        %1625 = vperm.xlu0 %1624, %v1480
        %v1626 = vpop.permute.xlu0 %1625
        %1628 = vset.pattern.permute.xlu0 1
        %1629 = vperm.xlu0 %1628, %v1481
        %v1630 = vpop.permute.xlu0 %1629
        %v1632 = vadd.f32 %v1622, %v1626
        %v1633 = vadd.f32 %v1623, %v1630
        %v1634 = vmul.f32 %v1632, 0.5
        %v1635 = vmul.f32 %v1633, 0.5
        %v1636 = vmul.f32 %v1632, %v1632
        %v1637 = vmul.f32 %v1633, %v1633
        %v1638 = vmul.f32 %v1636, %v1632
        %v1639 = vmul.f32 %v1637, %v1633
        %v1640 = vmul.f32 %v1638, 0.044715
        %v1641 = vmul.f32 %v1639, 0.044715
        %v1642 = vadd.f32 %v1632, %v1640
        %v1643 = vadd.f32 %v1633, %v1641
        %v1644 = vmul.f32 %v1642, 0.7978846
        %v1645 = vmul.f32 %v1643, 0.7978846
        %v1646 = vtanh.pop %v1644
        %v1647 = vtanh.pop %v1645
        %v1648 = vadd.f32 %v1646, 1.0
        %v1649 = vadd.f32 %v1647, 1.0
        %v1650 = vmul.f32 %v1634, %v1648
        %v1651 = vmul.f32 %v1635, %v1649
        %v1652 = vsel %vm1582, %v1650, 0.0
        %v1653 = vsel %vm1582, %v1651, 0.0
        %1656 = vrot.lane.b32.xlu0 %v1652, 127
        %v1657 = vpop.permute.xlu0 %1656
        %1658 = vrot.lane.b32.xlu0 %v1653, 127
        %v1659 = vpop.permute.xlu0 %1658
        %v1662 = vmax.f32 %v1652, %v1657
        %v1663 = vmax.f32 %v1653, %v1659
        %1664 = vrot.lane.b32.xlu0 %v1652, 126
        %v1665 = vpop.permute.xlu0 %1664
        %1666 = vrot.lane.b32.xlu0 %v1653, 126
        %v1667 = vpop.permute.xlu0 %1666
        %v1670 = vmax.f32 %v1662, %v1665
        %v1671 = vmax.f32 %v1663, %v1667
        %1672 = vrot.lane.b32.xlu0 %v1652, 125
        %v1673 = vpop.permute.xlu0 %1672
        %1674 = vrot.lane.b32.xlu0 %v1653, 125
        %v1675 = vpop.permute.xlu0 %1674
        %v1678 = vmax.f32 %v1670, %v1673
        %v1679 = vmax.f32 %v1671, %v1675
        %v1680 = vpack.c.bf16 %v1679, %v1678
        %v1689 = vunpack.c.l.b16 %v1482
        %v1690 = vunpack.c.l.b16 %v1483
        %v1691 = vunpack.c.l.b16 %v1484
        %v1692 = vunpack.c.l.b16 %v1485
        %v1693 = vunpack.c.l.b16 %v1486
        %v1694 = vunpack.c.l.b16 %v1487
        %v1695 = vunpack.c.l.b16 %v1488
        %v1696 = vunpack.c.l.b16 %v1489
        %v1697 = vpack.c.b16 %v1690, %v1689
        %v1698 = vpack.c.b16 %v1692, %v1691
        %v1699 = vpack.c.b16 %v1694, %v1693
        %v1700 = vpack.c.b16 %v1696, %v1695
        %v1706 = vsel %vm1582, %v1680, 0
        %1708 = vmatprep.subr.bf16.mxu0 0
        %1709 = vmatpush1.bf16.msra.mxu0 %v1697
        %1710 = vmatprep.subr.bf16.mxu0 0
        %1711 = vmatpush1.bf16.msra.mxu0 %v1698
        %1712 = vmatprep.subr.bf16.mxu0 0
        %1713 = vmatpush1.bf16.msra.mxu0 %v1699
        %1714 = vmatprep.subr.bf16.mxu0 0
        %1715 = vmatpush1.bf16.msra.mxu0 %v1700
        %1716 = vmatprep.subr.bf16.mxu0 0
        %1717 = vmatpush1.bf16.msra.mxu0 0
        %1718 = vmatprep.subr.bf16.mxu0 0
        %1719 = vmatpush1.bf16.msra.mxu0 0
        %1720 = vmatprep.subr.bf16.mxu0 0
        %1721 = vmatpush1.bf16.msra.mxu0 0
        %1722 = vmatprep.subr.bf16.mxu0 0
        %1723 = vmatpush1.bf16.msra.mxu0 0
        %1724 = vmatprep.subr.bf16.mxu0 0
        %1725 = vmatpush1.bf16.msra.mxu0 0
        %1726 = vmatprep.subr.bf16.mxu0 0
        %1727 = vmatpush1.bf16.msra.mxu0 0
        %1728 = vmatprep.subr.bf16.mxu0 0
        %1729 = vmatpush1.bf16.msra.mxu0 0
        %1730 = vmatprep.subr.bf16.mxu0 0
        %1731 = vmatpush1.bf16.msra.mxu0 0
        %1732 = vmatprep.subr.bf16.mxu0 0
        %1733 = vmatpush1.bf16.msra.mxu0 0
        %1734 = vmatprep.subr.bf16.mxu0 0
        %1735 = vmatpush1.bf16.msra.mxu0 0
        %1736 = vmatprep.subr.bf16.mxu0 0
        %1737 = vmatpush1.bf16.msra.mxu0 0
        %1738 = vmatprep.subr.bf16.mxu0 0
        %1739 = vmatpush1.bf16.msra.mxu0 0
        %1740 = vmatprep.mubr.bf16.mxu0 0
        %1741 = vmatmul.mubr.bf16.gmra.mrb[0].mxu0 %v1706
        %v1742 = vpop.f32.mrb[0].mxu0
        %v1743 = vadd.f32 0.0, %v1742
        %v1744 = vpop.f32.mrb[0].mxu0
        %v1745 = vpop.f32.mrb[0].mxu0
        %v1746 = vadd.f32 0.0, %v1745
        %v1747 = vpop.f32.mrb[0].mxu0
        %1748 = vdwg.mxu0
        %v1749 = vld [vmem:[#allocation9] sm:$0xf]
        %v1750 = vld [vmem:[#allocation9 + $0x4] sm:$0xf]
        %v1751 = vld [vmem:[%s10] sm:$0xff]
        %v1752 = vld [vmem:[%s10 + $0x8] sm:$0xff]
        %v1753 = vld [vmem:[%s11] sm:$0xf]
        %v1754 = vld [vmem:[%s11 + $0x4] sm:$0xf]
        %1757 = vrot.lane.b32.xlu0 %v1743, 1
        %v1758 = vpop.permute.xlu0 %1757
        %1759 = vrot.lane.b32.xlu0 %v1746, 1
        %v1760 = vpop.permute.xlu0 %1759
        %v1763 = vsel %vm900, 0.0, %v1758
        %v1764 = vsel %vm900, 0.0, %v1760
        %vm1765 = vcmask 138240
        %v1766 = vsel %vm1765, %v1763, 0.0
        %v1767 = vsel %vm1765, %v1764, 0.0
        %vm1768 = vcmp.ge.s32.totalorder %v908, 8
        %vm1769 = vcmp.lt.s32.totalorder %v908, 9
        %vm1770 = vmand %vm1768, %vm1769
        %vm1771 = vmor %vm914, %vm1770
        %v1772 = vsel %vm1771, 1, 0
        %v1773 = vcvt.s32.f32 %v1772
        %v1774 = vsub.f32 1.0, %v1773
        %v1775 = vmul.f32 %v1766, %v1774
        %v1776 = vmul.f32 %v1767, %v1774
        %vm1777 = vcmp.ge.s32.totalorder %v908, 7
        %vm1778 = vcmp.lt.s32.totalorder %v908, 8
        %vm1779 = vmand %vm1777, %vm1778
        %vm1780 = vcmp.ge.s32.totalorder %v908, 15
        %vm1781 = vcmp.lt.s32.totalorder %v908, 16
        %vm1782 = vmand %vm1780, %vm1781
        %vm1783 = vmor %vm1779, %vm1782
        %v1784 = vsel %vm1783, 1, 0
        %v1785 = vcvt.s32.f32 %v1784
        %v1786 = vsub.f32 1.0, %v1785
        %1788 = vrot.lane.b32.xlu0 %v1786, 2
        %v1789 = vpop.permute.xlu0 %1788
        %v1791 = vmul.f32 %v1766, %v1789
        %v1792 = vmul.f32 %v1767, %v1789
        %1795 = vrot.lane.b32.xlu0 %v1766, 127
        %v1796 = vpop.permute.xlu0 %1795
        %1797 = vrot.lane.b32.xlu0 %v1767, 127
        %v1798 = vpop.permute.xlu0 %1797
        %1803 = vrot.lane.b32.xlu0 %v1791, 126
        %v1804 = vpop.permute.xlu0 %1803
        %1805 = vrot.lane.b32.xlu0 %v1792, 126
        %v1806 = vpop.permute.xlu0 %1805
        %v1809 = vpack.c.bf16 %v1776, %v1775
        %v1810 = vpack.c.bf16 %v1798, %v1796
        %v1811 = vpack.c.bf16 %v1806, %v1804
        %v1814 = vunpack.c.l.b16 %v1749
        %v1815 = vunpack.c.l.b16 %v1750
        %v1816 = vpack.c.b16 %v1815, %v1814
        %vm1817 = vcmask 392192
        %v1819 = vsel %vm1817, %v1816, 0
        %1821 = vmatprep.subr.bf16.mxu0 0
        %1822 = vmatpush1.bf16.msra.mxu0 %v1809
        %1823 = vmatprep.subr.bf16.mxu0 0
        %1824 = vmatpush1.bf16.msra.mxu0 %v1810
        %1825 = vmatprep.subr.bf16.mxu0 0
        %1826 = vmatpush1.bf16.msra.mxu0 %v1811
        %1827 = vmatprep.subr.bf16.mxu0 0
        %1828 = vmatpush1.bf16.msra.mxu0 0
        %1829 = vmatprep.subr.bf16.mxu0 0
        %1830 = vmatpush1.bf16.msra.mxu0 0
        %1831 = vmatprep.subr.bf16.mxu0 0
        %1832 = vmatpush1.bf16.msra.mxu0 0
        %1833 = vmatprep.subr.bf16.mxu0 0
        %1834 = vmatpush1.bf16.msra.mxu0 0
        %1835 = vmatprep.subr.bf16.mxu0 0
        %1836 = vmatpush1.bf16.msra.mxu0 0
        %1837 = vmatprep.subr.bf16.mxu0 0
        %1838 = vmatpush1.bf16.msra.mxu0 0
        %1839 = vmatprep.subr.bf16.mxu0 0
        %1840 = vmatpush1.bf16.msra.mxu0 0
        %1841 = vmatprep.subr.bf16.mxu0 0
        %1842 = vmatpush1.bf16.msra.mxu0 0
        %1843 = vmatprep.subr.bf16.mxu0 0
        %1844 = vmatpush1.bf16.msra.mxu0 0
        %1845 = vmatprep.subr.bf16.mxu0 0
        %1846 = vmatpush1.bf16.msra.mxu0 0
        %1847 = vmatprep.subr.bf16.mxu0 0
        %1848 = vmatpush1.bf16.msra.mxu0 0
        %1849 = vmatprep.subr.bf16.mxu0 0
        %1850 = vmatpush1.bf16.msra.mxu0 0
        %1851 = vmatprep.subr.bf16.mxu0 0
        %1852 = vmatpush1.bf16.msra.mxu0 0
        %1853 = vmatprep.mubr.bf16.mxu0 0
        %1854 = vmatmul.mubr.bf16.gmra.mrb[0].mxu0 %v1819
        %v1855 = vpop.f32.mrb[0].mxu0
        %v1856 = vadd.f32 0.0, %v1855
        %v1857 = vpop.f32.mrb[0].mxu0
        %v1858 = vpop.f32.mrb[0].mxu0
        %v1859 = vadd.f32 0.0, %v1858
        %v1860 = vpop.f32.mrb[0].mxu0
        %1861 = vdwg.mxu0
        %vm1862 = vcmask 130048
        %v1863 = vsel %vm1862, %v1856, 0.0
        %v1864 = vsel %vm1862, %v1859, 0.0
        %v1865 = vadd.f32 %v1863, %v1864
        %v1866 = vrot.slane %v1865, 4
        %v1867 = vadd.f32 %v1865, %v1866
        %v1868 = vrot.slane %v1867, 2
        %v1869 = vadd.f32 %v1867, %v1868
        %v1870 = vrot.slane %v1869, 1
        %v1871 = vadd.f32 %v1869, %v1870
        %v1872 = vmul.f32 %v1871, %v1592
        %v1873 = vsub.f32 %v1856, %v1872
        %v1874 = vsub.f32 %v1859, %v1872
        %v1875 = vmul.f32 %v1873, %v1873
        %v1876 = vmul.f32 %v1874, %v1874
        %v1877 = vsel %vm1862, %v1875, 0.0
        %v1878 = vsel %vm1862, %v1876, 0.0
        %v1879 = vadd.f32 %v1877, %v1878
        %v1880 = vrot.slane %v1879, 4
        %v1881 = vadd.f32 %v1879, %v1880
        %v1882 = vrot.slane %v1881, 2
        %v1883 = vadd.f32 %v1881, %v1882
        %v1884 = vrot.slane %v1883, 1
        %v1885 = vadd.f32 %v1883, %v1884
        %v1886 = vmul.f32 %v1885, %v1592
        %v1887 = vadd.f32 %v1886, 1e-05
        %v1888 = vrsqrt.pop %v1887
        %v1889 = vmul.f32 %v1873, %v1888
        %v1890 = vmul.f32 %v1874, %v1888
        %1892 = vset.pattern.permute.xlu0 0
        %1893 = vperm.xlu0 %1892, %v1751
        %v1894 = vpop.permute.xlu0 %1893
        %1897 = vset.pattern.permute.xlu0 0
        %1898 = vperm.xlu0 %1897, %v1752
        %v1899 = vpop.permute.xlu0 %1898
        %v1901 = vmul.f32 %v1889, %v1894
        %v1902 = vmul.f32 %v1890, %v1899
        %1903 = vset.pattern.permute.xlu0 1
        %1904 = vperm.xlu0 %1903, %v1751
        %v1905 = vpop.permute.xlu0 %1904
        %1907 = vset.pattern.permute.xlu0 1
        %1908 = vperm.xlu0 %1907, %v1752
        %v1909 = vpop.permute.xlu0 %1908
        %v1911 = vadd.f32 %v1901, %v1905
        %v1912 = vadd.f32 %v1902, %v1909
        %v1913 = vmul.f32 %v1911, 0.5
        %v1914 = vmul.f32 %v1912, 0.5
        %v1915 = vmul.f32 %v1911, %v1911
        %v1916 = vmul.f32 %v1912, %v1912
        %v1917 = vmul.f32 %v1915, %v1911
        %v1918 = vmul.f32 %v1916, %v1912
        %v1919 = vmul.f32 %v1917, 0.044715
        %v1920 = vmul.f32 %v1918, 0.044715
        %v1921 = vadd.f32 %v1911, %v1919
        %v1922 = vadd.f32 %v1912, %v1920
        %v1923 = vmul.f32 %v1921, 0.7978846
        %v1924 = vmul.f32 %v1922, 0.7978846
        %v1925 = vtanh.pop %v1923
        %v1926 = vtanh.pop %v1924
        %v1927 = vadd.f32 %v1925, 1.0
        %v1928 = vadd.f32 %v1926, 1.0
        %v1929 = vmul.f32 %v1913, %v1927
        %v1930 = vmul.f32 %v1914, %v1928
        %v1931 = vsel %vm1862, %v1929, 0.0
        %v1932 = vsel %vm1862, %v1930, 0.0
        %1935 = vrot.lane.b32.xlu0 %v1931, 127
        %v1936 = vpop.permute.xlu0 %1935
        %1937 = vrot.lane.b32.xlu0 %v1932, 127
        %v1938 = vpop.permute.xlu0 %1937
        %v1941 = vmax.f32 %v1931, %v1936
        %v1942 = vmax.f32 %v1932, %v1938
        %1943 = vrot.lane.b32.xlu0 %v1931, 126
        %v1944 = vpop.permute.xlu0 %1943
        %1945 = vrot.lane.b32.xlu0 %v1932, 126
        %v1946 = vpop.permute.xlu0 %1945
        %v1949 = vmax.f32 %v1941, %v1944
        %v1950 = vmax.f32 %v1942, %v1946
        %1951 = vrot.lane.b32.xlu0 %v1931, 125
        %v1952 = vpop.permute.xlu0 %1951
        %1953 = vrot.lane.b32.xlu0 %v1932, 125
        %v1954 = vpop.permute.xlu0 %1953
        %v1957 = vmax.f32 %v1949, %v1952
        %v1958 = vmax.f32 %v1950, %v1954
        %v1959 = vpack.c.bf16 %v1958, %v1957
        %v1962 = vunpack.c.l.b16 %v1753
        %v1963 = vunpack.c.l.b16 %v1754
        %v1964 = vpack.c.b16 %v1963, %v1962
        %v1967 = vsel %vm1862, %v1959, 0
        %1969 = vmatprep.subr.bf16.mxu0 0
        %1970 = vmatpush1.bf16.msra.mxu0 %v1964
        %1971 = vmatprep.subr.bf16.mxu0 0
        %1972 = vmatpush1.bf16.msra.mxu0 0
        %1973 = vmatprep.subr.bf16.mxu0 0
        %1974 = vmatpush1.bf16.msra.mxu0 0
        %1975 = vmatprep.subr.bf16.mxu0 0
        %1976 = vmatpush1.bf16.msra.mxu0 0
        %1977 = vmatprep.subr.bf16.mxu0 0
        %1978 = vmatpush1.bf16.msra.mxu0 0
        %1979 = vmatprep.subr.bf16.mxu0 0
        %1980 = vmatpush1.bf16.msra.mxu0 0
        %1981 = vmatprep.subr.bf16.mxu0 0
        %1982 = vmatpush1.bf16.msra.mxu0 0
        %1983 = vmatprep.subr.bf16.mxu0 0
        %1984 = vmatpush1.bf16.msra.mxu0 0
        %1985 = vmatprep.subr.bf16.mxu0 0
        %1986 = vmatpush1.bf16.msra.mxu0 0
        %1987 = vmatprep.subr.bf16.mxu0 0
        %1988 = vmatpush1.bf16.msra.mxu0 0
        %1989 = vmatprep.subr.bf16.mxu0 0
        %1990 = vmatpush1.bf16.msra.mxu0 0
        %1991 = vmatprep.subr.bf16.mxu0 0
        %1992 = vmatpush1.bf16.msra.mxu0 0
        %1993 = vmatprep.subr.bf16.mxu0 0
        %1994 = vmatpush1.bf16.msra.mxu0 0
        %1995 = vmatprep.subr.bf16.mxu0 0
        %1996 = vmatpush1.bf16.msra.mxu0 0
        %1997 = vmatprep.subr.bf16.mxu0 0
        %1998 = vmatpush1.bf16.msra.mxu0 0
        %1999 = vmatprep.subr.bf16.mxu0 0
        %2000 = vmatpush1.bf16.msra.mxu0 0
        %2001 = vmatprep.mubr.bf16.mxu0 0
        %2002 = vmatmul.mubr.bf16.gmra.mrb[0].mxu0 %v1967
        %v2003 = vpop.f32.mrb[0].mxu0
        %v2004 = vadd.f32 0.0, %v2003
        %v2005 = vpop.f32.mrb[0].mxu0
        %v2006 = vpop.f32.mrb[0].mxu0
        %v2007 = vadd.f32 0.0, %v2006
        %v2008 = vpop.f32.mrb[0].mxu0
        %2009 = vdwg.mxu0
        %v2010 = vld [vmem:[#allocation10] sm:$0xf]
        %v2011 = vld [vmem:[#allocation10 + $0x4] sm:$0xf]
        %v2012 = vld [vmem:[%s13] sm:$0xff]
        %v2013 = vld [vmem:[%s13 + $0x8] sm:$0xff]
        %v2014 = vld [vmem:[#allocation12] sm:$0x3]
        %2017 = vrot.lane.b32.xlu0 %v2004, 1
        %v2018 = vpop.permute.xlu0 %2017
        %2019 = vrot.lane.b32.xlu0 %v2007, 1
        %v2020 = vpop.permute.xlu0 %2019
        %v2023 = vsel %vm900, 0.0, %v2018
        %v2024 = vsel %vm900, 0.0, %v2020
        %vm2025 = vcmask 39936
        %v2026 = vsel %vm2025, %v2023, 0.0
        %v2027 = vsel %vm2025, %v2024, 0.0
        %vm2028 = vcmp.ge.s32.totalorder %v908, 2
        %vm2029 = vcmp.lt.s32.totalorder %v908, 3
        %vm2030 = vmand %vm2028, %vm2029
        %vm2031 = vmor %vm914, %vm2030
        %v2032 = vsel %vm2031, 1, 0
        %v2033 = vcvt.s32.f32 %v2032
        %v2034 = vsub.f32 1.0, %v2033
        %v2035 = vmul.f32 %v2026, %v2034
        %v2036 = vmul.f32 %v2027, %v2034
        %vm2037 = vcmp.ge.s32.totalorder %v908, 1
        %vm2038 = vcmp.lt.s32.totalorder %v908, 2
        %vm2039 = vmand %vm2037, %vm2038
        %vm2040 = vcmp.ge.s32.totalorder %v908, 3
        %vm2041 = vcmp.lt.s32.totalorder %v908, 4
        %vm2042 = vmand %vm2040, %vm2041
        %vm2043 = vmor %vm2039, %vm2042
        %v2044 = vsel %vm2043, 1, 0
        %v2045 = vcvt.s32.f32 %v2044
        %v2046 = vsub.f32 1.0, %v2045
        %2048 = vrot.lane.b32.xlu0 %v2046, 2
        %v2049 = vpop.permute.xlu0 %2048
        %v2051 = vmul.f32 %v2026, %v2049
        %v2052 = vmul.f32 %v2027, %v2049
        %2055 = vrot.lane.b32.xlu0 %v2026, 127
        %v2056 = vpop.permute.xlu0 %2055
        %2057 = vrot.lane.b32.xlu0 %v2027, 127
        %v2058 = vpop.permute.xlu0 %2057
        %2063 = vrot.lane.b32.xlu0 %v2051, 126
        %v2064 = vpop.permute.xlu0 %2063
        %2065 = vrot.lane.b32.xlu0 %v2052, 126
        %v2066 = vpop.permute.xlu0 %2065
        %v2069 = vpack.c.bf16 %v2036, %v2035
        %v2070 = vpack.c.bf16 %v2058, %v2056
        %v2071 = vpack.c.bf16 %v2066, %v2064
        %v2074 = vunpack.c.l.b16 %v2010
        %v2075 = vunpack.c.l.b16 %v2011
        %v2076 = vpack.c.b16 %v2075, %v2074
        %v2078 = vsel %vm1817, %v2076, 0
        %2080 = vmatprep.subr.bf16.mxu0 0
        %2081 = vmatpush1.bf16.msra.mxu0 %v2069
        %2082 = vmatprep.subr.bf16.mxu0 0
        %2083 = vmatpush1.bf16.msra.mxu0 %v2070
        %2084 = vmatprep.subr.bf16.mxu0 0
        %2085 = vmatpush1.bf16.msra.mxu0 %v2071
        %2086 = vmatprep.subr.bf16.mxu0 0
        %2087 = vmatpush1.bf16.msra.mxu0 0
        %2088 = vmatprep.subr.bf16.mxu0 0
        %2089 = vmatpush1.bf16.msra.mxu0 0
        %2090 = vmatprep.subr.bf16.mxu0 0
        %2091 = vmatpush1.bf16.msra.mxu0 0
        %2092 = vmatprep.subr.bf16.mxu0 0
        %2093 = vmatpush1.bf16.msra.mxu0 0
        %2094 = vmatprep.subr.bf16.mxu0 0
        %2095 = vmatpush1.bf16.msra.mxu0 0
        %2096 = vmatprep.subr.bf16.mxu0 0
        %2097 = vmatpush1.bf16.msra.mxu0 0
        %2098 = vmatprep.subr.bf16.mxu0 0
        %2099 = vmatpush1.bf16.msra.mxu0 0
        %2100 = vmatprep.subr.bf16.mxu0 0
        %2101 = vmatpush1.bf16.msra.mxu0 0
        %2102 = vmatprep.subr.bf16.mxu0 0
        %2103 = vmatpush1.bf16.msra.mxu0 0
        %2104 = vmatprep.subr.bf16.mxu0 0
        %2105 = vmatpush1.bf16.msra.mxu0 0
        %2106 = vmatprep.subr.bf16.mxu0 0
        %2107 = vmatpush1.bf16.msra.mxu0 0
        %2108 = vmatprep.subr.bf16.mxu0 0
        %2109 = vmatpush1.bf16.msra.mxu0 0
        %2110 = vmatprep.subr.bf16.mxu0 0
        %2111 = vmatpush1.bf16.msra.mxu0 0
        %2112 = vmatprep.mubr.bf16.mxu0 0
        %2113 = vmatmul.mubr.bf16.gmra.mrb[0].mxu0 %v2078
        %v2114 = vpop.f32.mrb[0].mxu0
        %v2115 = vadd.f32 0.0, %v2114
        %v2116 = vpop.f32.mrb[0].mxu0
        %v2117 = vpop.f32.mrb[0].mxu0
        %v2118 = vadd.f32 0.0, %v2117
        %v2119 = vpop.f32.mrb[0].mxu0
        %2120 = vdwg.mxu0
        %vm2121 = vcmask 31744
        %v2122 = vsel %vm2121, %v2115, 0.0
        %v2123 = vsel %vm2121, %v2118, 0.0
        %v2124 = vadd.f32 %v2122, %v2123
        %v2125 = vrot.slane %v2124, 4
        %v2126 = vadd.f32 %v2124, %v2125
        %v2127 = vrot.slane %v2126, 2
        %v2128 = vadd.f32 %v2126, %v2127
        %v2129 = vrot.slane %v2128, 1
        %v2130 = vadd.f32 %v2128, %v2129
        %v2131 = vmul.f32 %v2130, %v1592
        %v2132 = vsub.f32 %v2115, %v2131
        %v2133 = vsub.f32 %v2118, %v2131
        %v2134 = vmul.f32 %v2132, %v2132
        %v2135 = vmul.f32 %v2133, %v2133
        %v2136 = vsel %vm2121, %v2134, 0.0
        %v2137 = vsel %vm2121, %v2135, 0.0
        %v2138 = vadd.f32 %v2136, %v2137
        %v2139 = vrot.slane %v2138, 4
        %v2140 = vadd.f32 %v2138, %v2139
        %v2141 = vrot.slane %v2140, 2
        %v2142 = vadd.f32 %v2140, %v2141
        %v2143 = vrot.slane %v2142, 1
        %v2144 = vadd.f32 %v2142, %v2143
        %v2145 = vmul.f32 %v2144, %v1592
        %v2146 = vadd.f32 %v2145, 1e-05
        %v2147 = vrsqrt.pop %v2146
        %v2148 = vmul.f32 %v2132, %v2147
        %v2149 = vmul.f32 %v2133, %v2147
        %2151 = vset.pattern.permute.xlu0 0
        %2152 = vperm.xlu0 %2151, %v2012
        %v2153 = vpop.permute.xlu0 %2152
        %2156 = vset.pattern.permute.xlu0 0
        %2157 = vperm.xlu0 %2156, %v2013
        %v2158 = vpop.permute.xlu0 %2157
        %v2160 = vmul.f32 %v2148, %v2153
        %v2161 = vmul.f32 %v2149, %v2158
        %2162 = vset.pattern.permute.xlu0 1
        %2163 = vperm.xlu0 %2162, %v2012
        %v2164 = vpop.permute.xlu0 %2163
        %2166 = vset.pattern.permute.xlu0 1
        %2167 = vperm.xlu0 %2166, %v2013
        %v2168 = vpop.permute.xlu0 %2167
        %v2170 = vadd.f32 %v2160, %v2164
        %v2171 = vadd.f32 %v2161, %v2168
        %v2172 = vmul.f32 %v2170, 0.5
        %v2173 = vmul.f32 %v2171, 0.5
        %v2174 = vmul.f32 %v2170, %v2170
        %v2175 = vmul.f32 %v2171, %v2171
        %v2176 = vmul.f32 %v2174, %v2170
        %v2177 = vmul.f32 %v2175, %v2171
        %v2178 = vmul.f32 %v2176, 0.044715
        %v2179 = vmul.f32 %v2177, 0.044715
        %v2180 = vadd.f32 %v2170, %v2178
        %v2181 = vadd.f32 %v2171, %v2179
        %v2182 = vmul.f32 %v2180, 0.7978846
        %v2183 = vmul.f32 %v2181, 0.7978846
        %v2184 = vtanh.pop %v2182
        %v2185 = vtanh.pop %v2183
        %v2186 = vadd.f32 %v2184, 1.0
        %v2187 = vadd.f32 %v2185, 1.0
        %v2188 = vmul.f32 %v2172, %v2186
        %v2189 = vmul.f32 %v2173, %v2187
        %v2190 = vpack.c.bf16 %v2189, %v2188
        %2192 = vrot.lane.b32.xlu0 %v2190, 1
        %v2193 = vpop.permute.xlu0 %2192
        %2194 = vrot.lane.b32.xlu0 %v2190, 2
        %v2195 = vpop.permute.xlu0 %2194
        %v2198 = vsel %vm900, %v2190, %v2193
        %vm2199 = vcmask 23552
        %v2201 = vsel %vm2199, %v2198, %v2195
        %v2202 = vsel %vm2121, %v2201, 0
        %vm2204 = vcmask 1041408
        %v2206 = vsel %vm2204, %v2014, 0
        %2208 = vmatprep.subr.bf16.mxu0 0
        %2209 = vmatpush1.bf16.msra.mxu0 %v2206
        %2210 = vmatprep.subr.bf16.mxu0 0
        %2211 = vmatpush1.bf16.msra.mxu0 0
        %2212 = vmatprep.subr.bf16.mxu0 0
        %2213 = vmatpush1.bf16.msra.mxu0 0
        %2214 = vmatprep.subr.bf16.mxu0 0
        %2215 = vmatpush1.bf16.msra.mxu0 0
        %2216 = vmatprep.subr.bf16.mxu0 0
        %2217 = vmatpush1.bf16.msra.mxu0 0
        %2218 = vmatprep.subr.bf16.mxu0 0
        %2219 = vmatpush1.bf16.msra.mxu0 0
        %2220 = vmatprep.subr.bf16.mxu0 0
        %2221 = vmatpush1.bf16.msra.mxu0 0
        %2222 = vmatprep.subr.bf16.mxu0 0
        %2223 = vmatpush1.bf16.msra.mxu0 0
        %2224 = vmatprep.subr.bf16.mxu0 0
        %2225 = vmatpush1.bf16.msra.mxu0 0
        %2226 = vmatprep.subr.bf16.mxu0 0
        %2227 = vmatpush1.bf16.msra.mxu0 0
        %2228 = vmatprep.subr.bf16.mxu0 0
        %2229 = vmatpush1.bf16.msra.mxu0 0
        %2230 = vmatprep.subr.bf16.mxu0 0
        %2231 = vmatpush1.bf16.msra.mxu0 0
        %2232 = vmatprep.subr.bf16.mxu0 0
        %2233 = vmatpush1.bf16.msra.mxu0 0
        %2234 = vmatprep.subr.bf16.mxu0 0
        %2235 = vmatpush1.bf16.msra.mxu0 0
        %2236 = vmatprep.subr.bf16.mxu0 0
        %2237 = vmatpush1.bf16.msra.mxu0 0
        %2238 = vmatprep.subr.bf16.mxu0 0
        %2239 = vmatpush1.bf16.msra.mxu0 0
        %2240 = vmatprep.mubr.bf16.mxu0 0
        %2241 = vmatmul.mubr.bf16.gmra.mrb[0].mxu0 %v2202
        %v2242 = vpop.f32.mrb[0].mxu0
        %v2243 = vadd.f32 0.0, %v2242
        %v2244 = vpop.f32.mrb[0].mxu0
        %v2245 = vpop.f32.mrb[0].mxu0
        %v2246 = vadd.f32 0.0, %v2245
        %v2247 = vpop.f32.mrb[0].mxu0
        %2248 = vdwg.mxu0
        %2249 = vrot.lane.b32.xlu0 %v2190, 126
        %v2250 = vpop.permute.xlu0 %2249
        %2251 = vrot.lane.b32.xlu0 %v2190, 127
        %v2252 = vpop.permute.xlu0 %2251
        %v2255 = vsel %vm900, %v2250, %v2252
        %v2256 = vsel %vm2199, %v2255, %v2190
        %v2257 = vsel %vm2121, %v2256, 0
        %2259 = vmatprep.subr.bf16.mxu0 0
        %2260 = vmatpush1.bf16.msra.mxu0 %v2206
        %2261 = vmatprep.subr.bf16.mxu0 0
        %2262 = vmatpush1.bf16.msra.mxu0 0
        %2263 = vmatprep.subr.bf16.mxu0 0
        %2264 = vmatpush1.bf16.msra.mxu0 0
        %2265 = vmatprep.subr.bf16.mxu0 0
        %2266 = vmatpush1.bf16.msra.mxu0 0
        %2267 = vmatprep.subr.bf16.mxu0 0
        %2268 = vmatpush1.bf16.msra.mxu0 0
        %2269 = vmatprep.subr.bf16.mxu0 0
        %2270 = vmatpush1.bf16.msra.mxu0 0
        %2271 = vmatprep.subr.bf16.mxu0 0
        %2272 = vmatpush1.bf16.msra.mxu0 0
        %2273 = vmatprep.subr.bf16.mxu0 0
        %2274 = vmatpush1.bf16.msra.mxu0 0
        %2275 = vmatprep.subr.bf16.mxu0 0
        %2276 = vmatpush1.bf16.msra.mxu0 0
        %2277 = vmatprep.subr.bf16.mxu0 0
        %2278 = vmatpush1.bf16.msra.mxu0 0
        %2279 = vmatprep.subr.bf16.mxu0 0
        %2280 = vmatpush1.bf16.msra.mxu0 0
        %2281 = vmatprep.subr.bf16.mxu0 0
        %2282 = vmatpush1.bf16.msra.mxu0 0
        %2283 = vmatprep.subr.bf16.mxu0 0
        %2284 = vmatpush1.bf16.msra.mxu0 0
        %2285 = vmatprep.subr.bf16.mxu0 0
        %2286 = vmatpush1.bf16.msra.mxu0 0
        %2287 = vmatprep.subr.bf16.mxu0 0
        %2288 = vmatpush1.bf16.msra.mxu0 0
        %2289 = vmatprep.subr.bf16.mxu0 0
        %2290 = vmatpush1.bf16.msra.mxu0 0
        %2291 = vmatprep.mubr.bf16.mxu0 0
        %2292 = vmatmul.mubr.bf16.gmra.mrb[0].mxu0 %v2257
        %v2293 = vpop.f32.mrb[0].mxu0
        %v2294 = vadd.f32 0.0, %v2293
        %v2295 = vpop.f32.mrb[0].mxu0
        %v2296 = vpop.f32.mrb[0].mxu0
        %v2297 = vadd.f32 0.0, %v2296
        %v2298 = vpop.f32.mrb[0].mxu0
        %2299 = vdwg.mxu0
        %2302 = vrot.lane.b32.xlu0 %v2294, 8
        %v2303 = vpop.permute.xlu0 %2302
        %2304 = vrot.lane.b32.xlu0 %v2297, 8
        %v2305 = vpop.permute.xlu0 %2304
        %vm2308 = vcmask 64512
        %v2309 = vsel %vm2308, %v2243, %v2303
        %v2310 = vsel %vm2308, %v2246, %v2305
        %v2311 = vld [vmem:[#allocation13] sm:$0xf]
        %v2312 = vld [vmem:[%s16] sm:$0xff]
        %v2313 = vld [vmem:[#allocation15] sm:$0xf]
        %v2314 = vld [vmem:[#allocation15 + $0x4] sm:$0x1]
        %2317 = vrot.lane.b32.xlu0 %v2309, 1
        %v2318 = vpop.permute.xlu0 %2317
        %2319 = vrot.lane.b32.xlu0 %v2310, 1
        %v2320 = vpop.permute.xlu0 %2319
        %v2323 = vsel %vm900, 0.0, %v2318
        %v2324 = vsel %vm900, 0.0, %v2320
        %v2325 = vsel %vm1765, %v2323, 0.0
        %v2326 = vsel %vm1765, %v2324, 0.0
        %v2327 = vmul.f32 %v2325, %v1774
        %v2328 = vmul.f32 %v2326, %v1774
        %v2329 = vmul.f32 %v2325, %v1789
        %v2330 = vmul.f32 %v2326, %v1789
        %2333 = vrot.lane.b32.xlu0 %v2325, 127
        %v2334 = vpop.permute.xlu0 %2333
        %2335 = vrot.lane.b32.xlu0 %v2326, 127
        %v2336 = vpop.permute.xlu0 %2335
        %2341 = vrot.lane.b32.xlu0 %v2329, 126
        %v2342 = vpop.permute.xlu0 %2341
        %2343 = vrot.lane.b32.xlu0 %v2330, 126
        %v2344 = vpop.permute.xlu0 %2343
        %v2347 = vpack.c.bf16 %v2328, %v2327
        %v2348 = vpack.c.bf16 %v2336, %v2334
        %v2349 = vpack.c.bf16 %v2344, %v2342
        %vm2350 = vcmask 785408
        %v2352 = vsel %vm2350, %v2311, 0
        %2354 = vmatprep.subr.bf16.mxu0 0
        %2355 = vmatpush1.bf16.msra.mxu0 %v2347
        %2356 = vmatprep.subr.bf16.mxu0 0
        %2357 = vmatpush1.bf16.msra.mxu0 %v1809
        %2358 = vmatprep.subr.bf16.mxu0 0
        %2359 = vmatpush1.bf16.msra.mxu0 %v2348
        %2360 = vmatprep.subr.bf16.mxu0 0
        %2361 = vmatpush1.bf16.msra.mxu0 %v1810
        %2362 = vmatprep.subr.bf16.mxu0 0
        %2363 = vmatpush1.bf16.msra.mxu0 %v2349
        %2364 = vmatprep.subr.bf16.mxu0 0
        %2365 = vmatpush1.bf16.msra.mxu0 %v1811
        %2366 = vmatprep.subr.bf16.mxu0 0
        %2367 = vmatpush1.bf16.msra.mxu0 0
        %2368 = vmatprep.subr.bf16.mxu0 0
        %2369 = vmatpush1.bf16.msra.mxu0 0
        %2370 = vmatprep.subr.bf16.mxu0 0
        %2371 = vmatpush1.bf16.msra.mxu0 0
        %2372 = vmatprep.subr.bf16.mxu0 0
        %2373 = vmatpush1.bf16.msra.mxu0 0
        %2374 = vmatprep.subr.bf16.mxu0 0
        %2375 = vmatpush1.bf16.msra.mxu0 0
        %2376 = vmatprep.subr.bf16.mxu0 0
        %2377 = vmatpush1.bf16.msra.mxu0 0
        %2378 = vmatprep.subr.bf16.mxu0 0
        %2379 = vmatpush1.bf16.msra.mxu0 0
        %2380 = vmatprep.subr.bf16.mxu0 0
        %2381 = vmatpush1.bf16.msra.mxu0 0
        %2382 = vmatprep.subr.bf16.mxu0 0
        %2383 = vmatpush1.bf16.msra.mxu0 0
        %2384 = vmatprep.subr.bf16.mxu0 0
        %2385 = vmatpush1.bf16.msra.mxu0 0
        %2386 = vmatprep.mubr.bf16.mxu0 0
        %2387 = vmatmul.mubr.bf16.gmra.mrb[0].mxu0 %v2352
        %v2388 = vpop.f32.mrb[0].mxu0
        %v2389 = vadd.f32 0.0, %v2388
        %v2390 = vpop.f32.mrb[0].mxu0
        %v2391 = vpop.f32.mrb[0].mxu0
        %v2392 = vpop.f32.mrb[0].mxu0
        %2393 = vdwg.mxu0
        %v2394 = vsel %vm1862, %v2389, 0.0
        %v2395 = vrot.slane %v2394, 4
        %v2396 = vadd.f32 %v2394, %v2395
        %v2397 = vrot.slane %v2396, 2
        %v2398 = vadd.f32 %v2396, %v2397
        %v2399 = vrot.slane %v2398, 1
        %v2400 = vadd.f32 %v2398, %v2399
        %v2401 = vmul.f32 %v2400, %v1061
        %v2402 = vsub.f32 %v2389, %v2401
        %v2403 = vmul.f32 %v2402, %v2402
        %v2404 = vsel %vm1862, %v2403, 0.0
        %v2405 = vrot.slane %v2404, 4
        %v2406 = vadd.f32 %v2404, %v2405
        %v2407 = vrot.slane %v2406, 2
        %v2408 = vadd.f32 %v2406, %v2407
        %v2409 = vrot.slane %v2408, 1
        %v2410 = vadd.f32 %v2408, %v2409
        %v2411 = vmul.f32 %v2410, %v1061
        %v2412 = vadd.f32 %v2411, 1e-05
        %v2413 = vrsqrt.pop %v2412
        %v2414 = vmul.f32 %v2402, %v2413
        %2416 = vset.pattern.permute.xlu0 0
        %2417 = vperm.xlu0 %2416, %v2312
        %v2418 = vpop.permute.xlu0 %2417
        %v2420 = vmul.f32 %v2414, %v2418
        %2421 = vset.pattern.permute.xlu0 1
        %2422 = vperm.xlu0 %2421, %v2312
        %v2423 = vpop.permute.xlu0 %2422
        %v2425 = vadd.f32 %v2420, %v2423
        %v2426 = vmul.f32 %v2425, 0.5
        %v2427 = vmul.f32 %v2425, %v2425
        %v2428 = vmul.f32 %v2427, %v2425
        %v2429 = vmul.f32 %v2428, 0.044715
        %v2430 = vadd.f32 %v2425, %v2429
        %v2431 = vmul.f32 %v2430, 0.7978846
        %v2432 = vtanh.pop %v2431
        %v2433 = vadd.f32 %v2432, 1.0
        %v2434 = vmul.f32 %v2426, %v2433
        %v2435 = vpack.c.bf16 %v2434, %v2434
        %2437 = vrot.lane.b32.xlu0 %v2435, 1
        %v2438 = vpop.permute.xlu0 %2437
        %2439 = vrot.lane.b32.xlu0 %v2435, 2
        %v2440 = vpop.permute.xlu0 %2439
        %v2443 = vsel %vm900, %v2435, %v2438
        %vm2444 = vcmask 72704
        %v2446 = vsel %vm2444, %v2443, %v2440
        %v2449 = vunpack.c.l.b16 %v2313
        %v2450 = vunpack.c.l.b16 %v2314
        %v2451 = vpack.c.b16 %v2450, %v2449
        %vm2452 = vcmask 80896
        %v2453 = vsel %vm2452, %v2446, 0
        %vm2455 = vcmask 1044480
        %v2457 = vsel %vm2455, %v2451, 0
        %2459 = vmatprep.subr.bf16.mxu0 0
        %2460 = vmatpush1.bf16.msra.mxu0 %v2457
        %2461 = vmatprep.subr.bf16.mxu0 0
        %2462 = vmatpush1.bf16.msra.mxu0 0
        %2463 = vmatprep.subr.bf16.mxu0 0
        %2464 = vmatpush1.bf16.msra.mxu0 0
        %2465 = vmatprep.subr.bf16.mxu0 0
        %2466 = vmatpush1.bf16.msra.mxu0 0
        %2467 = vmatprep.subr.bf16.mxu0 0
        %2468 = vmatpush1.bf16.msra.mxu0 0
        %2469 = vmatprep.subr.bf16.mxu0 0
        %2470 = vmatpush1.bf16.msra.mxu0 0
        %2471 = vmatprep.subr.bf16.mxu0 0
        %2472 = vmatpush1.bf16.msra.mxu0 0
        %2473 = vmatprep.subr.bf16.mxu0 0
        %2474 = vmatpush1.bf16.msra.mxu0 0
        %2475 = vmatprep.subr.bf16.mxu0 0
        %2476 = vmatpush1.bf16.msra.mxu0 0
        %2477 = vmatprep.subr.bf16.mxu0 0
        %2478 = vmatpush1.bf16.msra.mxu0 0
        %2479 = vmatprep.subr.bf16.mxu0 0
        %2480 = vmatpush1.bf16.msra.mxu0 0
        %2481 = vmatprep.subr.bf16.mxu0 0
        %2482 = vmatpush1.bf16.msra.mxu0 0
        %2483 = vmatprep.subr.bf16.mxu0 0
        %2484 = vmatpush1.bf16.msra.mxu0 0
        %2485 = vmatprep.subr.bf16.mxu0 0
        %2486 = vmatpush1.bf16.msra.mxu0 0
        %2487 = vmatprep.subr.bf16.mxu0 0
        %2488 = vmatpush1.bf16.msra.mxu0 0
        %2489 = vmatprep.subr.bf16.mxu0 0
        %2490 = vmatpush1.bf16.msra.mxu0 0
        %2491 = vmatprep.mubr.bf16.mxu0 0
        %2492 = vmatmul.mubr.bf16.gmra.mrb[0].mxu0 %v2453
        %v2493 = vpop.f32.mrb[0].mxu0
        %v2494 = vadd.f32 0.0, %v2493
        %v2495 = vpop.f32.mrb[0].mxu0
        %v2496 = vpop.f32.mrb[0].mxu0
        %v2497 = vpop.f32.mrb[0].mxu0
        %2498 = vdwg.mxu0
        %2499 = vrot.lane.b32.xlu0 %v2435, 120
        %v2500 = vpop.permute.xlu0 %2499
        %2501 = vrot.lane.b32.xlu0 %v2435, 121
        %v2502 = vpop.permute.xlu0 %2501
        %2503 = vrot.lane.b32.xlu0 %v2435, 122
        %v2504 = vpop.permute.xlu0 %2503
        %v2507 = vsel %vm900, %v2500, %v2502
        %v2509 = vsel %vm2444, %v2507, %v2504
        %v2510 = vsel %vm2452, %v2509, 0
        %2512 = vmatprep.subr.bf16.mxu0 0
        %2513 = vmatpush1.bf16.msra.mxu0 %v2457
        %2514 = vmatprep.subr.bf16.mxu0 0
        %2515 = vmatpush1.bf16.msra.mxu0 0
        %2516 = vmatprep.subr.bf16.mxu0 0
        %2517 = vmatpush1.bf16.msra.mxu0 0
        %2518 = vmatprep.subr.bf16.mxu0 0
        %2519 = vmatpush1.bf16.msra.mxu0 0
        %2520 = vmatprep.subr.bf16.mxu0 0
        %2521 = vmatpush1.bf16.msra.mxu0 0
        %2522 = vmatprep.subr.bf16.mxu0 0
        %2523 = vmatpush1.bf16.msra.mxu0 0
        %2524 = vmatprep.subr.bf16.mxu0 0
        %2525 = vmatpush1.bf16.msra.mxu0 0
        %2526 = vmatprep.subr.bf16.mxu0 0
        %2527 = vmatpush1.bf16.msra.mxu0 0
        %2528 = vmatprep.subr.bf16.mxu0 0
        %2529 = vmatpush1.bf16.msra.mxu0 0
        %2530 = vmatprep.subr.bf16.mxu0 0
        %2531 = vmatpush1.bf16.msra.mxu0 0
        %2532 = vmatprep.subr.bf16.mxu0 0
        %2533 = vmatpush1.bf16.msra.mxu0 0
        %2534 = vmatprep.subr.bf16.mxu0 0
        %2535 = vmatpush1.bf16.msra.mxu0 0
        %2536 = vmatprep.subr.bf16.mxu0 0
        %2537 = vmatpush1.bf16.msra.mxu0 0
        %2538 = vmatprep.subr.bf16.mxu0 0
        %2539 = vmatpush1.bf16.msra.mxu0 0
        %2540 = vmatprep.subr.bf16.mxu0 0
        %2541 = vmatpush1.bf16.msra.mxu0 0
        %2542 = vmatprep.subr.bf16.mxu0 0
        %2543 = vmatpush1.bf16.msra.mxu0 0
        %2544 = vmatprep.mubr.bf16.mxu0 0
        %2545 = vmatmul.mubr.bf16.gmra.mrb[0].mxu0 %v2510
        %v2546 = vpop.f32.mrb[0].mxu0
        %v2547 = vadd.f32 0.0, %v2546
        %v2548 = vpop.f32.mrb[0].mxu0
        %v2549 = vpop.f32.mrb[0].mxu0
        %v2550 = vpop.f32.mrb[0].mxu0
        %2551 = vdwg.mxu0
        %2553 = vrot.lane.b32.xlu0 %v2547, 32
        %v2554 = vpop.permute.xlu0 %2553
        %v2556 = vsel %vm1476, %v2494, %v2554
        %v2557 = vld [vmem:[#allocation16] sm:$0xf]
        %v2558 = vld [vmem:[%s19] sm:$0xff]
        %v2559 = vld [vmem:[#allocation18] sm:$0xf]
        %v2560 = vld [vmem:[#allocation18 + $0x4] sm:$0xf]
        %v2561 = vld [vmem:[#allocation18 + $0x8] sm:$0xf]
        %v2562 = vld [vmem:[#allocation18 + $0xc] sm:$0xf]
        %v2563 = vld [vmem:[#allocation18 + $0x10] sm:$0x1]
        %2565 = vrot.lane.b32.xlu0 %v2556, 1
        %v2566 = vpop.permute.xlu0 %2565
        %v2568 = vsel %vm900, 0.0, %v2566
        %v2569 = vsel %vm1495, %v2568, 0.0
        %v2570 = vmul.f32 %v2569, %v1503
        %v2571 = vmul.f32 %v2569, %v1517
        %2573 = vrot.lane.b32.xlu0 %v2569, 127
        %v2574 = vpop.permute.xlu0 %2573
        %2577 = vrot.lane.b32.xlu0 %v2571, 126
        %v2578 = vpop.permute.xlu0 %2577
        %v2580 = vpack.c.bf16 %v1504, %v2570
        %v2581 = vpack.c.bf16 %v1522, %v2574
        %v2582 = vpack.c.bf16 %v1526, %v2578
        %v2584 = vsel %vm1817, %v2557, 0
        %2586 = vmatprep.subr.bf16.mxu0 0
        %2587 = vmatpush1.bf16.msra.mxu0 %v2580
        %2588 = vmatprep.subr.bf16.mxu0 0
        %2589 = vmatpush1.bf16.msra.mxu0 %v2581
        %2590 = vmatprep.subr.bf16.mxu0 0
        %2591 = vmatpush1.bf16.msra.mxu0 %v2582
        %2592 = vmatprep.subr.bf16.mxu0 0
        %2593 = vmatpush1.bf16.msra.mxu0 0
        %2594 = vmatprep.subr.bf16.mxu0 0
        %2595 = vmatpush1.bf16.msra.mxu0 0
        %2596 = vmatprep.subr.bf16.mxu0 0
        %2597 = vmatpush1.bf16.msra.mxu0 0
        %2598 = vmatprep.subr.bf16.mxu0 0
        %2599 = vmatpush1.bf16.msra.mxu0 0
        %2600 = vmatprep.subr.bf16.mxu0 0
        %2601 = vmatpush1.bf16.msra.mxu0 0
        %2602 = vmatprep.subr.bf16.mxu0 0
        %2603 = vmatpush1.bf16.msra.mxu0 0
        %2604 = vmatprep.subr.bf16.mxu0 0
        %2605 = vmatpush1.bf16.msra.mxu0 0
        %2606 = vmatprep.subr.bf16.mxu0 0
        %2607 = vmatpush1.bf16.msra.mxu0 0
        %2608 = vmatprep.subr.bf16.mxu0 0
        %2609 = vmatpush1.bf16.msra.mxu0 0
        %2610 = vmatprep.subr.bf16.mxu0 0
        %2611 = vmatpush1.bf16.msra.mxu0 0
        %2612 = vmatprep.subr.bf16.mxu0 0
        %2613 = vmatpush1.bf16.msra.mxu0 0
        %2614 = vmatprep.subr.bf16.mxu0 0
        %2615 = vmatpush1.bf16.msra.mxu0 0
        %2616 = vmatprep.subr.bf16.mxu0 0
        %2617 = vmatpush1.bf16.msra.mxu0 0
        %2618 = vmatprep.mubr.bf16.mxu0 0
        %2619 = vmatmul.mubr.bf16.gmra.mrb[0].mxu0 %v2584
        %v2620 = vpop.f32.mrb[0].mxu0
        %v2621 = vadd.f32 0.0, %v2620
        %v2622 = vpop.f32.mrb[0].mxu0
        %v2623 = vpop.f32.mrb[0].mxu0
        %v2624 = vpop.f32.mrb[0].mxu0
        %2625 = vdwg.mxu0
        %v2626 = vsel %vm1582, %v2621, 0.0
        %v2627 = vrot.slane %v2626, 4
        %v2628 = vadd.f32 %v2626, %v2627
        %v2629 = vrot.slane %v2628, 2
        %v2630 = vadd.f32 %v2628, %v2629
        %v2631 = vrot.slane %v2630, 1
        %v2632 = vadd.f32 %v2630, %v2631
        %v2633 = vmul.f32 %v2632, %v1061
        %v2634 = vsub.f32 %v2621, %v2633
        %v2635 = vmul.f32 %v2634, %v2634
        %v2636 = vsel %vm1582, %v2635, 0.0
        %v2637 = vrot.slane %v2636, 4
        %v2638 = vadd.f32 %v2636, %v2637
        %v2639 = vrot.slane %v2638, 2
        %v2640 = vadd.f32 %v2638, %v2639
        %v2641 = vrot.slane %v2640, 1
        %v2642 = vadd.f32 %v2640, %v2641
        %v2643 = vmul.f32 %v2642, %v1061
        %v2644 = vadd.f32 %v2643, 1e-05
        %v2645 = vrsqrt.pop %v2644
        %v2646 = vmul.f32 %v2634, %v2645
        %2648 = vset.pattern.permute.xlu0 0
        %2649 = vperm.xlu0 %2648, %v2558
        %v2650 = vpop.permute.xlu0 %2649
        %v2652 = vmul.f32 %v2646, %v2650
        %2653 = vset.pattern.permute.xlu0 1
        %2654 = vperm.xlu0 %2653, %v2558
        %v2655 = vpop.permute.xlu0 %2654
        %v2657 = vadd.f32 %v2652, %v2655
        %v2658 = vmul.f32 %v2657, 0.5
        %v2659 = vmul.f32 %v2657, %v2657
        %v2660 = vmul.f32 %v2659, %v2657
        %v2661 = vmul.f32 %v2660, 0.044715
        %v2662 = vadd.f32 %v2657, %v2661
        %v2663 = vmul.f32 %v2662, 0.7978846
        %v2664 = vtanh.pop %v2663
        %v2665 = vadd.f32 %v2664, 1.0
        %v2666 = vmul.f32 %v2658, %v2665
        %v2667 = vpack.c.bf16 %v2666, %v2666
        %2669 = vrot.lane.b32.xlu0 %v2667, 1
        %v2670 = vpop.permute.xlu0 %2669
        %2671 = vrot.lane.b32.xlu0 %v2667, 2
        %v2672 = vpop.permute.xlu0 %2671
        %v2675 = vsel %vm900, %v2667, %v2670
        %vm2676 = vcmask 269312
        %v2678 = vsel %vm2676, %v2675, %v2672
        %v2684 = vunpack.c.l.b16 %v2559
        %v2685 = vunpack.c.l.b16 %v2560
        %v2686 = vunpack.c.l.b16 %v2561
        %v2687 = vunpack.c.l.b16 %v2562
        %v2688 = vunpack.c.l.b16 %v2563
        %v2689 = vpack.c.b16 %v2685, %v2684
        %v2690 = vpack.c.b16 %v2687, %v2686
        %v2691 = vpack.c.b16 %v2688, %v2688
        %vm2694 = vcmask 277504
        %v2695 = vsel %vm2694, %v2678, 0
        %vm2697 = vcmask 1040384
        %v2699 = vsel %vm2697, %v2691, 0
        %2701 = vmatprep.subr.bf16.mxu0 0
        %2702 = vmatpush1.bf16.msra.mxu0 %v2689
        %2703 = vmatprep.subr.bf16.mxu0 0
        %2704 = vmatpush1.bf16.msra.mxu0 %v2690
        %2705 = vmatprep.subr.bf16.mxu0 0
        %2706 = vmatpush1.bf16.msra.mxu0 %v2699
        %2707 = vmatprep.subr.bf16.mxu0 0
        %2708 = vmatpush1.bf16.msra.mxu0 0
        %2709 = vmatprep.subr.bf16.mxu0 0
        %2710 = vmatpush1.bf16.msra.mxu0 0
        %2711 = vmatprep.subr.bf16.mxu0 0
        %2712 = vmatpush1.bf16.msra.mxu0 0
        %2713 = vmatprep.subr.bf16.mxu0 0
        %2714 = vmatpush1.bf16.msra.mxu0 0
        %2715 = vmatprep.subr.bf16.mxu0 0
        %2716 = vmatpush1.bf16.msra.mxu0 0
        %2717 = vmatprep.subr.bf16.mxu0 0
        %2718 = vmatpush1.bf16.msra.mxu0 0
        %2719 = vmatprep.subr.bf16.mxu0 0
        %2720 = vmatpush1.bf16.msra.mxu0 0
        %2721 = vmatprep.subr.bf16.mxu0 0
        %2722 = vmatpush1.bf16.msra.mxu0 0
        %2723 = vmatprep.subr.bf16.mxu0 0
        %2724 = vmatpush1.bf16.msra.mxu0 0
        %2725 = vmatprep.subr.bf16.mxu0 0
        %2726 = vmatpush1.bf16.msra.mxu0 0
        %2727 = vmatprep.subr.bf16.mxu0 0
        %2728 = vmatpush1.bf16.msra.mxu0 0
        %2729 = vmatprep.subr.bf16.mxu0 0
        %2730 = vmatpush1.bf16.msra.mxu0 0
        %2731 = vmatprep.subr.bf16.mxu0 0
        %2732 = vmatpush1.bf16.msra.mxu0 0
        %2733 = vmatprep.mubr.bf16.mxu0 0
        %2734 = vmatmul.mubr.bf16.gmra.mrb[0].mxu0 %v2695
        %v2735 = vpop.f32.mrb[0].mxu0
        %v2736 = vadd.f32 0.0, %v2735
        %v2737 = vpop.f32.mrb[0].mxu0
        %v2738 = vpop.f32.mrb[0].mxu0
        %v2739 = vpop.f32.mrb[0].mxu0
        %2740 = vdwg.mxu0
        %2741 = vrot.lane.b32.xlu0 %v2667, 96
        %v2742 = vpop.permute.xlu0 %2741
        %2743 = vrot.lane.b32.xlu0 %v2667, 97
        %v2744 = vpop.permute.xlu0 %2743
        %2745 = vrot.lane.b32.xlu0 %v2667, 98
        %v2746 = vpop.permute.xlu0 %2745
        %v2749 = vsel %vm900, %v2742, %v2744
        %v2751 = vsel %vm2676, %v2749, %v2746
        %v2752 = vsel %vm2694, %v2751, 0
        %2754 = vmatprep.subr.bf16.mxu0 0
        %2755 = vmatpush1.bf16.msra.mxu0 %v2689
        %2756 = vmatprep.subr.bf16.mxu0 0
        %2757 = vmatpush1.bf16.msra.mxu0 %v2690
        %2758 = vmatprep.subr.bf16.mxu0 0
        %2759 = vmatpush1.bf16.msra.mxu0 %v2699
        %2760 = vmatprep.subr.bf16.mxu0 0
        %2761 = vmatpush1.bf16.msra.mxu0 0
        %2762 = vmatprep.subr.bf16.mxu0 0
        %2763 = vmatpush1.bf16.msra.mxu0 0
        %2764 = vmatprep.subr.bf16.mxu0 0
        %2765 = vmatpush1.bf16.msra.mxu0 0
        %2766 = vmatprep.subr.bf16.mxu0 0
        %2767 = vmatpush1.bf16.msra.mxu0 0
        %2768 = vmatprep.subr.bf16.mxu0 0
        %2769 = vmatpush1.bf16.msra.mxu0 0
        %2770 = vmatprep.subr.bf16.mxu0 0
        %2771 = vmatpush1.bf16.msra.mxu0 0
        %2772 = vmatprep.subr.bf16.mxu0 0
        %2773 = vmatpush1.bf16.msra.mxu0 0
        %2774 = vmatprep.subr.bf16.mxu0 0
        %2775 = vmatpush1.bf16.msra.mxu0 0
        %2776 = vmatprep.subr.bf16.mxu0 0
        %2777 = vmatpush1.bf16.msra.mxu0 0
        %2778 = vmatprep.subr.bf16.mxu0 0
        %2779 = vmatpush1.bf16.msra.mxu0 0
        %2780 = vmatprep.subr.bf16.mxu0 0
        %2781 = vmatpush1.bf16.msra.mxu0 0
        %2782 = vmatprep.subr.bf16.mxu0 0
        %2783 = vmatpush1.bf16.msra.mxu0 0
        %2784 = vmatprep.subr.bf16.mxu0 0
        %2785 = vmatpush1.bf16.msra.mxu0 0
        %2786 = vmatprep.mubr.bf16.mxu0 0
        %2787 = vmatmul.mubr.bf16.gmra.mrb[0].mxu0 %v2752
        %v2788 = vpop.f32.mrb[0].mxu0
        %v2789 = vadd.f32 0.0, %v2788
        %v2790 = vpop.f32.mrb[0].mxu0
        %v2791 = vpop.f32.mrb[0].mxu0
        %v2792 = vpop.f32.mrb[0].mxu0
        %2793 = vdwg.mxu0
        %v2794 = vld [vmem:[#allocation19] sm:$0xf]
        %v2795 = vld [vmem:[#allocation21] sm:$0xff]
        %v2796 = vpack.c.bf16 %v1117, %v2736
        %v2797 = vpack.c.bf16 %v1118, %v2789
        %2799 = vset.pattern.permute.xlu0 0
        %2800 = vperm.xlu0 %2799, %v2795
        %v2801 = vpop.permute.xlu0 %2800
        %v2804 = vsel %vm1862, %v2794, 0
        %2806 = vmatprep.subr.bf16.mxu0 %v2797
        %2807 = vmatpush1.bf16.msra.mxu0 %v2796
        %2808 = vmatprep.subr.bf16.mxu0 0
        %2809 = vmatpush1.bf16.msra.mxu0 0
        %2810 = vmatprep.subr.bf16.mxu0 0
        %2811 = vmatpush1.bf16.msra.mxu0 0
        %2812 = vmatprep.subr.bf16.mxu0 0
        %2813 = vmatpush1.bf16.msra.mxu0 0
        %2814 = vmatprep.subr.bf16.mxu0 0
        %2815 = vmatpush1.bf16.msra.mxu0 0
        %2816 = vmatprep.subr.bf16.mxu0 0
        %2817 = vmatpush1.bf16.msra.mxu0 0
        %2818 = vmatprep.subr.bf16.mxu0 0
        %2819 = vmatpush1.bf16.msra.mxu0 0
        %2820 = vmatprep.subr.bf16.mxu0 0
        %2821 = vmatpush1.bf16.msra.mxu0 0
        %2822 = vmatprep.subr.bf16.mxu0 0
        %2823 = vmatpush1.bf16.msra.mxu0 0
        %2824 = vmatprep.subr.bf16.mxu0 0
        %2825 = vmatpush1.bf16.msra.mxu0 0
        %2826 = vmatprep.subr.bf16.mxu0 0
        %2827 = vmatpush1.bf16.msra.mxu0 0
        %2828 = vmatprep.subr.bf16.mxu0 0
        %2829 = vmatpush1.bf16.msra.mxu0 0
        %2830 = vmatprep.subr.bf16.mxu0 0
        %2831 = vmatpush1.bf16.msra.mxu0 0
        %2832 = vmatprep.subr.bf16.mxu0 0
        %2833 = vmatpush1.bf16.msra.mxu0 0
        %2834 = vmatprep.subr.bf16.mxu0 0
        %2835 = vmatpush1.bf16.msra.mxu0 0
        %2836 = vmatprep.subr.bf16.mxu0 0
        %2837 = vmatpush1.bf16.msra.mxu0 0
        %2838 = vmatprep.mubr.bf16.mxu0 0
        %2839 = vmatmul.mubr.bf16.gmra.mrb[0].mxu0 %v2804
        %v2840 = vpop.f32.mrb[0].mxu0
        %v2841 = vadd.f32 %v2801, %v2840
        %v2842 = vpop.f32.mrb[0].mxu0
        %v2843 = vadd.f32 %v2801, %v2842
        %v2844 = vpop.f32.mrb[0].mxu0
        %v2845 = vpop.f32.mrb[0].mxu0
        %2846 = vdwg.mxu0
        %2847 = vst [vmem:[%s888] sm:$0xff] %v2841
        %2848 = vst [vmem:[%s888 + $0x8] sm:$0xff] %v2843
        %p2849 = scmp.lt.s32.totalorder %s43, 1
        %s2850 = scalar_select %p2849, %s43, 1
        %s2851 = smul.addr %s2850, 2
        %s2852 = smul.addr %s2851, 8
        %s2853 = scalar_lea.vmem %s23, %s2852
        // Predicated region
        $region165: #{hvatnet_forward.1} parent=111 // pred_check
          %p2854 = pneg %p549
        $region166: #{hvatnet_forward.1} parent=111 // pred_check_branch
          %2856 = sbr.rel (%p2854) target = $region168
        $region167: #{hvatnet_forward.1} parent=111 // pred_region
          _
        $region168: #{hvatnet_forward.1} parent=111 // pred_fallthru
          _
      $region112: #{hvatnet_forward.1} parent=5 // pred_fallthru
        _
      %p2857 = scmp.le.s32.totalorder 2, %s38
      // Predicated region
      $region169: #{hvatnet_forward.1} parent=5 // pred_check
        %p2858 = pneg %p2857
      $region170: #{hvatnet_forward.1} parent=5 // pred_check_branch
        %2860 = sbr.rel (%p2858) target = $region172
      $region171: #{hvatnet_forward.1} parent=5 // pred_region
        %s2861 = ssub.s32 %s38, 2
        // Predicated region
        $region173: #{hvatnet_forward.1} parent=171 // pred_check
          %p2862 = pneg %p555
        $region174: #{hvatnet_forward.1} parent=171 // pred_check_branch
          %2864 = sbr.rel (%p2862) target = $region176
        $region175: #{hvatnet_forward.1} parent=171 // pred_region
          %p2865 = scmp.lt.s32.totalorder %s44, 1
          %s2866 = scalar_select %p2865, %s44, 1
          %s2867 = smul.addr %s2866, 2
          %s2868 = smul.addr %s2867, 8
          %s2869 = scalar_lea.vmem %s23, %s2868
        $region176: #{hvatnet_forward.1} parent=171 // pred_fallthru
          _
      $region172: #{hvatnet_forward.1} parent=5 // pred_fallthru
        _
    $region6: #{hvatnet_forward.1} parent=1 // loop_footer
      %s42 = sadd.s32 1, %s38
    $region7: #{hvatnet_forward.1} parent=1 // loop_footer_branch
      %37 = sbr.rel target = $region3
    $region8: #{hvatnet_forward.1} parent=1 // loop_exit
      _
    %2870 = vsyncpa [#allocation3], 1
    %s2871 = scalar_lea.sflag [#allocation3], 1
    %2872 = vsyncpa %s2871, 1
    %2873 = vsyncpa [#allocation5], 1
    %2874 = vsyncpa [#allocation8], 1
    %2875 = vsyncpa [#allocation11], 1
    %2876 = vsyncpa [#allocation14], 1
    %2877 = vsyncpa [#allocation17], 1
    %2878 = vsyncpa [#allocation20], 1

</llo_original>
